<compile_context>
chip_gen: v7x
topology: tpu7x:2x2x1
jax: 0.10.0
libtpu: 0.0.40
codegen_flags: <defaults>
</compile_context>

<pallas_src>
import functools

import jax
import jax.numpy as jnp
from jax.experimental import pallas as pl
from jax.experimental.pallas import tpu as pltpu  # noqa: F401  (kept for parity with template)

# ----------------------------- configuration ------------------------------
NUM_QUESTION = 20     # num_question
NUM_CONCEPT  = 8      # num_concept == GRU hidden size
MAX_CPQ      = 4      # max concepts per question (q2c_table width)
DIM_EMB      = 16     # dim_emb
MAX_QUE_DISC = 10.0   # max_que_disc
BATCH        = 2
SEQ_LEN      = 9      # GRU runs over SEQ_LEN - 1 = 8 steps


# --------------------------- fused Pallas kernel ---------------------------
def _idct_kernel(T, B, H, E, Cq, Q, max_que_disc,
                 idx_ref, tblq_ref, cemb_ref, gru_ref, out_ref):
    TB = T * B
    f32 = jnp.float32

    idx = idx_ref[...]                         # (TB, 3) int32
    q_g  = idx[:, 0:1]                         # question ids, steps 0..T-1
    corr = idx[:, 1:2].astype(f32)             # correctness,  steps 0..T-1
    q_1  = idx[:, 2:3]                         # question ids, steps 1..T

    tbl = tblq_ref[...]                        # (Q, 3Cq+1): diff|mask|q2c|disc

    # ---- per-question table gathers: exact VPU select chains (Q is small) --
    # For large Q this would become a DMA gather / one-hot matmul instead.
    g_rows = jnp.zeros((TB, tbl.shape[1]), f32)
    s_rows = jnp.zeros((TB, tbl.shape[1]), f32)
    for q in range(Q):
        row = tbl[q:q + 1, :]                  # (1, 3Cq+1)
        g_rows = jnp.where(q_g == q, row, g_rows)
        s_rows = jnp.where(q_1 == q, row, s_rows)

    diff_g = jax.nn.sigmoid(g_rows[:, 0:Cq])               # (TB, Cq)
    mask_g = g_rows[:, Cq:2 * Cq]                          # (TB, Cq)
    q2c_g  = g_rows[:, 2 * Cq:3 * Cq].astype(jnp.int32)    # (TB, Cq)

    # ---- concept embedding: select-gather over H + Cq unrolled VPU FMAs ----
    emb = cemb_ref[...]                                    # (H, E)
    ce = jnp.zeros((TB, E), f32)
    s = jnp.zeros((TB, 1), f32)
    for c in range(Cq):
        qc_c = diff_g[:, c:c + 1] * mask_g[:, c:c + 1]     # (TB, 1)
        s = s + qc_c
        idx_c = q2c_g[:, c:c + 1]
        emb_c = jnp.zeros((TB, E), f32)
        for h in range(H):
            emb_c = jnp.where(idx_c == h, emb[h:h + 1, :], emb_c)
        ce = ce + qc_c * emb_c
    concept_emb = ce / (s + 1e-6)                          # exact divide

    # ---- GRU weights (single slab, static slices) --------------------------
    w_ih = gru_ref[0:2 * E, :]                             # (2E, 3H)
    w_hh = gru_ref[2 * E:2 * E + H, :]                     # (H, 3H)
    b_ih = gru_ref[2 * E + H:2 * E + H + 1, :]             # (1, 3H)
    b_hh = gru_ref[2 * E + H + 1:2 * E + H + 2, :]         # (1, 3H)

    # ---- GRU input projection hoisted out of the recurrence (VPU FMAs) -----
    gi_all = jnp.broadcast_to(b_ih, (TB, 3 * H))
    for j in range(E):
        gi_all = gi_all + concept_emb[:, j:j + 1] * w_ih[j:j + 1, :]
    for j in range(E):                                     # correct_emb cols are identical
        gi_all = gi_all + corr * w_ih[E + j:E + j + 1, :]

    # ---- GRU recurrence: static unroll, recurrent matmul as VPU FMAs -------
    h_t = jnp.zeros((B, H), f32)
    lat_pieces = []
    for t in range(T):
        gi = gi_all[t * B:(t + 1) * B, :]                  # static value slice
        gh = jnp.broadcast_to(b_hh, (B, 3 * H))
        for j in range(H):
            gh = gh + h_t[:, j:j + 1] * w_hh[j:j + 1, :]
        rz = jax.nn.sigmoid(gi[:, :2 * H] + gh[:, :2 * H])  # fused r|z gates
        r = rz[:, :H]
        z = rz[:, H:2 * H]
        n = jnp.tanh(gi[:, 2 * H:] + r * gh[:, 2 * H:])
        h_t = (1.0 - z) * n + z * h_t
        lat_pieces.append(h_t)
    latent = jnp.concatenate(lat_pieces, axis=0)           # (TB, H)

    # ---- IRT score path (batched over TB rows) -----------------------------
    diff1 = jax.nn.sigmoid(s_rows[:, 0:Cq])                # (TB, Cq)
    mask1 = s_rows[:, Cq:2 * Cq]                           # (TB, Cq)
    q2c1  = s_rows[:, 2 * Cq:3 * Cq].astype(jnp.int32)     # (TB, Cq)
    disc1 = jax.nn.sigmoid(s_rows[:, 3 * Cq:3 * Cq + 1]) * max_que_disc  # (TB,1)

    sw = jnp.zeros((TB, 1), f32)
    for c in range(Cq):
        sw = sw + diff1[:, c:c + 1] * mask1[:, c:c + 1]
    sw = sw + 1e-6

    acc = jnp.zeros((TB, 1), f32)
    for c in range(Cq):
        idx_c = q2c1[:, c:c + 1]
        ua_c = jnp.zeros((TB, 1), f32)
        for h in range(H):                                  # exact latent gather
            ua_c = jnp.where(idx_c == h, latent[:, h:h + 1], ua_c)
        ua_c = jax.nn.sigmoid(ua_c)
        inter_c = (ua_c - diff1[:, c:c + 1]) * mask1[:, c:c + 1]
        acc = acc + disc1 * inter_c / sw                    # exact divide

    out_ref[...] = jax.nn.sigmoid(acc)                      # (TB, 1)


# ----------------------------- forward pass --------------------------------
def idct_forward(question_seq, correct_seq, params, tables):
    B, L = question_seq.shape
    T = L - 1
    TB = T * B
    H, E, Cq, Q = NUM_CONCEPT, DIM_EMB, MAX_CPQ, NUM_QUESTION

    # Only tiny integer index plumbing + slab packing remains in the wrapper.
    qs_t = jnp.transpose(question_seq)                      # (L, B)
    cs_t = jnp.transpose(correct_seq)                       # (L, B)
    q_g  = qs_t[:T].reshape(TB, 1)                          # row r = t*B + b
    corr = cs_t[:T].reshape(TB, 1)
    q_1  = qs_t[1:].reshape(TB, 1)
    idx_slab = jnp.concatenate([q_g, corr, q_1], axis=1).astype(jnp.int32)  # (TB,3)

    tblq = jnp.concatenate([
        params["question_diff"],                            # (Q, Cq)
        tables["q2c_mask_table"],                           # (Q, Cq)
        tables["q2c_table"].astype(jnp.float32),            # (Q, Cq) exact small ints
        params["question_disc"][:, None],                   # (Q, 1)
    ], axis=1).astype(jnp.float32)                          # (Q, 3Cq+1)

    gru_slab = jnp.concatenate([
        params["w_ih_t"],                                   # (2E, 3H)
        params["w_hh_t"],                                   # (H, 3H)
        params["b_ih"],                                     # (1, 3H)
        params["b_hh"],                                     # (1, 3H)
    ], axis=0).astype(jnp.float32)                          # (2E+H+2, 3H)

    args = (idx_slab, tblq, params["embed_concept"].astype(jnp.float32), gru_slab)
    in_specs = [pl.BlockSpec(a.shape, lambda i, nd=a.ndim: (0,) * nd) for a in args]

    kernel = functools.partial(_idct_kernel, T, B, H, E, Cq, Q, MAX_QUE_DISC)
    score_col = pl.pallas_call(
        kernel,
        out_shape=jax.ShapeDtypeStruct((TB, 1), jnp.float32),
        grid=(1,),
        in_specs=in_specs,
        out_specs=pl.BlockSpec((TB, 1), lambda i: (0, 0)),
    )(*args)

    # row r = t*B + b  ->  (B, T)
    return jnp.transpose(score_col.reshape(T, B))


# ------------------------- pure-JAX reference ------------------------------
def idct_forward_ref(question_seq, correct_seq, params, tables):
    B, L = question_seq.shape
    E, H = DIM_EMB, NUM_CONCEPT
    q2c_table = tables["q2c_table"]
    q2c_mask = tables["q2c_mask_table"]

    mask = q2c_mask[question_seq]
    qc = jax.nn.sigmoid(params["question_diff"][question_seq]) * mask
    s = jnp.sum(qc, axis=-1, keepdims=True) + 1e-6
    cemb = params["embed_concept"][q2c_table[question_seq]]
    concept_emb = jnp.sum(qc[..., None] * cemb, axis=-2) / s

    correct_emb = jnp.broadcast_to(
        correct_seq.astype(jnp.float32)[:, :, None], (B, L, E))
    x = jnp.concatenate([concept_emb[:, :-1], correct_emb[:, :-1]], axis=2)

    hi = jax.lax.Precision.HIGHEST   # full-f32 reference matmuls

    def step(h, xt):
        gi = jnp.dot(xt, params["w_ih_t"], precision=hi) + params["b_ih"][0]
        gh = jnp.dot(h, params["w_hh_t"], precision=hi) + params["b_hh"][0]
        r = jax.nn.sigmoid(gi[:, :H] + gh[:, :H])
        z = jax.nn.sigmoid(gi[:, H:2 * H] + gh[:, H:2 * H])
        n = jnp.tanh(gi[:, 2 * H:] + r * gh[:, 2 * H:])
        h_new = (1.0 - z) * n + z * h
        return h_new, h_new

    h0 = jnp.zeros((B, H), jnp.float32)
    _, latent = jax.lax.scan(step, h0, jnp.transpose(x, (1, 0, 2)))
    latent = jnp.transpose(latent, (1, 0, 2))

    qs1 = question_seq[:, 1:]
    q2c1 = q2c_table[qs1]
    mask1 = q2c_mask[qs1]
    diff1 = jax.nn.sigmoid(params["question_diff"][qs1])
    disc1 = jax.nn.sigmoid(params["question_disc"][qs1]) * MAX_QUE_DISC
    ua = jax.nn.sigmoid(jnp.take_along_axis(latent, q2c1, axis=2))
    inter = (ua - diff1) * mask1
    irt = disc1[..., None] * inter
    sw = jnp.sum(diff1 * mask1, axis=-1, keepdims=True) + 1e-6
    return jax.nn.sigmoid(jnp.sum(irt / sw, axis=-1))


# --------------------------------- main -------------------------------------
if __name__ == "__main__":
    key = jax.random.PRNGKey(0)
    k_emb, k_wih, k_whh, k_bih, k_bhh, k_q2c, k_nc, k_qs, k_cs = jax.random.split(key, 9)

    H = NUM_CONCEPT
    DIN = 2 * DIM_EMB
    kscale = 1.0 / jnp.sqrt(jnp.float32(H))

    # Deterministic synthetic tables (objects['data']).
    q2c_table = jax.random.randint(k_q2c, (NUM_QUESTION, MAX_CPQ), 0, NUM_CONCEPT,
                                   dtype=jnp.int32)
    n_c = jax.random.randint(k_nc, (NUM_QUESTION, 1), 1, MAX_CPQ + 1)
    q2c_mask_table = (jnp.arange(MAX_CPQ)[None, :] < n_c).astype(jnp.float32)
    tables = {"q2c_table": q2c_table, "q2c_mask_table": q2c_mask_table}

    # Deterministic parameter init (module shapes; diff/disc are zeros as in
    # __init__, GRU/embedding are random-but-seeded).
    params = {
        "embed_concept": jax.random.normal(k_emb, (NUM_CONCEPT, DIM_EMB), jnp.float32) * 0.1,
        "question_diff": jnp.zeros((NUM_QUESTION, MAX_CPQ), jnp.float32),
        "question_disc": jnp.zeros((NUM_QUESTION,), jnp.float32),
        "w_ih_t": jax.random.uniform(k_wih, (DIN, 3 * H), jnp.float32, -kscale, kscale),
        "w_hh_t": jax.random.uniform(k_whh, (H, 3 * H), jnp.float32, -kscale, kscale),
        "b_ih": jax.random.uniform(k_bih, (1, 3 * H), jnp.float32, -kscale, kscale),
        "b_hh": jax.random.uniform(k_bhh, (1, 3 * H), jnp.float32, -kscale, kscale),
    }

    question_seq = jax.random.randint(k_qs, (BATCH, SEQ_LEN), 0, NUM_QUESTION,
                                      dtype=jnp.int32)
    correct_seq = jax.random.randint(k_cs, (BATCH, SEQ_LEN), 0, 2, dtype=jnp.int32)

    # TODO(synk): self.dropout is defined in the module but never applied in
    # forward(); it is intentionally omitted here.
    fwd = jax.jit(idct_forward)
    out = jax.block_until_ready(fwd(question_seq, correct_seq, params, tables))

    ref = jax.block_until_ready(
        idct_forward_ref(question_seq, correct_seq, params, tables))
    assert out.shape == (BATCH, SEQ_LEN - 1)
    assert jnp.allclose(out, ref, rtol=1e-5, atol=1e-5), (out, ref)

    print("KERNEL_OK")
</pallas_src>

<mosaic_0001>
module attributes {stable_mosaic.version = 11 : i64} {
  func.func @_idct_kernel(%arg0: i32, %arg1: memref<16x3xi32, #tpu.memory_space<vmem>>, %arg2: memref<20x13xf32, #tpu.memory_space<vmem>>, %arg3: memref<8x16xf32, #tpu.memory_space<vmem>>, %arg4: memref<42x24xf32, #tpu.memory_space<vmem>>, %arg5: memref<16x1xf32, #tpu.memory_space<vmem>>) attributes {dimension_semantics = [#tpu.dimension_semantics<arbitrary>], iteration_bounds = array<i64: 1>, scalar_prefetch = 0 : i64, scratch_operands = 0 : i64, tpu.core_type = #tpu.core_type<tc>, window_params = [{pipeline_mode = #tpu.pipeline_mode<synchronous>, transform_indices = @transform_0, window_bounds = array<i64: 16, 3>}, {pipeline_mode = #tpu.pipeline_mode<synchronous>, transform_indices = @transform_1, window_bounds = array<i64: 20, 13>}, {pipeline_mode = #tpu.pipeline_mode<synchronous>, transform_indices = @transform_2, window_bounds = array<i64: 8, 16>}, {pipeline_mode = #tpu.pipeline_mode<synchronous>, transform_indices = @transform_3, window_bounds = array<i64: 42, 24>}, {pipeline_mode = #tpu.pipeline_mode<synchronous>, transform_indices = @transform_4, window_bounds = array<i64: 16, 1>}]} {
    %c0 = arith.constant 0 : index
    %c0_0 = arith.constant 0 : index
    %0 = vector.load %arg1[%c0, %c0_0] : memref<16x3xi32, #tpu.memory_space<vmem>>, vector<16x3xi32>
    %1 = vector.extract_strided_slice %0 {offsets = [0, 0], sizes = [16, 1], strides = [1, 1]} : vector<16x3xi32> to vector<16x1xi32>
    %2 = vector.extract_strided_slice %0 {offsets = [0, 1], sizes = [16, 1], strides = [1, 1]} : vector<16x3xi32> to vector<16x1xi32>
    %3 = arith.sitofp %2 : vector<16x1xi32> to vector<16x1xf32>
    %4 = vector.extract_strided_slice %0 {offsets = [0, 2], sizes = [16, 1], strides = [1, 1]} : vector<16x3xi32> to vector<16x1xi32>
    %c0_1 = arith.constant 0 : index
    %c0_2 = arith.constant 0 : index
    %5 = vector.load %arg2[%c0_1, %c0_2] : memref<20x13xf32, #tpu.memory_space<vmem>>, vector<20x13xf32>
    %cst = arith.constant 0.000000e+00 : f32
    %6 = vector.broadcast %cst : f32 to vector<16x13xf32>
    %cst_3 = arith.constant 0.000000e+00 : f32
    %7 = vector.broadcast %cst_3 : f32 to vector<16x13xf32>
    %8 = vector.extract_strided_slice %5 {offsets = [0, 0], sizes = [1, 13], strides = [1, 1]} : vector<20x13xf32> to vector<1x13xf32>
    %c0_i32 = arith.constant 0 : i32
    %9 = vector.broadcast %c0_i32 : i32 to vector<16x1xi32>
    %10 = arith.cmpi eq, %1, %9 : vector<16x1xi32>
    %11 = vector.shape_cast %10 : vector<16x1xi1> to vector<16x1xi1>
    %12 = vector.broadcast %11 : vector<16x1xi1> to vector<16x13xi1>
    %13 = vector.shape_cast %8 : vector<1x13xf32> to vector<1x13xf32>
    %14 = vector.broadcast %13 : vector<1x13xf32> to vector<16x13xf32>
    %15 = arith.select %12, %14, %6 : vector<16x13xi1>, vector<16x13xf32>
    %c0_i32_4 = arith.constant 0 : i32
    %16 = vector.broadcast %c0_i32_4 : i32 to vector<16x1xi32>
    %17 = arith.cmpi eq, %4, %16 : vector<16x1xi32>
    %18 = vector.shape_cast %17 : vector<16x1xi1> to vector<16x1xi1>
    %19 = vector.broadcast %18 : vector<16x1xi1> to vector<16x13xi1>
    %20 = vector.shape_cast %8 : vector<1x13xf32> to vector<1x13xf32>
    %21 = vector.broadcast %20 : vector<1x13xf32> to vector<16x13xf32>
    %22 = arith.select %19, %21, %7 : vector<16x13xi1>, vector<16x13xf32>
    %23 = vector.extract_strided_slice %5 {offsets = [1, 0], sizes = [1, 13], strides = [1, 1]} : vector<20x13xf32> to vector<1x13xf32>
    %c1_i32 = arith.constant 1 : i32
    %24 = vector.broadcast %c1_i32 : i32 to vector<16x1xi32>
    %25 = arith.cmpi eq, %1, %24 : vector<16x1xi32>
    %26 = vector.shape_cast %25 : vector<16x1xi1> to vector<16x1xi1>
    %27 = vector.broadcast %26 : vector<16x1xi1> to vector<16x13xi1>
    %28 = vector.shape_cast %23 : vector<1x13xf32> to vector<1x13xf32>
    %29 = vector.broadcast %28 : vector<1x13xf32> to vector<16x13xf32>
    %30 = arith.select %27, %29, %15 : vector<16x13xi1>, vector<16x13xf32>
    %c1_i32_5 = arith.constant 1 : i32
    %31 = vector.broadcast %c1_i32_5 : i32 to vector<16x1xi32>
    %32 = arith.cmpi eq, %4, %31 : vector<16x1xi32>
    %33 = vector.shape_cast %32 : vector<16x1xi1> to vector<16x1xi1>
    %34 = vector.broadcast %33 : vector<16x1xi1> to vector<16x13xi1>
    %35 = vector.shape_cast %23 : vector<1x13xf32> to vector<1x13xf32>
    %36 = vector.broadcast %35 : vector<1x13xf32> to vector<16x13xf32>
    %37 = arith.select %34, %36, %22 : vector<16x13xi1>, vector<16x13xf32>
    %38 = vector.extract_strided_slice %5 {offsets = [2, 0], sizes = [1, 13], strides = [1, 1]} : vector<20x13xf32> to vector<1x13xf32>
    %c2_i32 = arith.constant 2 : i32
    %39 = vector.broadcast %c2_i32 : i32 to vector<16x1xi32>
    %40 = arith.cmpi eq, %1, %39 : vector<16x1xi32>
    %41 = vector.shape_cast %40 : vector<16x1xi1> to vector<16x1xi1>
    %42 = vector.broadcast %41 : vector<16x1xi1> to vector<16x13xi1>
    %43 = vector.shape_cast %38 : vector<1x13xf32> to vector<1x13xf32>
    %44 = vector.broadcast %43 : vector<1x13xf32> to vector<16x13xf32>
    %45 = arith.select %42, %44, %30 : vector<16x13xi1>, vector<16x13xf32>
    %c2_i32_6 = arith.constant 2 : i32
    %46 = vector.broadcast %c2_i32_6 : i32 to vector<16x1xi32>
    %47 = arith.cmpi eq, %4, %46 : vector<16x1xi32>
    %48 = vector.shape_cast %47 : vector<16x1xi1> to vector<16x1xi1>
    %49 = vector.broadcast %48 : vector<16x1xi1> to vector<16x13xi1>
    %50 = vector.shape_cast %38 : vector<1x13xf32> to vector<1x13xf32>
    %51 = vector.broadcast %50 : vector<1x13xf32> to vector<16x13xf32>
    %52 = arith.select %49, %51, %37 : vector<16x13xi1>, vector<16x13xf32>
    %53 = vector.extract_strided_slice %5 {offsets = [3, 0], sizes = [1, 13], strides = [1, 1]} : vector<20x13xf32> to vector<1x13xf32>
    %c3_i32 = arith.constant 3 : i32
    %54 = vector.broadcast %c3_i32 : i32 to vector<16x1xi32>
    %55 = arith.cmpi eq, %1, %54 : vector<16x1xi32>
    %56 = vector.shape_cast %55 : vector<16x1xi1> to vector<16x1xi1>
    %57 = vector.broadcast %56 : vector<16x1xi1> to vector<16x13xi1>
    %58 = vector.shape_cast %53 : vector<1x13xf32> to vector<1x13xf32>
    %59 = vector.broadcast %58 : vector<1x13xf32> to vector<16x13xf32>
    %60 = arith.select %57, %59, %45 : vector<16x13xi1>, vector<16x13xf32>
    %c3_i32_7 = arith.constant 3 : i32
    %61 = vector.broadcast %c3_i32_7 : i32 to vector<16x1xi32>
    %62 = arith.cmpi eq, %4, %61 : vector<16x1xi32>
    %63 = vector.shape_cast %62 : vector<16x1xi1> to vector<16x1xi1>
    %64 = vector.broadcast %63 : vector<16x1xi1> to vector<16x13xi1>
    %65 = vector.shape_cast %53 : vector<1x13xf32> to vector<1x13xf32>
    %66 = vector.broadcast %65 : vector<1x13xf32> to vector<16x13xf32>
    %67 = arith.select %64, %66, %52 : vector<16x13xi1>, vector<16x13xf32>
    %68 = vector.extract_strided_slice %5 {offsets = [4, 0], sizes = [1, 13], strides = [1, 1]} : vector<20x13xf32> to vector<1x13xf32>
    %c4_i32 = arith.constant 4 : i32
    %69 = vector.broadcast %c4_i32 : i32 to vector<16x1xi32>
    %70 = arith.cmpi eq, %1, %69 : vector<16x1xi32>
    %71 = vector.shape_cast %70 : vector<16x1xi1> to vector<16x1xi1>
    %72 = vector.broadcast %71 : vector<16x1xi1> to vector<16x13xi1>
    %73 = vector.shape_cast %68 : vector<1x13xf32> to vector<1x13xf32>
    %74 = vector.broadcast %73 : vector<1x13xf32> to vector<16x13xf32>
    %75 = arith.select %72, %74, %60 : vector<16x13xi1>, vector<16x13xf32>
    %c4_i32_8 = arith.constant 4 : i32
    %76 = vector.broadcast %c4_i32_8 : i32 to vector<16x1xi32>
    %77 = arith.cmpi eq, %4, %76 : vector<16x1xi32>
    %78 = vector.shape_cast %77 : vector<16x1xi1> to vector<16x1xi1>
    %79 = vector.broadcast %78 : vector<16x1xi1> to vector<16x13xi1>
    %80 = vector.shape_cast %68 : vector<1x13xf32> to vector<1x13xf32>
    %81 = vector.broadcast %80 : vector<1x13xf32> to vector<16x13xf32>
    %82 = arith.select %79, %81, %67 : vector<16x13xi1>, vector<16x13xf32>
    %83 = vector.extract_strided_slice %5 {offsets = [5, 0], sizes = [1, 13], strides = [1, 1]} : vector<20x13xf32> to vector<1x13xf32>
    %c5_i32 = arith.constant 5 : i32
    %84 = vector.broadcast %c5_i32 : i32 to vector<16x1xi32>
    %85 = arith.cmpi eq, %1, %84 : vector<16x1xi32>
    %86 = vector.shape_cast %85 : vector<16x1xi1> to vector<16x1xi1>
    %87 = vector.broadcast %86 : vector<16x1xi1> to vector<16x13xi1>
    %88 = vector.shape_cast %83 : vector<1x13xf32> to vector<1x13xf32>
    %89 = vector.broadcast %88 : vector<1x13xf32> to vector<16x13xf32>
    %90 = arith.select %87, %89, %75 : vector<16x13xi1>, vector<16x13xf32>
    %c5_i32_9 = arith.constant 5 : i32
    %91 = vector.broadcast %c5_i32_9 : i32 to vector<16x1xi32>
    %92 = arith.cmpi eq, %4, %91 : vector<16x1xi32>
    %93 = vector.shape_cast %92 : vector<16x1xi1> to vector<16x1xi1>
    %94 = vector.broadcast %93 : vector<16x1xi1> to vector<16x13xi1>
    %95 = vector.shape_cast %83 : vector<1x13xf32> to vector<1x13xf32>
    %96 = vector.broadcast %95 : vector<1x13xf32> to vector<16x13xf32>
    %97 = arith.select %94, %96, %82 : vector<16x13xi1>, vector<16x13xf32>
    %98 = vector.extract_strided_slice %5 {offsets = [6, 0], sizes = [1, 13], strides = [1, 1]} : vector<20x13xf32> to vector<1x13xf32>
    %c6_i32 = arith.constant 6 : i32
    %99 = vector.broadcast %c6_i32 : i32 to vector<16x1xi32>
    %100 = arith.cmpi eq, %1, %99 : vector<16x1xi32>
    %101 = vector.shape_cast %100 : vector<16x1xi1> to vector<16x1xi1>
    %102 = vector.broadcast %101 : vector<16x1xi1> to vector<16x13xi1>
    %103 = vector.shape_cast %98 : vector<1x13xf32> to vector<1x13xf32>
    %104 = vector.broadcast %103 : vector<1x13xf32> to vector<16x13xf32>
    %105 = arith.select %102, %104, %90 : vector<16x13xi1>, vector<16x13xf32>
    %c6_i32_10 = arith.constant 6 : i32
    %106 = vector.broadcast %c6_i32_10 : i32 to vector<16x1xi32>
    %107 = arith.cmpi eq, %4, %106 : vector<16x1xi32>
    %108 = vector.shape_cast %107 : vector<16x1xi1> to vector<16x1xi1>
    %109 = vector.broadcast %108 : vector<16x1xi1> to vector<16x13xi1>
    %110 = vector.shape_cast %98 : vector<1x13xf32> to vector<1x13xf32>
    %111 = vector.broadcast %110 : vector<1x13xf32> to vector<16x13xf32>
    %112 = arith.select %109, %111, %97 : vector<16x13xi1>, vector<16x13xf32>
    %113 = vector.extract_strided_slice %5 {offsets = [7, 0], sizes = [1, 13], strides = [1, 1]} : vector<20x13xf32> to vector<1x13xf32>
    %c7_i32 = arith.constant 7 : i32
    %114 = vector.broadcast %c7_i32 : i32 to vector<16x1xi32>
    %115 = arith.cmpi eq, %1, %114 : vector<16x1xi32>
    %116 = vector.shape_cast %115 : vector<16x1xi1> to vector<16x1xi1>
    %117 = vector.broadcast %116 : vector<16x1xi1> to vector<16x13xi1>
    %118 = vector.shape_cast %113 : vector<1x13xf32> to vector<1x13xf32>
    %119 = vector.broadcast %118 : vector<1x13xf32> to vector<16x13xf32>
    %120 = arith.select %117, %119, %105 : vector<16x13xi1>, vector<16x13xf32>
    %c7_i32_11 = arith.constant 7 : i32
    %121 = vector.broadcast %c7_i32_11 : i32 to vector<16x1xi32>
    %122 = arith.cmpi eq, %4, %121 : vector<16x1xi32>
    %123 = vector.shape_cast %122 : vector<16x1xi1> to vector<16x1xi1>
    %124 = vector.broadcast %123 : vector<16x1xi1> to vector<16x13xi1>
    %125 = vector.shape_cast %113 : vector<1x13xf32> to vector<1x13xf32>
    %126 = vector.broadcast %125 : vector<1x13xf32> to vector<16x13xf32>
    %127 = arith.select %124, %126, %112 : vector<16x13xi1>, vector<16x13xf32>
    %128 = vector.extract_strided_slice %5 {offsets = [8, 0], sizes = [1, 13], strides = [1, 1]} : vector<20x13xf32> to vector<1x13xf32>
    %c8_i32 = arith.constant 8 : i32
    %129 = vector.broadcast %c8_i32 : i32 to vector<16x1xi32>
    %130 = arith.cmpi eq, %1, %129 : vector<16x1xi32>
    %131 = vector.shape_cast %130 : vector<16x1xi1> to vector<16x1xi1>
    %132 = vector.broadcast %131 : vector<16x1xi1> to vector<16x13xi1>
    %133 = vector.shape_cast %128 : vector<1x13xf32> to vector<1x13xf32>
    %134 = vector.broadcast %133 : vector<1x13xf32> to vector<16x13xf32>
    %135 = arith.select %132, %134, %120 : vector<16x13xi1>, vector<16x13xf32>
    %c8_i32_12 = arith.constant 8 : i32
    %136 = vector.broadcast %c8_i32_12 : i32 to vector<16x1xi32>
    %137 = arith.cmpi eq, %4, %136 : vector<16x1xi32>
    %138 = vector.shape_cast %137 : vector<16x1xi1> to vector<16x1xi1>
    %139 = vector.broadcast %138 : vector<16x1xi1> to vector<16x13xi1>
    %140 = vector.shape_cast %128 : vector<1x13xf32> to vector<1x13xf32>
    %141 = vector.broadcast %140 : vector<1x13xf32> to vector<16x13xf32>
    %142 = arith.select %139, %141, %127 : vector<16x13xi1>, vector<16x13xf32>
    %143 = vector.extract_strided_slice %5 {offsets = [9, 0], sizes = [1, 13], strides = [1, 1]} : vector<20x13xf32> to vector<1x13xf32>
    %c9_i32 = arith.constant 9 : i32
    %144 = vector.broadcast %c9_i32 : i32 to vector<16x1xi32>
    %145 = arith.cmpi eq, %1, %144 : vector<16x1xi32>
    %146 = vector.shape_cast %145 : vector<16x1xi1> to vector<16x1xi1>
    %147 = vector.broadcast %146 : vector<16x1xi1> to vector<16x13xi1>
    %148 = vector.shape_cast %143 : vector<1x13xf32> to vector<1x13xf32>
    %149 = vector.broadcast %148 : vector<1x13xf32> to vector<16x13xf32>
    %150 = arith.select %147, %149, %135 : vector<16x13xi1>, vector<16x13xf32>
    %c9_i32_13 = arith.constant 9 : i32
    %151 = vector.broadcast %c9_i32_13 : i32 to vector<16x1xi32>
    %152 = arith.cmpi eq, %4, %151 : vector<16x1xi32>
    %153 = vector.shape_cast %152 : vector<16x1xi1> to vector<16x1xi1>
    %154 = vector.broadcast %153 : vector<16x1xi1> to vector<16x13xi1>
    %155 = vector.shape_cast %143 : vector<1x13xf32> to vector<1x13xf32>
    %156 = vector.broadcast %155 : vector<1x13xf32> to vector<16x13xf32>
    %157 = arith.select %154, %156, %142 : vector<16x13xi1>, vector<16x13xf32>
    %158 = vector.extract_strided_slice %5 {offsets = [10, 0], sizes = [1, 13], strides = [1, 1]} : vector<20x13xf32> to vector<1x13xf32>
    %c10_i32 = arith.constant 10 : i32
    %159 = vector.broadcast %c10_i32 : i32 to vector<16x1xi32>
    %160 = arith.cmpi eq, %1, %159 : vector<16x1xi32>
    %161 = vector.shape_cast %160 : vector<16x1xi1> to vector<16x1xi1>
    %162 = vector.broadcast %161 : vector<16x1xi1> to vector<16x13xi1>
    %163 = vector.shape_cast %158 : vector<1x13xf32> to vector<1x13xf32>
    %164 = vector.broadcast %163 : vector<1x13xf32> to vector<16x13xf32>
    %165 = arith.select %162, %164, %150 : vector<16x13xi1>, vector<16x13xf32>
    %c10_i32_14 = arith.constant 10 : i32
    %166 = vector.broadcast %c10_i32_14 : i32 to vector<16x1xi32>
    %167 = arith.cmpi eq, %4, %166 : vector<16x1xi32>
    %168 = vector.shape_cast %167 : vector<16x1xi1> to vector<16x1xi1>
    %169 = vector.broadcast %168 : vector<16x1xi1> to vector<16x13xi1>
    %170 = vector.shape_cast %158 : vector<1x13xf32> to vector<1x13xf32>
    %171 = vector.broadcast %170 : vector<1x13xf32> to vector<16x13xf32>
    %172 = arith.select %169, %171, %157 : vector<16x13xi1>, vector<16x13xf32>
    %173 = vector.extract_strided_slice %5 {offsets = [11, 0], sizes = [1, 13], strides = [1, 1]} : vector<20x13xf32> to vector<1x13xf32>
    %c11_i32 = arith.constant 11 : i32
    %174 = vector.broadcast %c11_i32 : i32 to vector<16x1xi32>
    %175 = arith.cmpi eq, %1, %174 : vector<16x1xi32>
    %176 = vector.shape_cast %175 : vector<16x1xi1> to vector<16x1xi1>
    %177 = vector.broadcast %176 : vector<16x1xi1> to vector<16x13xi1>
    %178 = vector.shape_cast %173 : vector<1x13xf32> to vector<1x13xf32>
    %179 = vector.broadcast %178 : vector<1x13xf32> to vector<16x13xf32>
    %180 = arith.select %177, %179, %165 : vector<16x13xi1>, vector<16x13xf32>
    %c11_i32_15 = arith.constant 11 : i32
    %181 = vector.broadcast %c11_i32_15 : i32 to vector<16x1xi32>
    %182 = arith.cmpi eq, %4, %181 : vector<16x1xi32>
    %183 = vector.shape_cast %182 : vector<16x1xi1> to vector<16x1xi1>
    %184 = vector.broadcast %183 : vector<16x1xi1> to vector<16x13xi1>
    %185 = vector.shape_cast %173 : vector<1x13xf32> to vector<1x13xf32>
    %186 = vector.broadcast %185 : vector<1x13xf32> to vector<16x13xf32>
    %187 = arith.select %184, %186, %172 : vector<16x13xi1>, vector<16x13xf32>
    %188 = vector.extract_strided_slice %5 {offsets = [12, 0], sizes = [1, 13], strides = [1, 1]} : vector<20x13xf32> to vector<1x13xf32>
    %c12_i32 = arith.constant 12 : i32
    %189 = vector.broadcast %c12_i32 : i32 to vector<16x1xi32>
    %190 = arith.cmpi eq, %1, %189 : vector<16x1xi32>
    %191 = vector.shape_cast %190 : vector<16x1xi1> to vector<16x1xi1>
    %192 = vector.broadcast %191 : vector<16x1xi1> to vector<16x13xi1>
    %193 = vector.shape_cast %188 : vector<1x13xf32> to vector<1x13xf32>
    %194 = vector.broadcast %193 : vector<1x13xf32> to vector<16x13xf32>
    %195 = arith.select %192, %194, %180 : vector<16x13xi1>, vector<16x13xf32>
    %c12_i32_16 = arith.constant 12 : i32
    %196 = vector.broadcast %c12_i32_16 : i32 to vector<16x1xi32>
    %197 = arith.cmpi eq, %4, %196 : vector<16x1xi32>
    %198 = vector.shape_cast %197 : vector<16x1xi1> to vector<16x1xi1>
    %199 = vector.broadcast %198 : vector<16x1xi1> to vector<16x13xi1>
    %200 = vector.shape_cast %188 : vector<1x13xf32> to vector<1x13xf32>
    %201 = vector.broadcast %200 : vector<1x13xf32> to vector<16x13xf32>
    %202 = arith.select %199, %201, %187 : vector<16x13xi1>, vector<16x13xf32>
    %203 = vector.extract_strided_slice %5 {offsets = [13, 0], sizes = [1, 13], strides = [1, 1]} : vector<20x13xf32> to vector<1x13xf32>
    %c13_i32 = arith.constant 13 : i32
    %204 = vector.broadcast %c13_i32 : i32 to vector<16x1xi32>
    %205 = arith.cmpi eq, %1, %204 : vector<16x1xi32>
    %206 = vector.shape_cast %205 : vector<16x1xi1> to vector<16x1xi1>
    %207 = vector.broadcast %206 : vector<16x1xi1> to vector<16x13xi1>
    %208 = vector.shape_cast %203 : vector<1x13xf32> to vector<1x13xf32>
    %209 = vector.broadcast %208 : vector<1x13xf32> to vector<16x13xf32>
    %210 = arith.select %207, %209, %195 : vector<16x13xi1>, vector<16x13xf32>
    %c13_i32_17 = arith.constant 13 : i32
    %211 = vector.broadcast %c13_i32_17 : i32 to vector<16x1xi32>
    %212 = arith.cmpi eq, %4, %211 : vector<16x1xi32>
    %213 = vector.shape_cast %212 : vector<16x1xi1> to vector<16x1xi1>
    %214 = vector.broadcast %213 : vector<16x1xi1> to vector<16x13xi1>
    %215 = vector.shape_cast %203 : vector<1x13xf32> to vector<1x13xf32>
    %216 = vector.broadcast %215 : vector<1x13xf32> to vector<16x13xf32>
    %217 = arith.select %214, %216, %202 : vector<16x13xi1>, vector<16x13xf32>
    %218 = vector.extract_strided_slice %5 {offsets = [14, 0], sizes = [1, 13], strides = [1, 1]} : vector<20x13xf32> to vector<1x13xf32>
    %c14_i32 = arith.constant 14 : i32
    %219 = vector.broadcast %c14_i32 : i32 to vector<16x1xi32>
    %220 = arith.cmpi eq, %1, %219 : vector<16x1xi32>
    %221 = vector.shape_cast %220 : vector<16x1xi1> to vector<16x1xi1>
    %222 = vector.broadcast %221 : vector<16x1xi1> to vector<16x13xi1>
    %223 = vector.shape_cast %218 : vector<1x13xf32> to vector<1x13xf32>
    %224 = vector.broadcast %223 : vector<1x13xf32> to vector<16x13xf32>
    %225 = arith.select %222, %224, %210 : vector<16x13xi1>, vector<16x13xf32>
    %c14_i32_18 = arith.constant 14 : i32
    %226 = vector.broadcast %c14_i32_18 : i32 to vector<16x1xi32>
    %227 = arith.cmpi eq, %4, %226 : vector<16x1xi32>
    %228 = vector.shape_cast %227 : vector<16x1xi1> to vector<16x1xi1>
    %229 = vector.broadcast %228 : vector<16x1xi1> to vector<16x13xi1>
    %230 = vector.shape_cast %218 : vector<1x13xf32> to vector<1x13xf32>
    %231 = vector.broadcast %230 : vector<1x13xf32> to vector<16x13xf32>
    %232 = arith.select %229, %231, %217 : vector<16x13xi1>, vector<16x13xf32>
    %233 = vector.extract_strided_slice %5 {offsets = [15, 0], sizes = [1, 13], strides = [1, 1]} : vector<20x13xf32> to vector<1x13xf32>
    %c15_i32 = arith.constant 15 : i32
    %234 = vector.broadcast %c15_i32 : i32 to vector<16x1xi32>
    %235 = arith.cmpi eq, %1, %234 : vector<16x1xi32>
    %236 = vector.shape_cast %235 : vector<16x1xi1> to vector<16x1xi1>
    %237 = vector.broadcast %236 : vector<16x1xi1> to vector<16x13xi1>
    %238 = vector.shape_cast %233 : vector<1x13xf32> to vector<1x13xf32>
    %239 = vector.broadcast %238 : vector<1x13xf32> to vector<16x13xf32>
    %240 = arith.select %237, %239, %225 : vector<16x13xi1>, vector<16x13xf32>
    %c15_i32_19 = arith.constant 15 : i32
    %241 = vector.broadcast %c15_i32_19 : i32 to vector<16x1xi32>
    %242 = arith.cmpi eq, %4, %241 : vector<16x1xi32>
    %243 = vector.shape_cast %242 : vector<16x1xi1> to vector<16x1xi1>
    %244 = vector.broadcast %243 : vector<16x1xi1> to vector<16x13xi1>
    %245 = vector.shape_cast %233 : vector<1x13xf32> to vector<1x13xf32>
    %246 = vector.broadcast %245 : vector<1x13xf32> to vector<16x13xf32>
    %247 = arith.select %244, %246, %232 : vector<16x13xi1>, vector<16x13xf32>
    %248 = vector.extract_strided_slice %5 {offsets = [16, 0], sizes = [1, 13], strides = [1, 1]} : vector<20x13xf32> to vector<1x13xf32>
    %c16_i32 = arith.constant 16 : i32
    %249 = vector.broadcast %c16_i32 : i32 to vector<16x1xi32>
    %250 = arith.cmpi eq, %1, %249 : vector<16x1xi32>
    %251 = vector.shape_cast %250 : vector<16x1xi1> to vector<16x1xi1>
    %252 = vector.broadcast %251 : vector<16x1xi1> to vector<16x13xi1>
    %253 = vector.shape_cast %248 : vector<1x13xf32> to vector<1x13xf32>
    %254 = vector.broadcast %253 : vector<1x13xf32> to vector<16x13xf32>
    %255 = arith.select %252, %254, %240 : vector<16x13xi1>, vector<16x13xf32>
    %c16_i32_20 = arith.constant 16 : i32
    %256 = vector.broadcast %c16_i32_20 : i32 to vector<16x1xi32>
    %257 = arith.cmpi eq, %4, %256 : vector<16x1xi32>
    %258 = vector.shape_cast %257 : vector<16x1xi1> to vector<16x1xi1>
    %259 = vector.broadcast %258 : vector<16x1xi1> to vector<16x13xi1>
    %260 = vector.shape_cast %248 : vector<1x13xf32> to vector<1x13xf32>
    %261 = vector.broadcast %260 : vector<1x13xf32> to vector<16x13xf32>
    %262 = arith.select %259, %261, %247 : vector<16x13xi1>, vector<16x13xf32>
    %263 = vector.extract_strided_slice %5 {offsets = [17, 0], sizes = [1, 13], strides = [1, 1]} : vector<20x13xf32> to vector<1x13xf32>
    %c17_i32 = arith.constant 17 : i32
    %264 = vector.broadcast %c17_i32 : i32 to vector<16x1xi32>
    %265 = arith.cmpi eq, %1, %264 : vector<16x1xi32>
    %266 = vector.shape_cast %265 : vector<16x1xi1> to vector<16x1xi1>
    %267 = vector.broadcast %266 : vector<16x1xi1> to vector<16x13xi1>
    %268 = vector.shape_cast %263 : vector<1x13xf32> to vector<1x13xf32>
    %269 = vector.broadcast %268 : vector<1x13xf32> to vector<16x13xf32>
    %270 = arith.select %267, %269, %255 : vector<16x13xi1>, vector<16x13xf32>
    %c17_i32_21 = arith.constant 17 : i32
    %271 = vector.broadcast %c17_i32_21 : i32 to vector<16x1xi32>
    %272 = arith.cmpi eq, %4, %271 : vector<16x1xi32>
    %273 = vector.shape_cast %272 : vector<16x1xi1> to vector<16x1xi1>
    %274 = vector.broadcast %273 : vector<16x1xi1> to vector<16x13xi1>
    %275 = vector.shape_cast %263 : vector<1x13xf32> to vector<1x13xf32>
    %276 = vector.broadcast %275 : vector<1x13xf32> to vector<16x13xf32>
    %277 = arith.select %274, %276, %262 : vector<16x13xi1>, vector<16x13xf32>
    %278 = vector.extract_strided_slice %5 {offsets = [18, 0], sizes = [1, 13], strides = [1, 1]} : vector<20x13xf32> to vector<1x13xf32>
    %c18_i32 = arith.constant 18 : i32
    %279 = vector.broadcast %c18_i32 : i32 to vector<16x1xi32>
    %280 = arith.cmpi eq, %1, %279 : vector<16x1xi32>
    %281 = vector.shape_cast %280 : vector<16x1xi1> to vector<16x1xi1>
    %282 = vector.broadcast %281 : vector<16x1xi1> to vector<16x13xi1>
    %283 = vector.shape_cast %278 : vector<1x13xf32> to vector<1x13xf32>
    %284 = vector.broadcast %283 : vector<1x13xf32> to vector<16x13xf32>
    %285 = arith.select %282, %284, %270 : vector<16x13xi1>, vector<16x13xf32>
    %c18_i32_22 = arith.constant 18 : i32
    %286 = vector.broadcast %c18_i32_22 : i32 to vector<16x1xi32>
    %287 = arith.cmpi eq, %4, %286 : vector<16x1xi32>
    %288 = vector.shape_cast %287 : vector<16x1xi1> to vector<16x1xi1>
    %289 = vector.broadcast %288 : vector<16x1xi1> to vector<16x13xi1>
    %290 = vector.shape_cast %278 : vector<1x13xf32> to vector<1x13xf32>
    %291 = vector.broadcast %290 : vector<1x13xf32> to vector<16x13xf32>
    %292 = arith.select %289, %291, %277 : vector<16x13xi1>, vector<16x13xf32>
    %293 = vector.extract_strided_slice %5 {offsets = [19, 0], sizes = [1, 13], strides = [1, 1]} : vector<20x13xf32> to vector<1x13xf32>
    %c19_i32 = arith.constant 19 : i32
    %294 = vector.broadcast %c19_i32 : i32 to vector<16x1xi32>
    %295 = arith.cmpi eq, %1, %294 : vector<16x1xi32>
    %296 = vector.shape_cast %295 : vector<16x1xi1> to vector<16x1xi1>
    %297 = vector.broadcast %296 : vector<16x1xi1> to vector<16x13xi1>
    %298 = vector.shape_cast %293 : vector<1x13xf32> to vector<1x13xf32>
    %299 = vector.broadcast %298 : vector<1x13xf32> to vector<16x13xf32>
    %300 = arith.select %297, %299, %285 : vector<16x13xi1>, vector<16x13xf32>
    %c19_i32_23 = arith.constant 19 : i32
    %301 = vector.broadcast %c19_i32_23 : i32 to vector<16x1xi32>
    %302 = arith.cmpi eq, %4, %301 : vector<16x1xi32>
    %303 = vector.shape_cast %302 : vector<16x1xi1> to vector<16x1xi1>
    %304 = vector.broadcast %303 : vector<16x1xi1> to vector<16x13xi1>
    %305 = vector.shape_cast %293 : vector<1x13xf32> to vector<1x13xf32>
    %306 = vector.broadcast %305 : vector<1x13xf32> to vector<16x13xf32>
    %307 = arith.select %304, %306, %292 : vector<16x13xi1>, vector<16x13xf32>
    %308 = vector.extract_strided_slice %300 {offsets = [0, 0], sizes = [16, 4], strides = [1, 1]} : vector<16x13xf32> to vector<16x4xf32>
    %309 = arith.negf %308 : vector<16x4xf32>
    %310 = math.exp %309 : vector<16x4xf32>
    %cst_24 = arith.constant 1.000000e+00 : f32
    %311 = vector.broadcast %cst_24 : f32 to vector<16x4xf32>
    %312 = arith.addf %311, %310 : vector<16x4xf32>
    %313 = arith.divf %311, %312 : vector<16x4xf32>
    %314 = vector.extract_strided_slice %300 {offsets = [0, 4], sizes = [16, 4], strides = [1, 1]} : vector<16x13xf32> to vector<16x4xf32>
    %315 = vector.extract_strided_slice %300 {offsets = [0, 8], sizes = [16, 4], strides = [1, 1]} : vector<16x13xf32> to vector<16x4xf32>
    %316 = arith.fptosi %315 : vector<16x4xf32> to vector<16x4xi32>
    %c0_25 = arith.constant 0 : index
    %c0_26 = arith.constant 0 : index
    %317 = vector.load %arg3[%c0_25, %c0_26] : memref<8x16xf32, #tpu.memory_space<vmem>>, vector<8x16xf32>
    %cst_27 = arith.constant 0.000000e+00 : f32
    %318 = vector.broadcast %cst_27 : f32 to vector<16x16xf32>
    %cst_28 = arith.constant 0.000000e+00 : f32
    %319 = vector.broadcast %cst_28 : f32 to vector<16x1xf32>
    %320 = vector.extract_strided_slice %313 {offsets = [0, 0], sizes = [16, 1], strides = [1, 1]} : vector<16x4xf32> to vector<16x1xf32>
    %321 = vector.extract_strided_slice %314 {offsets = [0, 0], sizes = [16, 1], strides = [1, 1]} : vector<16x4xf32> to vector<16x1xf32>
    %322 = arith.mulf %320, %321 : vector<16x1xf32>
    %323 = arith.addf %319, %322 : vector<16x1xf32>
    %324 = vector.extract_strided_slice %316 {offsets = [0, 0], sizes = [16, 1], strides = [1, 1]} : vector<16x4xi32> to vector<16x1xi32>
    %cst_29 = arith.constant 0.000000e+00 : f32
    %325 = vector.broadcast %cst_29 : f32 to vector<16x16xf32>
    %c0_i32_30 = arith.constant 0 : i32
    %326 = vector.broadcast %c0_i32_30 : i32 to vector<16x1xi32>
    %327 = arith.cmpi eq, %324, %326 : vector<16x1xi32>
    %328 = vector.extract_strided_slice %317 {offsets = [0, 0], sizes = [1, 16], strides = [1, 1]} : vector<8x16xf32> to vector<1x16xf32>
    %329 = vector.shape_cast %327 : vector<16x1xi1> to vector<16x1xi1>
    %330 = vector.broadcast %329 : vector<16x1xi1> to vector<16x16xi1>
    %331 = vector.shape_cast %328 : vector<1x16xf32> to vector<1x16xf32>
    %332 = vector.broadcast %331 : vector<1x16xf32> to vector<16x16xf32>
    %333 = arith.select %330, %332, %325 : vector<16x16xi1>, vector<16x16xf32>
    %c1_i32_31 = arith.constant 1 : i32
    %334 = vector.broadcast %c1_i32_31 : i32 to vector<16x1xi32>
    %335 = arith.cmpi eq, %324, %334 : vector<16x1xi32>
    %336 = vector.extract_strided_slice %317 {offsets = [1, 0], sizes = [1, 16], strides = [1, 1]} : vector<8x16xf32> to vector<1x16xf32>
    %337 = vector.shape_cast %335 : vector<16x1xi1> to vector<16x1xi1>
    %338 = vector.broadcast %337 : vector<16x1xi1> to vector<16x16xi1>
    %339 = vector.shape_cast %336 : vector<1x16xf32> to vector<1x16xf32>
    %340 = vector.broadcast %339 : vector<1x16xf32> to vector<16x16xf32>
    %341 = arith.select %338, %340, %333 : vector<16x16xi1>, vector<16x16xf32>
    %c2_i32_32 = arith.constant 2 : i32
    %342 = vector.broadcast %c2_i32_32 : i32 to vector<16x1xi32>
    %343 = arith.cmpi eq, %324, %342 : vector<16x1xi32>
    %344 = vector.extract_strided_slice %317 {offsets = [2, 0], sizes = [1, 16], strides = [1, 1]} : vector<8x16xf32> to vector<1x16xf32>
    %345 = vector.shape_cast %343 : vector<16x1xi1> to vector<16x1xi1>
    %346 = vector.broadcast %345 : vector<16x1xi1> to vector<16x16xi1>
    %347 = vector.shape_cast %344 : vector<1x16xf32> to vector<1x16xf32>
    %348 = vector.broadcast %347 : vector<1x16xf32> to vector<16x16xf32>
    %349 = arith.select %346, %348, %341 : vector<16x16xi1>, vector<16x16xf32>
    %c3_i32_33 = arith.constant 3 : i32
    %350 = vector.broadcast %c3_i32_33 : i32 to vector<16x1xi32>
    %351 = arith.cmpi eq, %324, %350 : vector<16x1xi32>
    %352 = vector.extract_strided_slice %317 {offsets = [3, 0], sizes = [1, 16], strides = [1, 1]} : vector<8x16xf32> to vector<1x16xf32>
    %353 = vector.shape_cast %351 : vector<16x1xi1> to vector<16x1xi1>
    %354 = vector.broadcast %353 : vector<16x1xi1> to vector<16x16xi1>
    %355 = vector.shape_cast %352 : vector<1x16xf32> to vector<1x16xf32>
    %356 = vector.broadcast %355 : vector<1x16xf32> to vector<16x16xf32>
    %357 = arith.select %354, %356, %349 : vector<16x16xi1>, vector<16x16xf32>
    %c4_i32_34 = arith.constant 4 : i32
    %358 = vector.broadcast %c4_i32_34 : i32 to vector<16x1xi32>
    %359 = arith.cmpi eq, %324, %358 : vector<16x1xi32>
    %360 = vector.extract_strided_slice %317 {offsets = [4, 0], sizes = [1, 16], strides = [1, 1]} : vector<8x16xf32> to vector<1x16xf32>
    %361 = vector.shape_cast %359 : vector<16x1xi1> to vector<16x1xi1>
    %362 = vector.broadcast %361 : vector<16x1xi1> to vector<16x16xi1>
    %363 = vector.shape_cast %360 : vector<1x16xf32> to vector<1x16xf32>
    %364 = vector.broadcast %363 : vector<1x16xf32> to vector<16x16xf32>
    %365 = arith.select %362, %364, %357 : vector<16x16xi1>, vector<16x16xf32>
    %c5_i32_35 = arith.constant 5 : i32
    %366 = vector.broadcast %c5_i32_35 : i32 to vector<16x1xi32>
    %367 = arith.cmpi eq, %324, %366 : vector<16x1xi32>
    %368 = vector.extract_strided_slice %317 {offsets = [5, 0], sizes = [1, 16], strides = [1, 1]} : vector<8x16xf32> to vector<1x16xf32>
    %369 = vector.shape_cast %367 : vector<16x1xi1> to vector<16x1xi1>
    %370 = vector.broadcast %369 : vector<16x1xi1> to vector<16x16xi1>
    %371 = vector.shape_cast %368 : vector<1x16xf32> to vector<1x16xf32>
    %372 = vector.broadcast %371 : vector<1x16xf32> to vector<16x16xf32>
    %373 = arith.select %370, %372, %365 : vector<16x16xi1>, vector<16x16xf32>
    %c6_i32_36 = arith.constant 6 : i32
    %374 = vector.broadcast %c6_i32_36 : i32 to vector<16x1xi32>
    %375 = arith.cmpi eq, %324, %374 : vector<16x1xi32>
    %376 = vector.extract_strided_slice %317 {offsets = [6, 0], sizes = [1, 16], strides = [1, 1]} : vector<8x16xf32> to vector<1x16xf32>
    %377 = vector.shape_cast %375 : vector<16x1xi1> to vector<16x1xi1>
    %378 = vector.broadcast %377 : vector<16x1xi1> to vector<16x16xi1>
    %379 = vector.shape_cast %376 : vector<1x16xf32> to vector<1x16xf32>
    %380 = vector.broadcast %379 : vector<1x16xf32> to vector<16x16xf32>
    %381 = arith.select %378, %380, %373 : vector<16x16xi1>, vector<16x16xf32>
    %c7_i32_37 = arith.constant 7 : i32
    %382 = vector.broadcast %c7_i32_37 : i32 to vector<16x1xi32>
    %383 = arith.cmpi eq, %324, %382 : vector<16x1xi32>
    %384 = vector.extract_strided_slice %317 {offsets = [7, 0], sizes = [1, 16], strides = [1, 1]} : vector<8x16xf32> to vector<1x16xf32>
    %385 = vector.shape_cast %383 : vector<16x1xi1> to vector<16x1xi1>
    %386 = vector.broadcast %385 : vector<16x1xi1> to vector<16x16xi1>
    %387 = vector.shape_cast %384 : vector<1x16xf32> to vector<1x16xf32>
    %388 = vector.broadcast %387 : vector<1x16xf32> to vector<16x16xf32>
    %389 = arith.select %386, %388, %381 : vector<16x16xi1>, vector<16x16xf32>
    %390 = vector.broadcast %322 : vector<16x1xf32> to vector<16x16xf32>
    %391 = arith.mulf %390, %389 : vector<16x16xf32>
    %392 = arith.addf %318, %391 : vector<16x16xf32>
    %393 = vector.extract_strided_slice %313 {offsets = [0, 1], sizes = [16, 1], strides = [1, 1]} : vector<16x4xf32> to vector<16x1xf32>
    %394 = vector.extract_strided_slice %314 {offsets = [0, 1], sizes = [16, 1], strides = [1, 1]} : vector<16x4xf32> to vector<16x1xf32>
    %395 = arith.mulf %393, %394 : vector<16x1xf32>
    %396 = arith.addf %323, %395 : vector<16x1xf32>
    %397 = vector.extract_strided_slice %316 {offsets = [0, 1], sizes = [16, 1], strides = [1, 1]} : vector<16x4xi32> to vector<16x1xi32>
    %cst_38 = arith.constant 0.000000e+00 : f32
    %398 = vector.broadcast %cst_38 : f32 to vector<16x16xf32>
    %c0_i32_39 = arith.constant 0 : i32
    %399 = vector.broadcast %c0_i32_39 : i32 to vector<16x1xi32>
    %400 = arith.cmpi eq, %397, %399 : vector<16x1xi32>
    %401 = vector.extract_strided_slice %317 {offsets = [0, 0], sizes = [1, 16], strides = [1, 1]} : vector<8x16xf32> to vector<1x16xf32>
    %402 = vector.shape_cast %400 : vector<16x1xi1> to vector<16x1xi1>
    %403 = vector.broadcast %402 : vector<16x1xi1> to vector<16x16xi1>
    %404 = vector.shape_cast %401 : vector<1x16xf32> to vector<1x16xf32>
    %405 = vector.broadcast %404 : vector<1x16xf32> to vector<16x16xf32>
    %406 = arith.select %403, %405, %398 : vector<16x16xi1>, vector<16x16xf32>
    %c1_i32_40 = arith.constant 1 : i32
    %407 = vector.broadcast %c1_i32_40 : i32 to vector<16x1xi32>
    %408 = arith.cmpi eq, %397, %407 : vector<16x1xi32>
    %409 = vector.extract_strided_slice %317 {offsets = [1, 0], sizes = [1, 16], strides = [1, 1]} : vector<8x16xf32> to vector<1x16xf32>
    %410 = vector.shape_cast %408 : vector<16x1xi1> to vector<16x1xi1>
    %411 = vector.broadcast %410 : vector<16x1xi1> to vector<16x16xi1>
    %412 = vector.shape_cast %409 : vector<1x16xf32> to vector<1x16xf32>
    %413 = vector.broadcast %412 : vector<1x16xf32> to vector<16x16xf32>
    %414 = arith.select %411, %413, %406 : vector<16x16xi1>, vector<16x16xf32>
    %c2_i32_41 = arith.constant 2 : i32
    %415 = vector.broadcast %c2_i32_41 : i32 to vector<16x1xi32>
    %416 = arith.cmpi eq, %397, %415 : vector<16x1xi32>
    %417 = vector.extract_strided_slice %317 {offsets = [2, 0], sizes = [1, 16], strides = [1, 1]} : vector<8x16xf32> to vector<1x16xf32>
    %418 = vector.shape_cast %416 : vector<16x1xi1> to vector<16x1xi1>
    %419 = vector.broadcast %418 : vector<16x1xi1> to vector<16x16xi1>
    %420 = vector.shape_cast %417 : vector<1x16xf32> to vector<1x16xf32>
    %421 = vector.broadcast %420 : vector<1x16xf32> to vector<16x16xf32>
    %422 = arith.select %419, %421, %414 : vector<16x16xi1>, vector<16x16xf32>
    %c3_i32_42 = arith.constant 3 : i32
    %423 = vector.broadcast %c3_i32_42 : i32 to vector<16x1xi32>
    %424 = arith.cmpi eq, %397, %423 : vector<16x1xi32>
    %425 = vector.extract_strided_slice %317 {offsets = [3, 0], sizes = [1, 16], strides = [1, 1]} : vector<8x16xf32> to vector<1x16xf32>
    %426 = vector.shape_cast %424 : vector<16x1xi1> to vector<16x1xi1>
    %427 = vector.broadcast %426 : vector<16x1xi1> to vector<16x16xi1>
    %428 = vector.shape_cast %425 : vector<1x16xf32> to vector<1x16xf32>
    %429 = vector.broadcast %428 : vector<1x16xf32> to vector<16x16xf32>
    %430 = arith.select %427, %429, %422 : vector<16x16xi1>, vector<16x16xf32>
    %c4_i32_43 = arith.constant 4 : i32
    %431 = vector.broadcast %c4_i32_43 : i32 to vector<16x1xi32>
    %432 = arith.cmpi eq, %397, %431 : vector<16x1xi32>
    %433 = vector.extract_strided_slice %317 {offsets = [4, 0], sizes = [1, 16], strides = [1, 1]} : vector<8x16xf32> to vector<1x16xf32>
    %434 = vector.shape_cast %432 : vector<16x1xi1> to vector<16x1xi1>
    %435 = vector.broadcast %434 : vector<16x1xi1> to vector<16x16xi1>
    %436 = vector.shape_cast %433 : vector<1x16xf32> to vector<1x16xf32>
    %437 = vector.broadcast %436 : vector<1x16xf32> to vector<16x16xf32>
    %438 = arith.select %435, %437, %430 : vector<16x16xi1>, vector<16x16xf32>
    %c5_i32_44 = arith.constant 5 : i32
    %439 = vector.broadcast %c5_i32_44 : i32 to vector<16x1xi32>
    %440 = arith.cmpi eq, %397, %439 : vector<16x1xi32>
    %441 = vector.extract_strided_slice %317 {offsets = [5, 0], sizes = [1, 16], strides = [1, 1]} : vector<8x16xf32> to vector<1x16xf32>
    %442 = vector.shape_cast %440 : vector<16x1xi1> to vector<16x1xi1>
    %443 = vector.broadcast %442 : vector<16x1xi1> to vector<16x16xi1>
    %444 = vector.shape_cast %441 : vector<1x16xf32> to vector<1x16xf32>
    %445 = vector.broadcast %444 : vector<1x16xf32> to vector<16x16xf32>
    %446 = arith.select %443, %445, %438 : vector<16x16xi1>, vector<16x16xf32>
    %c6_i32_45 = arith.constant 6 : i32
    %447 = vector.broadcast %c6_i32_45 : i32 to vector<16x1xi32>
    %448 = arith.cmpi eq, %397, %447 : vector<16x1xi32>
    %449 = vector.extract_strided_slice %317 {offsets = [6, 0], sizes = [1, 16], strides = [1, 1]} : vector<8x16xf32> to vector<1x16xf32>
    %450 = vector.shape_cast %448 : vector<16x1xi1> to vector<16x1xi1>
    %451 = vector.broadcast %450 : vector<16x1xi1> to vector<16x16xi1>
    %452 = vector.shape_cast %449 : vector<1x16xf32> to vector<1x16xf32>
    %453 = vector.broadcast %452 : vector<1x16xf32> to vector<16x16xf32>
    %454 = arith.select %451, %453, %446 : vector<16x16xi1>, vector<16x16xf32>
    %c7_i32_46 = arith.constant 7 : i32
    %455 = vector.broadcast %c7_i32_46 : i32 to vector<16x1xi32>
    %456 = arith.cmpi eq, %397, %455 : vector<16x1xi32>
    %457 = vector.extract_strided_slice %317 {offsets = [7, 0], sizes = [1, 16], strides = [1, 1]} : vector<8x16xf32> to vector<1x16xf32>
    %458 = vector.shape_cast %456 : vector<16x1xi1> to vector<16x1xi1>
    %459 = vector.broadcast %458 : vector<16x1xi1> to vector<16x16xi1>
    %460 = vector.shape_cast %457 : vector<1x16xf32> to vector<1x16xf32>
    %461 = vector.broadcast %460 : vector<1x16xf32> to vector<16x16xf32>
    %462 = arith.select %459, %461, %454 : vector<16x16xi1>, vector<16x16xf32>
    %463 = vector.broadcast %395 : vector<16x1xf32> to vector<16x16xf32>
    %464 = arith.mulf %463, %462 : vector<16x16xf32>
    %465 = arith.addf %392, %464 : vector<16x16xf32>
    %466 = vector.extract_strided_slice %313 {offsets = [0, 2], sizes = [16, 1], strides = [1, 1]} : vector<16x4xf32> to vector<16x1xf32>
    %467 = vector.extract_strided_slice %314 {offsets = [0, 2], sizes = [16, 1], strides = [1, 1]} : vector<16x4xf32> to vector<16x1xf32>
    %468 = arith.mulf %466, %467 : vector<16x1xf32>
    %469 = arith.addf %396, %468 : vector<16x1xf32>
    %470 = vector.extract_strided_slice %316 {offsets = [0, 2], sizes = [16, 1], strides = [1, 1]} : vector<16x4xi32> to vector<16x1xi32>
    %cst_47 = arith.constant 0.000000e+00 : f32
    %471 = vector.broadcast %cst_47 : f32 to vector<16x16xf32>
    %c0_i32_48 = arith.constant 0 : i32
    %472 = vector.broadcast %c0_i32_48 : i32 to vector<16x1xi32>
    %473 = arith.cmpi eq, %470, %472 : vector<16x1xi32>
    %474 = vector.extract_strided_slice %317 {offsets = [0, 0], sizes = [1, 16], strides = [1, 1]} : vector<8x16xf32> to vector<1x16xf32>
    %475 = vector.shape_cast %473 : vector<16x1xi1> to vector<16x1xi1>
    %476 = vector.broadcast %475 : vector<16x1xi1> to vector<16x16xi1>
    %477 = vector.shape_cast %474 : vector<1x16xf32> to vector<1x16xf32>
    %478 = vector.broadcast %477 : vector<1x16xf32> to vector<16x16xf32>
    %479 = arith.select %476, %478, %471 : vector<16x16xi1>, vector<16x16xf32>
    %c1_i32_49 = arith.constant 1 : i32
    %480 = vector.broadcast %c1_i32_49 : i32 to vector<16x1xi32>
    %481 = arith.cmpi eq, %470, %480 : vector<16x1xi32>
    %482 = vector.extract_strided_slice %317 {offsets = [1, 0], sizes = [1, 16], strides = [1, 1]} : vector<8x16xf32> to vector<1x16xf32>
    %483 = vector.shape_cast %481 : vector<16x1xi1> to vector<16x1xi1>
    %484 = vector.broadcast %483 : vector<16x1xi1> to vector<16x16xi1>
    %485 = vector.shape_cast %482 : vector<1x16xf32> to vector<1x16xf32>
    %486 = vector.broadcast %485 : vector<1x16xf32> to vector<16x16xf32>
    %487 = arith.select %484, %486, %479 : vector<16x16xi1>, vector<16x16xf32>
    %c2_i32_50 = arith.constant 2 : i32
    %488 = vector.broadcast %c2_i32_50 : i32 to vector<16x1xi32>
    %489 = arith.cmpi eq, %470, %488 : vector<16x1xi32>
    %490 = vector.extract_strided_slice %317 {offsets = [2, 0], sizes = [1, 16], strides = [1, 1]} : vector<8x16xf32> to vector<1x16xf32>
    %491 = vector.shape_cast %489 : vector<16x1xi1> to vector<16x1xi1>
    %492 = vector.broadcast %491 : vector<16x1xi1> to vector<16x16xi1>
    %493 = vector.shape_cast %490 : vector<1x16xf32> to vector<1x16xf32>
    %494 = vector.broadcast %493 : vector<1x16xf32> to vector<16x16xf32>
    %495 = arith.select %492, %494, %487 : vector<16x16xi1>, vector<16x16xf32>
    %c3_i32_51 = arith.constant 3 : i32
    %496 = vector.broadcast %c3_i32_51 : i32 to vector<16x1xi32>
    %497 = arith.cmpi eq, %470, %496 : vector<16x1xi32>
    %498 = vector.extract_strided_slice %317 {offsets = [3, 0], sizes = [1, 16], strides = [1, 1]} : vector<8x16xf32> to vector<1x16xf32>
    %499 = vector.shape_cast %497 : vector<16x1xi1> to vector<16x1xi1>
    %500 = vector.broadcast %499 : vector<16x1xi1> to vector<16x16xi1>
    %501 = vector.shape_cast %498 : vector<1x16xf32> to vector<1x16xf32>
    %502 = vector.broadcast %501 : vector<1x16xf32> to vector<16x16xf32>
    %503 = arith.select %500, %502, %495 : vector<16x16xi1>, vector<16x16xf32>
    %c4_i32_52 = arith.constant 4 : i32
    %504 = vector.broadcast %c4_i32_52 : i32 to vector<16x1xi32>
    %505 = arith.cmpi eq, %470, %504 : vector<16x1xi32>
    %506 = vector.extract_strided_slice %317 {offsets = [4, 0], sizes = [1, 16], strides = [1, 1]} : vector<8x16xf32> to vector<1x16xf32>
    %507 = vector.shape_cast %505 : vector<16x1xi1> to vector<16x1xi1>
    %508 = vector.broadcast %507 : vector<16x1xi1> to vector<16x16xi1>
    %509 = vector.shape_cast %506 : vector<1x16xf32> to vector<1x16xf32>
    %510 = vector.broadcast %509 : vector<1x16xf32> to vector<16x16xf32>
    %511 = arith.select %508, %510, %503 : vector<16x16xi1>, vector<16x16xf32>
    %c5_i32_53 = arith.constant 5 : i32
    %512 = vector.broadcast %c5_i32_53 : i32 to vector<16x1xi32>
    %513 = arith.cmpi eq, %470, %512 : vector<16x1xi32>
    %514 = vector.extract_strided_slice %317 {offsets = [5, 0], sizes = [1, 16], strides = [1, 1]} : vector<8x16xf32> to vector<1x16xf32>
    %515 = vector.shape_cast %513 : vector<16x1xi1> to vector<16x1xi1>
    %516 = vector.broadcast %515 : vector<16x1xi1> to vector<16x16xi1>
    %517 = vector.shape_cast %514 : vector<1x16xf32> to vector<1x16xf32>
    %518 = vector.broadcast %517 : vector<1x16xf32> to vector<16x16xf32>
    %519 = arith.select %516, %518, %511 : vector<16x16xi1>, vector<16x16xf32>
    %c6_i32_54 = arith.constant 6 : i32
    %520 = vector.broadcast %c6_i32_54 : i32 to vector<16x1xi32>
    %521 = arith.cmpi eq, %470, %520 : vector<16x1xi32>
    %522 = vector.extract_strided_slice %317 {offsets = [6, 0], sizes = [1, 16], strides = [1, 1]} : vector<8x16xf32> to vector<1x16xf32>
    %523 = vector.shape_cast %521 : vector<16x1xi1> to vector<16x1xi1>
    %524 = vector.broadcast %523 : vector<16x1xi1> to vector<16x16xi1>
    %525 = vector.shape_cast %522 : vector<1x16xf32> to vector<1x16xf32>
    %526 = vector.broadcast %525 : vector<1x16xf32> to vector<16x16xf32>
    %527 = arith.select %524, %526, %519 : vector<16x16xi1>, vector<16x16xf32>
    %c7_i32_55 = arith.constant 7 : i32
    %528 = vector.broadcast %c7_i32_55 : i32 to vector<16x1xi32>
    %529 = arith.cmpi eq, %470, %528 : vector<16x1xi32>
    %530 = vector.extract_strided_slice %317 {offsets = [7, 0], sizes = [1, 16], strides = [1, 1]} : vector<8x16xf32> to vector<1x16xf32>
    %531 = vector.shape_cast %529 : vector<16x1xi1> to vector<16x1xi1>
    %532 = vector.broadcast %531 : vector<16x1xi1> to vector<16x16xi1>
    %533 = vector.shape_cast %530 : vector<1x16xf32> to vector<1x16xf32>
    %534 = vector.broadcast %533 : vector<1x16xf32> to vector<16x16xf32>
    %535 = arith.select %532, %534, %527 : vector<16x16xi1>, vector<16x16xf32>
    %536 = vector.broadcast %468 : vector<16x1xf32> to vector<16x16xf32>
    %537 = arith.mulf %536, %535 : vector<16x16xf32>
    %538 = arith.addf %465, %537 : vector<16x16xf32>
    %539 = vector.extract_strided_slice %313 {offsets = [0, 3], sizes = [16, 1], strides = [1, 1]} : vector<16x4xf32> to vector<16x1xf32>
    %540 = vector.extract_strided_slice %314 {offsets = [0, 3], sizes = [16, 1], strides = [1, 1]} : vector<16x4xf32> to vector<16x1xf32>
    %541 = arith.mulf %539, %540 : vector<16x1xf32>
    %542 = arith.addf %469, %541 : vector<16x1xf32>
    %543 = vector.extract_strided_slice %316 {offsets = [0, 3], sizes = [16, 1], strides = [1, 1]} : vector<16x4xi32> to vector<16x1xi32>
    %cst_56 = arith.constant 0.000000e+00 : f32
    %544 = vector.broadcast %cst_56 : f32 to vector<16x16xf32>
    %c0_i32_57 = arith.constant 0 : i32
    %545 = vector.broadcast %c0_i32_57 : i32 to vector<16x1xi32>
    %546 = arith.cmpi eq, %543, %545 : vector<16x1xi32>
    %547 = vector.extract_strided_slice %317 {offsets = [0, 0], sizes = [1, 16], strides = [1, 1]} : vector<8x16xf32> to vector<1x16xf32>
    %548 = vector.shape_cast %546 : vector<16x1xi1> to vector<16x1xi1>
    %549 = vector.broadcast %548 : vector<16x1xi1> to vector<16x16xi1>
    %550 = vector.shape_cast %547 : vector<1x16xf32> to vector<1x16xf32>
    %551 = vector.broadcast %550 : vector<1x16xf32> to vector<16x16xf32>
    %552 = arith.select %549, %551, %544 : vector<16x16xi1>, vector<16x16xf32>
    %c1_i32_58 = arith.constant 1 : i32
    %553 = vector.broadcast %c1_i32_58 : i32 to vector<16x1xi32>
    %554 = arith.cmpi eq, %543, %553 : vector<16x1xi32>
    %555 = vector.extract_strided_slice %317 {offsets = [1, 0], sizes = [1, 16], strides = [1, 1]} : vector<8x16xf32> to vector<1x16xf32>
    %556 = vector.shape_cast %554 : vector<16x1xi1> to vector<16x1xi1>
    %557 = vector.broadcast %556 : vector<16x1xi1> to vector<16x16xi1>
    %558 = vector.shape_cast %555 : vector<1x16xf32> to vector<1x16xf32>
    %559 = vector.broadcast %558 : vector<1x16xf32> to vector<16x16xf32>
    %560 = arith.select %557, %559, %552 : vector<16x16xi1>, vector<16x16xf32>
    %c2_i32_59 = arith.constant 2 : i32
    %561 = vector.broadcast %c2_i32_59 : i32 to vector<16x1xi32>
    %562 = arith.cmpi eq, %543, %561 : vector<16x1xi32>
    %563 = vector.extract_strided_slice %317 {offsets = [2, 0], sizes = [1, 16], strides = [1, 1]} : vector<8x16xf32> to vector<1x16xf32>
    %564 = vector.shape_cast %562 : vector<16x1xi1> to vector<16x1xi1>
    %565 = vector.broadcast %564 : vector<16x1xi1> to vector<16x16xi1>
    %566 = vector.shape_cast %563 : vector<1x16xf32> to vector<1x16xf32>
    %567 = vector.broadcast %566 : vector<1x16xf32> to vector<16x16xf32>
    %568 = arith.select %565, %567, %560 : vector<16x16xi1>, vector<16x16xf32>
    %c3_i32_60 = arith.constant 3 : i32
    %569 = vector.broadcast %c3_i32_60 : i32 to vector<16x1xi32>
    %570 = arith.cmpi eq, %543, %569 : vector<16x1xi32>
    %571 = vector.extract_strided_slice %317 {offsets = [3, 0], sizes = [1, 16], strides = [1, 1]} : vector<8x16xf32> to vector<1x16xf32>
    %572 = vector.shape_cast %570 : vector<16x1xi1> to vector<16x1xi1>
    %573 = vector.broadcast %572 : vector<16x1xi1> to vector<16x16xi1>
    %574 = vector.shape_cast %571 : vector<1x16xf32> to vector<1x16xf32>
    %575 = vector.broadcast %574 : vector<1x16xf32> to vector<16x16xf32>
    %576 = arith.select %573, %575, %568 : vector<16x16xi1>, vector<16x16xf32>
    %c4_i32_61 = arith.constant 4 : i32
    %577 = vector.broadcast %c4_i32_61 : i32 to vector<16x1xi32>
    %578 = arith.cmpi eq, %543, %577 : vector<16x1xi32>
    %579 = vector.extract_strided_slice %317 {offsets = [4, 0], sizes = [1, 16], strides = [1, 1]} : vector<8x16xf32> to vector<1x16xf32>
    %580 = vector.shape_cast %578 : vector<16x1xi1> to vector<16x1xi1>
    %581 = vector.broadcast %580 : vector<16x1xi1> to vector<16x16xi1>
    %582 = vector.shape_cast %579 : vector<1x16xf32> to vector<1x16xf32>
    %583 = vector.broadcast %582 : vector<1x16xf32> to vector<16x16xf32>
    %584 = arith.select %581, %583, %576 : vector<16x16xi1>, vector<16x16xf32>
    %c5_i32_62 = arith.constant 5 : i32
    %585 = vector.broadcast %c5_i32_62 : i32 to vector<16x1xi32>
    %586 = arith.cmpi eq, %543, %585 : vector<16x1xi32>
    %587 = vector.extract_strided_slice %317 {offsets = [5, 0], sizes = [1, 16], strides = [1, 1]} : vector<8x16xf32> to vector<1x16xf32>
    %588 = vector.shape_cast %586 : vector<16x1xi1> to vector<16x1xi1>
    %589 = vector.broadcast %588 : vector<16x1xi1> to vector<16x16xi1>
    %590 = vector.shape_cast %587 : vector<1x16xf32> to vector<1x16xf32>
    %591 = vector.broadcast %590 : vector<1x16xf32> to vector<16x16xf32>
    %592 = arith.select %589, %591, %584 : vector<16x16xi1>, vector<16x16xf32>
    %c6_i32_63 = arith.constant 6 : i32
    %593 = vector.broadcast %c6_i32_63 : i32 to vector<16x1xi32>
    %594 = arith.cmpi eq, %543, %593 : vector<16x1xi32>
    %595 = vector.extract_strided_slice %317 {offsets = [6, 0], sizes = [1, 16], strides = [1, 1]} : vector<8x16xf32> to vector<1x16xf32>
    %596 = vector.shape_cast %594 : vector<16x1xi1> to vector<16x1xi1>
    %597 = vector.broadcast %596 : vector<16x1xi1> to vector<16x16xi1>
    %598 = vector.shape_cast %595 : vector<1x16xf32> to vector<1x16xf32>
    %599 = vector.broadcast %598 : vector<1x16xf32> to vector<16x16xf32>
    %600 = arith.select %597, %599, %592 : vector<16x16xi1>, vector<16x16xf32>
    %c7_i32_64 = arith.constant 7 : i32
    %601 = vector.broadcast %c7_i32_64 : i32 to vector<16x1xi32>
    %602 = arith.cmpi eq, %543, %601 : vector<16x1xi32>
    %603 = vector.extract_strided_slice %317 {offsets = [7, 0], sizes = [1, 16], strides = [1, 1]} : vector<8x16xf32> to vector<1x16xf32>
    %604 = vector.shape_cast %602 : vector<16x1xi1> to vector<16x1xi1>
    %605 = vector.broadcast %604 : vector<16x1xi1> to vector<16x16xi1>
    %606 = vector.shape_cast %603 : vector<1x16xf32> to vector<1x16xf32>
    %607 = vector.broadcast %606 : vector<1x16xf32> to vector<16x16xf32>
    %608 = arith.select %605, %607, %600 : vector<16x16xi1>, vector<16x16xf32>
    %609 = vector.broadcast %541 : vector<16x1xf32> to vector<16x16xf32>
    %610 = arith.mulf %609, %608 : vector<16x16xf32>
    %611 = arith.addf %538, %610 : vector<16x16xf32>
    %cst_65 = arith.constant 9.99999997E-7 : f32
    %612 = vector.broadcast %cst_65 : f32 to vector<16x1xf32>
    %613 = arith.addf %542, %612 : vector<16x1xf32>
    %614 = vector.broadcast %613 : vector<16x1xf32> to vector<16x16xf32>
    %615 = arith.divf %611, %614 : vector<16x16xf32>
    %c0_66 = arith.constant 0 : index
    %c0_67 = arith.constant 0 : index
    %616 = vector.load %arg4[%c0_66, %c0_67] : memref<42x24xf32, #tpu.memory_space<vmem>>, vector<32x24xf32>
    %c32 = arith.constant 32 : index
    %c0_68 = arith.constant 0 : index
    %617 = vector.load %arg4[%c32, %c0_68] : memref<42x24xf32, #tpu.memory_space<vmem>>, vector<8x24xf32>
    %c40 = arith.constant 40 : index
    %c0_69 = arith.constant 0 : index
    %618 = vector.load %arg4[%c40, %c0_69] : memref<42x24xf32, #tpu.memory_space<vmem>>, vector<1x24xf32>
    %c41 = arith.constant 41 : index
    %c0_70 = arith.constant 0 : index
    %619 = vector.load %arg4[%c41, %c0_70] : memref<42x24xf32, #tpu.memory_space<vmem>>, vector<1x24xf32>
    %620 = vector.shape_cast %618 : vector<1x24xf32> to vector<1x24xf32>
    %621 = vector.broadcast %620 : vector<1x24xf32> to vector<16x24xf32>
    %622 = vector.extract_strided_slice %615 {offsets = [0, 0], sizes = [16, 1], strides = [1, 1]} : vector<16x16xf32> to vector<16x1xf32>
    %623 = vector.extract_strided_slice %616 {offsets = [0, 0], sizes = [1, 24], strides = [1, 1]} : vector<32x24xf32> to vector<1x24xf32>
    %624 = vector.broadcast %622 : vector<16x1xf32> to vector<16x24xf32>
    %625 = vector.broadcast %623 : vector<1x24xf32> to vector<16x24xf32>
    %626 = arith.mulf %624, %625 : vector<16x24xf32>
    %627 = arith.addf %621, %626 : vector<16x24xf32>
    %628 = vector.extract_strided_slice %615 {offsets = [0, 1], sizes = [16, 1], strides = [1, 1]} : vector<16x16xf32> to vector<16x1xf32>
    %629 = vector.extract_strided_slice %616 {offsets = [1, 0], sizes = [1, 24], strides = [1, 1]} : vector<32x24xf32> to vector<1x24xf32>
    %630 = vector.broadcast %628 : vector<16x1xf32> to vector<16x24xf32>
    %631 = vector.broadcast %629 : vector<1x24xf32> to vector<16x24xf32>
    %632 = arith.mulf %630, %631 : vector<16x24xf32>
    %633 = arith.addf %627, %632 : vector<16x24xf32>
    %634 = vector.extract_strided_slice %615 {offsets = [0, 2], sizes = [16, 1], strides = [1, 1]} : vector<16x16xf32> to vector<16x1xf32>
    %635 = vector.extract_strided_slice %616 {offsets = [2, 0], sizes = [1, 24], strides = [1, 1]} : vector<32x24xf32> to vector<1x24xf32>
    %636 = vector.broadcast %634 : vector<16x1xf32> to vector<16x24xf32>
    %637 = vector.broadcast %635 : vector<1x24xf32> to vector<16x24xf32>
    %638 = arith.mulf %636, %637 : vector<16x24xf32>
    %639 = arith.addf %633, %638 : vector<16x24xf32>
    %640 = vector.extract_strided_slice %615 {offsets = [0, 3], sizes = [16, 1], strides = [1, 1]} : vector<16x16xf32> to vector<16x1xf32>
    %641 = vector.extract_strided_slice %616 {offsets = [3, 0], sizes = [1, 24], strides = [1, 1]} : vector<32x24xf32> to vector<1x24xf32>
    %642 = vector.broadcast %640 : vector<16x1xf32> to vector<16x24xf32>
    %643 = vector.broadcast %641 : vector<1x24xf32> to vector<16x24xf32>
    %644 = arith.mulf %642, %643 : vector<16x24xf32>
    %645 = arith.addf %639, %644 : vector<16x24xf32>
    %646 = vector.extract_strided_slice %615 {offsets = [0, 4], sizes = [16, 1], strides = [1, 1]} : vector<16x16xf32> to vector<16x1xf32>
    %647 = vector.extract_strided_slice %616 {offsets = [4, 0], sizes = [1, 24], strides = [1, 1]} : vector<32x24xf32> to vector<1x24xf32>
    %648 = vector.broadcast %646 : vector<16x1xf32> to vector<16x24xf32>
    %649 = vector.broadcast %647 : vector<1x24xf32> to vector<16x24xf32>
    %650 = arith.mulf %648, %649 : vector<16x24xf32>
    %651 = arith.addf %645, %650 : vector<16x24xf32>
    %652 = vector.extract_strided_slice %615 {offsets = [0, 5], sizes = [16, 1], strides = [1, 1]} : vector<16x16xf32> to vector<16x1xf32>
    %653 = vector.extract_strided_slice %616 {offsets = [5, 0], sizes = [1, 24], strides = [1, 1]} : vector<32x24xf32> to vector<1x24xf32>
    %654 = vector.broadcast %652 : vector<16x1xf32> to vector<16x24xf32>
    %655 = vector.broadcast %653 : vector<1x24xf32> to vector<16x24xf32>
    %656 = arith.mulf %654, %655 : vector<16x24xf32>
    %657 = arith.addf %651, %656 : vector<16x24xf32>
    %658 = vector.extract_strided_slice %615 {offsets = [0, 6], sizes = [16, 1], strides = [1, 1]} : vector<16x16xf32> to vector<16x1xf32>
    %659 = vector.extract_strided_slice %616 {offsets = [6, 0], sizes = [1, 24], strides = [1, 1]} : vector<32x24xf32> to vector<1x24xf32>
    %660 = vector.broadcast %658 : vector<16x1xf32> to vector<16x24xf32>
    %661 = vector.broadcast %659 : vector<1x24xf32> to vector<16x24xf32>
    %662 = arith.mulf %660, %661 : vector<16x24xf32>
    %663 = arith.addf %657, %662 : vector<16x24xf32>
    %664 = vector.extract_strided_slice %615 {offsets = [0, 7], sizes = [16, 1], strides = [1, 1]} : vector<16x16xf32> to vector<16x1xf32>
    %665 = vector.extract_strided_slice %616 {offsets = [7, 0], sizes = [1, 24], strides = [1, 1]} : vector<32x24xf32> to vector<1x24xf32>
    %666 = vector.broadcast %664 : vector<16x1xf32> to vector<16x24xf32>
    %667 = vector.broadcast %665 : vector<1x24xf32> to vector<16x24xf32>
    %668 = arith.mulf %666, %667 : vector<16x24xf32>
    %669 = arith.addf %663, %668 : vector<16x24xf32>
    %670 = vector.extract_strided_slice %615 {offsets = [0, 8], sizes = [16, 1], strides = [1, 1]} : vector<16x16xf32> to vector<16x1xf32>
    %671 = vector.extract_strided_slice %616 {offsets = [8, 0], sizes = [1, 24], strides = [1, 1]} : vector<32x24xf32> to vector<1x24xf32>
    %672 = vector.broadcast %670 : vector<16x1xf32> to vector<16x24xf32>
    %673 = vector.broadcast %671 : vector<1x24xf32> to vector<16x24xf32>
    %674 = arith.mulf %672, %673 : vector<16x24xf32>
    %675 = arith.addf %669, %674 : vector<16x24xf32>
    %676 = vector.extract_strided_slice %615 {offsets = [0, 9], sizes = [16, 1], strides = [1, 1]} : vector<16x16xf32> to vector<16x1xf32>
    %677 = vector.extract_strided_slice %616 {offsets = [9, 0], sizes = [1, 24], strides = [1, 1]} : vector<32x24xf32> to vector<1x24xf32>
    %678 = vector.broadcast %676 : vector<16x1xf32> to vector<16x24xf32>
    %679 = vector.broadcast %677 : vector<1x24xf32> to vector<16x24xf32>
    %680 = arith.mulf %678, %679 : vector<16x24xf32>
    %681 = arith.addf %675, %680 : vector<16x24xf32>
    %682 = vector.extract_strided_slice %615 {offsets = [0, 10], sizes = [16, 1], strides = [1, 1]} : vector<16x16xf32> to vector<16x1xf32>
    %683 = vector.extract_strided_slice %616 {offsets = [10, 0], sizes = [1, 24], strides = [1, 1]} : vector<32x24xf32> to vector<1x24xf32>
    %684 = vector.broadcast %682 : vector<16x1xf32> to vector<16x24xf32>
    %685 = vector.broadcast %683 : vector<1x24xf32> to vector<16x24xf32>
    %686 = arith.mulf %684, %685 : vector<16x24xf32>
    %687 = arith.addf %681, %686 : vector<16x24xf32>
    %688 = vector.extract_strided_slice %615 {offsets = [0, 11], sizes = [16, 1], strides = [1, 1]} : vector<16x16xf32> to vector<16x1xf32>
    %689 = vector.extract_strided_slice %616 {offsets = [11, 0], sizes = [1, 24], strides = [1, 1]} : vector<32x24xf32> to vector<1x24xf32>
    %690 = vector.broadcast %688 : vector<16x1xf32> to vector<16x24xf32>
    %691 = vector.broadcast %689 : vector<1x24xf32> to vector<16x24xf32>
    %692 = arith.mulf %690, %691 : vector<16x24xf32>
    %693 = arith.addf %687, %692 : vector<16x24xf32>
    %694 = vector.extract_strided_slice %615 {offsets = [0, 12], sizes = [16, 1], strides = [1, 1]} : vector<16x16xf32> to vector<16x1xf32>
    %695 = vector.extract_strided_slice %616 {offsets = [12, 0], sizes = [1, 24], strides = [1, 1]} : vector<32x24xf32> to vector<1x24xf32>
    %696 = vector.broadcast %694 : vector<16x1xf32> to vector<16x24xf32>
    %697 = vector.broadcast %695 : vector<1x24xf32> to vector<16x24xf32>
    %698 = arith.mulf %696, %697 : vector<16x24xf32>
    %699 = arith.addf %693, %698 : vector<16x24xf32>
    %700 = vector.extract_strided_slice %615 {offsets = [0, 13], sizes = [16, 1], strides = [1, 1]} : vector<16x16xf32> to vector<16x1xf32>
    %701 = vector.extract_strided_slice %616 {offsets = [13, 0], sizes = [1, 24], strides = [1, 1]} : vector<32x24xf32> to vector<1x24xf32>
    %702 = vector.broadcast %700 : vector<16x1xf32> to vector<16x24xf32>
    %703 = vector.broadcast %701 : vector<1x24xf32> to vector<16x24xf32>
    %704 = arith.mulf %702, %703 : vector<16x24xf32>
    %705 = arith.addf %699, %704 : vector<16x24xf32>
    %706 = vector.extract_strided_slice %615 {offsets = [0, 14], sizes = [16, 1], strides = [1, 1]} : vector<16x16xf32> to vector<16x1xf32>
    %707 = vector.extract_strided_slice %616 {offsets = [14, 0], sizes = [1, 24], strides = [1, 1]} : vector<32x24xf32> to vector<1x24xf32>
    %708 = vector.broadcast %706 : vector<16x1xf32> to vector<16x24xf32>
    %709 = vector.broadcast %707 : vector<1x24xf32> to vector<16x24xf32>
    %710 = arith.mulf %708, %709 : vector<16x24xf32>
    %711 = arith.addf %705, %710 : vector<16x24xf32>
    %712 = vector.extract_strided_slice %615 {offsets = [0, 15], sizes = [16, 1], strides = [1, 1]} : vector<16x16xf32> to vector<16x1xf32>
    %713 = vector.extract_strided_slice %616 {offsets = [15, 0], sizes = [1, 24], strides = [1, 1]} : vector<32x24xf32> to vector<1x24xf32>
    %714 = vector.broadcast %712 : vector<16x1xf32> to vector<16x24xf32>
    %715 = vector.broadcast %713 : vector<1x24xf32> to vector<16x24xf32>
    %716 = arith.mulf %714, %715 : vector<16x24xf32>
    %717 = arith.addf %711, %716 : vector<16x24xf32>
    %718 = vector.extract_strided_slice %616 {offsets = [16, 0], sizes = [1, 24], strides = [1, 1]} : vector<32x24xf32> to vector<1x24xf32>
    %719 = vector.broadcast %3 : vector<16x1xf32> to vector<16x24xf32>
    %720 = vector.broadcast %718 : vector<1x24xf32> to vector<16x24xf32>
    %721 = arith.mulf %719, %720 : vector<16x24xf32>
    %722 = arith.addf %717, %721 : vector<16x24xf32>
    %723 = vector.extract_strided_slice %616 {offsets = [17, 0], sizes = [1, 24], strides = [1, 1]} : vector<32x24xf32> to vector<1x24xf32>
    %724 = vector.broadcast %3 : vector<16x1xf32> to vector<16x24xf32>
    %725 = vector.broadcast %723 : vector<1x24xf32> to vector<16x24xf32>
    %726 = arith.mulf %724, %725 : vector<16x24xf32>
    %727 = arith.addf %722, %726 : vector<16x24xf32>
    %728 = vector.extract_strided_slice %616 {offsets = [18, 0], sizes = [1, 24], strides = [1, 1]} : vector<32x24xf32> to vector<1x24xf32>
    %729 = vector.broadcast %3 : vector<16x1xf32> to vector<16x24xf32>
    %730 = vector.broadcast %728 : vector<1x24xf32> to vector<16x24xf32>
    %731 = arith.mulf %729, %730 : vector<16x24xf32>
    %732 = arith.addf %727, %731 : vector<16x24xf32>
    %733 = vector.extract_strided_slice %616 {offsets = [19, 0], sizes = [1, 24], strides = [1, 1]} : vector<32x24xf32> to vector<1x24xf32>
    %734 = vector.broadcast %3 : vector<16x1xf32> to vector<16x24xf32>
    %735 = vector.broadcast %733 : vector<1x24xf32> to vector<16x24xf32>
    %736 = arith.mulf %734, %735 : vector<16x24xf32>
    %737 = arith.addf %732, %736 : vector<16x24xf32>
    %738 = vector.extract_strided_slice %616 {offsets = [20, 0], sizes = [1, 24], strides = [1, 1]} : vector<32x24xf32> to vector<1x24xf32>
    %739 = vector.broadcast %3 : vector<16x1xf32> to vector<16x24xf32>
    %740 = vector.broadcast %738 : vector<1x24xf32> to vector<16x24xf32>
    %741 = arith.mulf %739, %740 : vector<16x24xf32>
    %742 = arith.addf %737, %741 : vector<16x24xf32>
    %743 = vector.extract_strided_slice %616 {offsets = [21, 0], sizes = [1, 24], strides = [1, 1]} : vector<32x24xf32> to vector<1x24xf32>
    %744 = vector.broadcast %3 : vector<16x1xf32> to vector<16x24xf32>
    %745 = vector.broadcast %743 : vector<1x24xf32> to vector<16x24xf32>
    %746 = arith.mulf %744, %745 : vector<16x24xf32>
    %747 = arith.addf %742, %746 : vector<16x24xf32>
    %748 = vector.extract_strided_slice %616 {offsets = [22, 0], sizes = [1, 24], strides = [1, 1]} : vector<32x24xf32> to vector<1x24xf32>
    %749 = vector.broadcast %3 : vector<16x1xf32> to vector<16x24xf32>
    %750 = vector.broadcast %748 : vector<1x24xf32> to vector<16x24xf32>
    %751 = arith.mulf %749, %750 : vector<16x24xf32>
    %752 = arith.addf %747, %751 : vector<16x24xf32>
    %753 = vector.extract_strided_slice %616 {offsets = [23, 0], sizes = [1, 24], strides = [1, 1]} : vector<32x24xf32> to vector<1x24xf32>
    %754 = vector.broadcast %3 : vector<16x1xf32> to vector<16x24xf32>
    %755 = vector.broadcast %753 : vector<1x24xf32> to vector<16x24xf32>
    %756 = arith.mulf %754, %755 : vector<16x24xf32>
    %757 = arith.addf %752, %756 : vector<16x24xf32>
    %758 = vector.extract_strided_slice %616 {offsets = [24, 0], sizes = [1, 24], strides = [1, 1]} : vector<32x24xf32> to vector<1x24xf32>
    %759 = vector.broadcast %3 : vector<16x1xf32> to vector<16x24xf32>
    %760 = vector.broadcast %758 : vector<1x24xf32> to vector<16x24xf32>
    %761 = arith.mulf %759, %760 : vector<16x24xf32>
    %762 = arith.addf %757, %761 : vector<16x24xf32>
    %763 = vector.extract_strided_slice %616 {offsets = [25, 0], sizes = [1, 24], strides = [1, 1]} : vector<32x24xf32> to vector<1x24xf32>
    %764 = vector.broadcast %3 : vector<16x1xf32> to vector<16x24xf32>
    %765 = vector.broadcast %763 : vector<1x24xf32> to vector<16x24xf32>
    %766 = arith.mulf %764, %765 : vector<16x24xf32>
    %767 = arith.addf %762, %766 : vector<16x24xf32>
    %768 = vector.extract_strided_slice %616 {offsets = [26, 0], sizes = [1, 24], strides = [1, 1]} : vector<32x24xf32> to vector<1x24xf32>
    %769 = vector.broadcast %3 : vector<16x1xf32> to vector<16x24xf32>
    %770 = vector.broadcast %768 : vector<1x24xf32> to vector<16x24xf32>
    %771 = arith.mulf %769, %770 : vector<16x24xf32>
    %772 = arith.addf %767, %771 : vector<16x24xf32>
    %773 = vector.extract_strided_slice %616 {offsets = [27, 0], sizes = [1, 24], strides = [1, 1]} : vector<32x24xf32> to vector<1x24xf32>
    %774 = vector.broadcast %3 : vector<16x1xf32> to vector<16x24xf32>
    %775 = vector.broadcast %773 : vector<1x24xf32> to vector<16x24xf32>
    %776 = arith.mulf %774, %775 : vector<16x24xf32>
    %777 = arith.addf %772, %776 : vector<16x24xf32>
    %778 = vector.extract_strided_slice %616 {offsets = [28, 0], sizes = [1, 24], strides = [1, 1]} : vector<32x24xf32> to vector<1x24xf32>
    %779 = vector.broadcast %3 : vector<16x1xf32> to vector<16x24xf32>
    %780 = vector.broadcast %778 : vector<1x24xf32> to vector<16x24xf32>
    %781 = arith.mulf %779, %780 : vector<16x24xf32>
    %782 = arith.addf %777, %781 : vector<16x24xf32>
    %783 = vector.extract_strided_slice %616 {offsets = [29, 0], sizes = [1, 24], strides = [1, 1]} : vector<32x24xf32> to vector<1x24xf32>
    %784 = vector.broadcast %3 : vector<16x1xf32> to vector<16x24xf32>
    %785 = vector.broadcast %783 : vector<1x24xf32> to vector<16x24xf32>
    %786 = arith.mulf %784, %785 : vector<16x24xf32>
    %787 = arith.addf %782, %786 : vector<16x24xf32>
    %788 = vector.extract_strided_slice %616 {offsets = [30, 0], sizes = [1, 24], strides = [1, 1]} : vector<32x24xf32> to vector<1x24xf32>
    %789 = vector.broadcast %3 : vector<16x1xf32> to vector<16x24xf32>
    %790 = vector.broadcast %788 : vector<1x24xf32> to vector<16x24xf32>
    %791 = arith.mulf %789, %790 : vector<16x24xf32>
    %792 = arith.addf %787, %791 : vector<16x24xf32>
    %793 = vector.extract_strided_slice %616 {offsets = [31, 0], sizes = [1, 24], strides = [1, 1]} : vector<32x24xf32> to vector<1x24xf32>
    %794 = vector.broadcast %3 : vector<16x1xf32> to vector<16x24xf32>
    %795 = vector.broadcast %793 : vector<1x24xf32> to vector<16x24xf32>
    %796 = arith.mulf %794, %795 : vector<16x24xf32>
    %797 = arith.addf %792, %796 : vector<16x24xf32>
    %cst_71 = arith.constant 0.000000e+00 : f32
    %798 = vector.broadcast %cst_71 : f32 to vector<2x8xf32>
    %799 = vector.extract_strided_slice %797 {offsets = [0, 0], sizes = [2, 24], strides = [1, 1]} : vector<16x24xf32> to vector<2x24xf32>
    %800 = vector.shape_cast %619 : vector<1x24xf32> to vector<1x24xf32>
    %801 = vector.broadcast %800 : vector<1x24xf32> to vector<2x24xf32>
    %802 = vector.extract_strided_slice %798 {offsets = [0, 0], sizes = [2, 1], strides = [1, 1]} : vector<2x8xf32> to vector<2x1xf32>
    %803 = vector.extract_strided_slice %617 {offsets = [0, 0], sizes = [1, 24], strides = [1, 1]} : vector<8x24xf32> to vector<1x24xf32>
    %804 = vector.broadcast %802 : vector<2x1xf32> to vector<2x24xf32>
    %805 = vector.broadcast %803 : vector<1x24xf32> to vector<2x24xf32>
    %806 = arith.mulf %804, %805 : vector<2x24xf32>
    %807 = arith.addf %801, %806 : vector<2x24xf32>
    %808 = vector.extract_strided_slice %798 {offsets = [0, 1], sizes = [2, 1], strides = [1, 1]} : vector<2x8xf32> to vector<2x1xf32>
    %809 = vector.extract_strided_slice %617 {offsets = [1, 0], sizes = [1, 24], strides = [1, 1]} : vector<8x24xf32> to vector<1x24xf32>
    %810 = vector.broadcast %808 : vector<2x1xf32> to vector<2x24xf32>
    %811 = vector.broadcast %809 : vector<1x24xf32> to vector<2x24xf32>
    %812 = arith.mulf %810, %811 : vector<2x24xf32>
    %813 = arith.addf %807, %812 : vector<2x24xf32>
    %814 = vector.extract_strided_slice %798 {offsets = [0, 2], sizes = [2, 1], strides = [1, 1]} : vector<2x8xf32> to vector<2x1xf32>
    %815 = vector.extract_strided_slice %617 {offsets = [2, 0], sizes = [1, 24], strides = [1, 1]} : vector<8x24xf32> to vector<1x24xf32>
    %816 = vector.broadcast %814 : vector<2x1xf32> to vector<2x24xf32>
    %817 = vector.broadcast %815 : vector<1x24xf32> to vector<2x24xf32>
    %818 = arith.mulf %816, %817 : vector<2x24xf32>
    %819 = arith.addf %813, %818 : vector<2x24xf32>
    %820 = vector.extract_strided_slice %798 {offsets = [0, 3], sizes = [2, 1], strides = [1, 1]} : vector<2x8xf32> to vector<2x1xf32>
    %821 = vector.extract_strided_slice %617 {offsets = [3, 0], sizes = [1, 24], strides = [1, 1]} : vector<8x24xf32> to vector<1x24xf32>
    %822 = vector.broadcast %820 : vector<2x1xf32> to vector<2x24xf32>
    %823 = vector.broadcast %821 : vector<1x24xf32> to vector<2x24xf32>
    %824 = arith.mulf %822, %823 : vector<2x24xf32>
    %825 = arith.addf %819, %824 : vector<2x24xf32>
    %826 = vector.extract_strided_slice %798 {offsets = [0, 4], sizes = [2, 1], strides = [1, 1]} : vector<2x8xf32> to vector<2x1xf32>
    %827 = vector.extract_strided_slice %617 {offsets = [4, 0], sizes = [1, 24], strides = [1, 1]} : vector<8x24xf32> to vector<1x24xf32>
    %828 = vector.broadcast %826 : vector<2x1xf32> to vector<2x24xf32>
    %829 = vector.broadcast %827 : vector<1x24xf32> to vector<2x24xf32>
    %830 = arith.mulf %828, %829 : vector<2x24xf32>
    %831 = arith.addf %825, %830 : vector<2x24xf32>
    %832 = vector.extract_strided_slice %798 {offsets = [0, 5], sizes = [2, 1], strides = [1, 1]} : vector<2x8xf32> to vector<2x1xf32>
    %833 = vector.extract_strided_slice %617 {offsets = [5, 0], sizes = [1, 24], strides = [1, 1]} : vector<8x24xf32> to vector<1x24xf32>
    %834 = vector.broadcast %832 : vector<2x1xf32> to vector<2x24xf32>
    %835 = vector.broadcast %833 : vector<1x24xf32> to vector<2x24xf32>
    %836 = arith.mulf %834, %835 : vector<2x24xf32>
    %837 = arith.addf %831, %836 : vector<2x24xf32>
    %838 = vector.extract_strided_slice %798 {offsets = [0, 6], sizes = [2, 1], strides = [1, 1]} : vector<2x8xf32> to vector<2x1xf32>
    %839 = vector.extract_strided_slice %617 {offsets = [6, 0], sizes = [1, 24], strides = [1, 1]} : vector<8x24xf32> to vector<1x24xf32>
    %840 = vector.broadcast %838 : vector<2x1xf32> to vector<2x24xf32>
    %841 = vector.broadcast %839 : vector<1x24xf32> to vector<2x24xf32>
    %842 = arith.mulf %840, %841 : vector<2x24xf32>
    %843 = arith.addf %837, %842 : vector<2x24xf32>
    %844 = vector.extract_strided_slice %798 {offsets = [0, 7], sizes = [2, 1], strides = [1, 1]} : vector<2x8xf32> to vector<2x1xf32>
    %845 = vector.extract_strided_slice %617 {offsets = [7, 0], sizes = [1, 24], strides = [1, 1]} : vector<8x24xf32> to vector<1x24xf32>
    %846 = vector.broadcast %844 : vector<2x1xf32> to vector<2x24xf32>
    %847 = vector.broadcast %845 : vector<1x24xf32> to vector<2x24xf32>
    %848 = arith.mulf %846, %847 : vector<2x24xf32>
    %849 = arith.addf %843, %848 : vector<2x24xf32>
    %850 = vector.extract_strided_slice %799 {offsets = [0, 0], sizes = [2, 16], strides = [1, 1]} : vector<2x24xf32> to vector<2x16xf32>
    %851 = vector.extract_strided_slice %849 {offsets = [0, 0], sizes = [2, 16], strides = [1, 1]} : vector<2x24xf32> to vector<2x16xf32>
    %852 = arith.addf %850, %851 : vector<2x16xf32>
    %853 = arith.negf %852 : vector<2x16xf32>
    %854 = math.exp %853 : vector<2x16xf32>
    %cst_72 = arith.constant 1.000000e+00 : f32
    %855 = vector.broadcast %cst_72 : f32 to vector<2x16xf32>
    %856 = arith.addf %855, %854 : vector<2x16xf32>
    %857 = arith.divf %855, %856 : vector<2x16xf32>
    %858 = vector.extract_strided_slice %857 {offsets = [0, 0], sizes = [2, 8], strides = [1, 1]} : vector<2x16xf32> to vector<2x8xf32>
    %859 = vector.extract_strided_slice %857 {offsets = [0, 8], sizes = [2, 8], strides = [1, 1]} : vector<2x16xf32> to vector<2x8xf32>
    %860 = vector.extract_strided_slice %799 {offsets = [0, 16], sizes = [2, 8], strides = [1, 1]} : vector<2x24xf32> to vector<2x8xf32>
    %861 = vector.extract_strided_slice %849 {offsets = [0, 16], sizes = [2, 8], strides = [1, 1]} : vector<2x24xf32> to vector<2x8xf32>
    %862 = arith.mulf %858, %861 : vector<2x8xf32>
    %863 = arith.addf %860, %862 : vector<2x8xf32>
    %864 = math.tanh %863 : vector<2x8xf32>
    %cst_73 = arith.constant 1.000000e+00 : f32
    %865 = vector.broadcast %cst_73 : f32 to vector<2x8xf32>
    %866 = arith.subf %865, %859 : vector<2x8xf32>
    %867 = arith.mulf %866, %864 : vector<2x8xf32>
    %868 = arith.mulf %859, %798 : vector<2x8xf32>
    %869 = arith.addf %867, %868 : vector<2x8xf32>
    %870 = vector.extract_strided_slice %797 {offsets = [2, 0], sizes = [2, 24], strides = [1, 1]} : vector<16x24xf32> to vector<2x24xf32>
    %871 = vector.shape_cast %619 : vector<1x24xf32> to vector<1x24xf32>
    %872 = vector.broadcast %871 : vector<1x24xf32> to vector<2x24xf32>
    %873 = vector.extract_strided_slice %869 {offsets = [0, 0], sizes = [2, 1], strides = [1, 1]} : vector<2x8xf32> to vector<2x1xf32>
    %874 = vector.extract_strided_slice %617 {offsets = [0, 0], sizes = [1, 24], strides = [1, 1]} : vector<8x24xf32> to vector<1x24xf32>
    %875 = vector.broadcast %873 : vector<2x1xf32> to vector<2x24xf32>
    %876 = vector.broadcast %874 : vector<1x24xf32> to vector<2x24xf32>
    %877 = arith.mulf %875, %876 : vector<2x24xf32>
    %878 = arith.addf %872, %877 : vector<2x24xf32>
    %879 = vector.extract_strided_slice %869 {offsets = [0, 1], sizes = [2, 1], strides = [1, 1]} : vector<2x8xf32> to vector<2x1xf32>
    %880 = vector.extract_strided_slice %617 {offsets = [1, 0], sizes = [1, 24], strides = [1, 1]} : vector<8x24xf32> to vector<1x24xf32>
    %881 = vector.broadcast %879 : vector<2x1xf32> to vector<2x24xf32>
    %882 = vector.broadcast %880 : vector<1x24xf32> to vector<2x24xf32>
    %883 = arith.mulf %881, %882 : vector<2x24xf32>
    %884 = arith.addf %878, %883 : vector<2x24xf32>
    %885 = vector.extract_strided_slice %869 {offsets = [0, 2], sizes = [2, 1], strides = [1, 1]} : vector<2x8xf32> to vector<2x1xf32>
    %886 = vector.extract_strided_slice %617 {offsets = [2, 0], sizes = [1, 24], strides = [1, 1]} : vector<8x24xf32> to vector<1x24xf32>
    %887 = vector.broadcast %885 : vector<2x1xf32> to vector<2x24xf32>
    %888 = vector.broadcast %886 : vector<1x24xf32> to vector<2x24xf32>
    %889 = arith.mulf %887, %888 : vector<2x24xf32>
    %890 = arith.addf %884, %889 : vector<2x24xf32>
    %891 = vector.extract_strided_slice %869 {offsets = [0, 3], sizes = [2, 1], strides = [1, 1]} : vector<2x8xf32> to vector<2x1xf32>
    %892 = vector.extract_strided_slice %617 {offsets = [3, 0], sizes = [1, 24], strides = [1, 1]} : vector<8x24xf32> to vector<1x24xf32>
    %893 = vector.broadcast %891 : vector<2x1xf32> to vector<2x24xf32>
    %894 = vector.broadcast %892 : vector<1x24xf32> to vector<2x24xf32>
    %895 = arith.mulf %893, %894 : vector<2x24xf32>
    %896 = arith.addf %890, %895 : vector<2x24xf32>
    %897 = vector.extract_strided_slice %869 {offsets = [0, 4], sizes = [2, 1], strides = [1, 1]} : vector<2x8xf32> to vector<2x1xf32>
    %898 = vector.extract_strided_slice %617 {offsets = [4, 0], sizes = [1, 24], strides = [1, 1]} : vector<8x24xf32> to vector<1x24xf32>
    %899 = vector.broadcast %897 : vector<2x1xf32> to vector<2x24xf32>
    %900 = vector.broadcast %898 : vector<1x24xf32> to vector<2x24xf32>
    %901 = arith.mulf %899, %900 : vector<2x24xf32>
    %902 = arith.addf %896, %901 : vector<2x24xf32>
    %903 = vector.extract_strided_slice %869 {offsets = [0, 5], sizes = [2, 1], strides = [1, 1]} : vector<2x8xf32> to vector<2x1xf32>
    %904 = vector.extract_strided_slice %617 {offsets = [5, 0], sizes = [1, 24], strides = [1, 1]} : vector<8x24xf32> to vector<1x24xf32>
    %905 = vector.broadcast %903 : vector<2x1xf32> to vector<2x24xf32>
    %906 = vector.broadcast %904 : vector<1x24xf32> to vector<2x24xf32>
    %907 = arith.mulf %905, %906 : vector<2x24xf32>
    %908 = arith.addf %902, %907 : vector<2x24xf32>
    %909 = vector.extract_strided_slice %869 {offsets = [0, 6], sizes = [2, 1], strides = [1, 1]} : vector<2x8xf32> to vector<2x1xf32>
    %910 = vector.extract_strided_slice %617 {offsets = [6, 0], sizes = [1, 24], strides = [1, 1]} : vector<8x24xf32> to vector<1x24xf32>
    %911 = vector.broadcast %909 : vector<2x1xf32> to vector<2x24xf32>
    %912 = vector.broadcast %910 : vector<1x24xf32> to vector<2x24xf32>
    %913 = arith.mulf %911, %912 : vector<2x24xf32>
    %914 = arith.addf %908, %913 : vector<2x24xf32>
    %915 = vector.extract_strided_slice %869 {offsets = [0, 7], sizes = [2, 1], strides = [1, 1]} : vector<2x8xf32> to vector<2x1xf32>
    %916 = vector.extract_strided_slice %617 {offsets = [7, 0], sizes = [1, 24], strides = [1, 1]} : vector<8x24xf32> to vector<1x24xf32>
    %917 = vector.broadcast %915 : vector<2x1xf32> to vector<2x24xf32>
    %918 = vector.broadcast %916 : vector<1x24xf32> to vector<2x24xf32>
    %919 = arith.mulf %917, %918 : vector<2x24xf32>
    %920 = arith.addf %914, %919 : vector<2x24xf32>
    %921 = vector.extract_strided_slice %870 {offsets = [0, 0], sizes = [2, 16], strides = [1, 1]} : vector<2x24xf32> to vector<2x16xf32>
    %922 = vector.extract_strided_slice %920 {offsets = [0, 0], sizes = [2, 16], strides = [1, 1]} : vector<2x24xf32> to vector<2x16xf32>
    %923 = arith.addf %921, %922 : vector<2x16xf32>
    %924 = arith.negf %923 : vector<2x16xf32>
    %925 = math.exp %924 : vector<2x16xf32>
    %cst_74 = arith.constant 1.000000e+00 : f32
    %926 = vector.broadcast %cst_74 : f32 to vector<2x16xf32>
    %927 = arith.addf %926, %925 : vector<2x16xf32>
    %928 = arith.divf %926, %927 : vector<2x16xf32>
    %929 = vector.extract_strided_slice %928 {offsets = [0, 0], sizes = [2, 8], strides = [1, 1]} : vector<2x16xf32> to vector<2x8xf32>
    %930 = vector.extract_strided_slice %928 {offsets = [0, 8], sizes = [2, 8], strides = [1, 1]} : vector<2x16xf32> to vector<2x8xf32>
    %931 = vector.extract_strided_slice %870 {offsets = [0, 16], sizes = [2, 8], strides = [1, 1]} : vector<2x24xf32> to vector<2x8xf32>
    %932 = vector.extract_strided_slice %920 {offsets = [0, 16], sizes = [2, 8], strides = [1, 1]} : vector<2x24xf32> to vector<2x8xf32>
    %933 = arith.mulf %929, %932 : vector<2x8xf32>
    %934 = arith.addf %931, %933 : vector<2x8xf32>
    %935 = math.tanh %934 : vector<2x8xf32>
    %cst_75 = arith.constant 1.000000e+00 : f32
    %936 = vector.broadcast %cst_75 : f32 to vector<2x8xf32>
    %937 = arith.subf %936, %930 : vector<2x8xf32>
    %938 = arith.mulf %937, %935 : vector<2x8xf32>
    %939 = arith.mulf %930, %869 : vector<2x8xf32>
    %940 = arith.addf %938, %939 : vector<2x8xf32>
    %941 = vector.extract_strided_slice %797 {offsets = [4, 0], sizes = [2, 24], strides = [1, 1]} : vector<16x24xf32> to vector<2x24xf32>
    %942 = vector.shape_cast %619 : vector<1x24xf32> to vector<1x24xf32>
    %943 = vector.broadcast %942 : vector<1x24xf32> to vector<2x24xf32>
    %944 = vector.extract_strided_slice %940 {offsets = [0, 0], sizes = [2, 1], strides = [1, 1]} : vector<2x8xf32> to vector<2x1xf32>
    %945 = vector.extract_strided_slice %617 {offsets = [0, 0], sizes = [1, 24], strides = [1, 1]} : vector<8x24xf32> to vector<1x24xf32>
    %946 = vector.broadcast %944 : vector<2x1xf32> to vector<2x24xf32>
    %947 = vector.broadcast %945 : vector<1x24xf32> to vector<2x24xf32>
    %948 = arith.mulf %946, %947 : vector<2x24xf32>
    %949 = arith.addf %943, %948 : vector<2x24xf32>
    %950 = vector.extract_strided_slice %940 {offsets = [0, 1], sizes = [2, 1], strides = [1, 1]} : vector<2x8xf32> to vector<2x1xf32>
    %951 = vector.extract_strided_slice %617 {offsets = [1, 0], sizes = [1, 24], strides = [1, 1]} : vector<8x24xf32> to vector<1x24xf32>
    %952 = vector.broadcast %950 : vector<2x1xf32> to vector<2x24xf32>
    %953 = vector.broadcast %951 : vector<1x24xf32> to vector<2x24xf32>
    %954 = arith.mulf %952, %953 : vector<2x24xf32>
    %955 = arith.addf %949, %954 : vector<2x24xf32>
    %956 = vector.extract_strided_slice %940 {offsets = [0, 2], sizes = [2, 1], strides = [1, 1]} : vector<2x8xf32> to vector<2x1xf32>
    %957 = vector.extract_strided_slice %617 {offsets = [2, 0], sizes = [1, 24], strides = [1, 1]} : vector<8x24xf32> to vector<1x24xf32>
    %958 = vector.broadcast %956 : vector<2x1xf32> to vector<2x24xf32>
    %959 = vector.broadcast %957 : vector<1x24xf32> to vector<2x24xf32>
    %960 = arith.mulf %958, %959 : vector<2x24xf32>
    %961 = arith.addf %955, %960 : vector<2x24xf32>
    %962 = vector.extract_strided_slice %940 {offsets = [0, 3], sizes = [2, 1], strides = [1, 1]} : vector<2x8xf32> to vector<2x1xf32>
    %963 = vector.extract_strided_slice %617 {offsets = [3, 0], sizes = [1, 24], strides = [1, 1]} : vector<8x24xf32> to vector<1x24xf32>
    %964 = vector.broadcast %962 : vector<2x1xf32> to vector<2x24xf32>
    %965 = vector.broadcast %963 : vector<1x24xf32> to vector<2x24xf32>
    %966 = arith.mulf %964, %965 : vector<2x24xf32>
    %967 = arith.addf %961, %966 : vector<2x24xf32>
    %968 = vector.extract_strided_slice %940 {offsets = [0, 4], sizes = [2, 1], strides = [1, 1]} : vector<2x8xf32> to vector<2x1xf32>
    %969 = vector.extract_strided_slice %617 {offsets = [4, 0], sizes = [1, 24], strides = [1, 1]} : vector<8x24xf32> to vector<1x24xf32>
    %970 = vector.broadcast %968 : vector<2x1xf32> to vector<2x24xf32>
    %971 = vector.broadcast %969 : vector<1x24xf32> to vector<2x24xf32>
    %972 = arith.mulf %970, %971 : vector<2x24xf32>
    %973 = arith.addf %967, %972 : vector<2x24xf32>
    %974 = vector.extract_strided_slice %940 {offsets = [0, 5], sizes = [2, 1], strides = [1, 1]} : vector<2x8xf32> to vector<2x1xf32>
    %975 = vector.extract_strided_slice %617 {offsets = [5, 0], sizes = [1, 24], strides = [1, 1]} : vector<8x24xf32> to vector<1x24xf32>
    %976 = vector.broadcast %974 : vector<2x1xf32> to vector<2x24xf32>
    %977 = vector.broadcast %975 : vector<1x24xf32> to vector<2x24xf32>
    %978 = arith.mulf %976, %977 : vector<2x24xf32>
    %979 = arith.addf %973, %978 : vector<2x24xf32>
    %980 = vector.extract_strided_slice %940 {offsets = [0, 6], sizes = [2, 1], strides = [1, 1]} : vector<2x8xf32> to vector<2x1xf32>
    %981 = vector.extract_strided_slice %617 {offsets = [6, 0], sizes = [1, 24], strides = [1, 1]} : vector<8x24xf32> to vector<1x24xf32>
    %982 = vector.broadcast %980 : vector<2x1xf32> to vector<2x24xf32>
    %983 = vector.broadcast %981 : vector<1x24xf32> to vector<2x24xf32>
    %984 = arith.mulf %982, %983 : vector<2x24xf32>
    %985 = arith.addf %979, %984 : vector<2x24xf32>
    %986 = vector.extract_strided_slice %940 {offsets = [0, 7], sizes = [2, 1], strides = [1, 1]} : vector<2x8xf32> to vector<2x1xf32>
    %987 = vector.extract_strided_slice %617 {offsets = [7, 0], sizes = [1, 24], strides = [1, 1]} : vector<8x24xf32> to vector<1x24xf32>
    %988 = vector.broadcast %986 : vector<2x1xf32> to vector<2x24xf32>
    %989 = vector.broadcast %987 : vector<1x24xf32> to vector<2x24xf32>
    %990 = arith.mulf %988, %989 : vector<2x24xf32>
    %991 = arith.addf %985, %990 : vector<2x24xf32>
    %992 = vector.extract_strided_slice %941 {offsets = [0, 0], sizes = [2, 16], strides = [1, 1]} : vector<2x24xf32> to vector<2x16xf32>
    %993 = vector.extract_strided_slice %991 {offsets = [0, 0], sizes = [2, 16], strides = [1, 1]} : vector<2x24xf32> to vector<2x16xf32>
    %994 = arith.addf %992, %993 : vector<2x16xf32>
    %995 = arith.negf %994 : vector<2x16xf32>
    %996 = math.exp %995 : vector<2x16xf32>
    %cst_76 = arith.constant 1.000000e+00 : f32
    %997 = vector.broadcast %cst_76 : f32 to vector<2x16xf32>
    %998 = arith.addf %997, %996 : vector<2x16xf32>
    %999 = arith.divf %997, %998 : vector<2x16xf32>
    %1000 = vector.extract_strided_slice %999 {offsets = [0, 0], sizes = [2, 8], strides = [1, 1]} : vector<2x16xf32> to vector<2x8xf32>
    %1001 = vector.extract_strided_slice %999 {offsets = [0, 8], sizes = [2, 8], strides = [1, 1]} : vector<2x16xf32> to vector<2x8xf32>
    %1002 = vector.extract_strided_slice %941 {offsets = [0, 16], sizes = [2, 8], strides = [1, 1]} : vector<2x24xf32> to vector<2x8xf32>
    %1003 = vector.extract_strided_slice %991 {offsets = [0, 16], sizes = [2, 8], strides = [1, 1]} : vector<2x24xf32> to vector<2x8xf32>
    %1004 = arith.mulf %1000, %1003 : vector<2x8xf32>
    %1005 = arith.addf %1002, %1004 : vector<2x8xf32>
    %1006 = math.tanh %1005 : vector<2x8xf32>
    %cst_77 = arith.constant 1.000000e+00 : f32
    %1007 = vector.broadcast %cst_77 : f32 to vector<2x8xf32>
    %1008 = arith.subf %1007, %1001 : vector<2x8xf32>
    %1009 = arith.mulf %1008, %1006 : vector<2x8xf32>
    %1010 = arith.mulf %1001, %940 : vector<2x8xf32>
    %1011 = arith.addf %1009, %1010 : vector<2x8xf32>
    %1012 = vector.extract_strided_slice %797 {offsets = [6, 0], sizes = [2, 24], strides = [1, 1]} : vector<16x24xf32> to vector<2x24xf32>
    %1013 = vector.shape_cast %619 : vector<1x24xf32> to vector<1x24xf32>
    %1014 = vector.broadcast %1013 : vector<1x24xf32> to vector<2x24xf32>
    %1015 = vector.extract_strided_slice %1011 {offsets = [0, 0], sizes = [2, 1], strides = [1, 1]} : vector<2x8xf32> to vector<2x1xf32>
    %1016 = vector.extract_strided_slice %617 {offsets = [0, 0], sizes = [1, 24], strides = [1, 1]} : vector<8x24xf32> to vector<1x24xf32>
    %1017 = vector.broadcast %1015 : vector<2x1xf32> to vector<2x24xf32>
    %1018 = vector.broadcast %1016 : vector<1x24xf32> to vector<2x24xf32>
    %1019 = arith.mulf %1017, %1018 : vector<2x24xf32>
    %1020 = arith.addf %1014, %1019 : vector<2x24xf32>
    %1021 = vector.extract_strided_slice %1011 {offsets = [0, 1], sizes = [2, 1], strides = [1, 1]} : vector<2x8xf32> to vector<2x1xf32>
    %1022 = vector.extract_strided_slice %617 {offsets = [1, 0], sizes = [1, 24], strides = [1, 1]} : vector<8x24xf32> to vector<1x24xf32>
    %1023 = vector.broadcast %1021 : vector<2x1xf32> to vector<2x24xf32>
    %1024 = vector.broadcast %1022 : vector<1x24xf32> to vector<2x24xf32>
    %1025 = arith.mulf %1023, %1024 : vector<2x24xf32>
    %1026 = arith.addf %1020, %1025 : vector<2x24xf32>
    %1027 = vector.extract_strided_slice %1011 {offsets = [0, 2], sizes = [2, 1], strides = [1, 1]} : vector<2x8xf32> to vector<2x1xf32>
    %1028 = vector.extract_strided_slice %617 {offsets = [2, 0], sizes = [1, 24], strides = [1, 1]} : vector<8x24xf32> to vector<1x24xf32>
    %1029 = vector.broadcast %1027 : vector<2x1xf32> to vector<2x24xf32>
    %1030 = vector.broadcast %1028 : vector<1x24xf32> to vector<2x24xf32>
    %1031 = arith.mulf %1029, %1030 : vector<2x24xf32>
    %1032 = arith.addf %1026, %1031 : vector<2x24xf32>
    %1033 = vector.extract_strided_slice %1011 {offsets = [0, 3], sizes = [2, 1], strides = [1, 1]} : vector<2x8xf32> to vector<2x1xf32>
    %1034 = vector.extract_strided_slice %617 {offsets = [3, 0], sizes = [1, 24], strides = [1, 1]} : vector<8x24xf32> to vector<1x24xf32>
    %1035 = vector.broadcast %1033 : vector<2x1xf32> to vector<2x24xf32>
    %1036 = vector.broadcast %1034 : vector<1x24xf32> to vector<2x24xf32>
    %1037 = arith.mulf %1035, %1036 : vector<2x24xf32>
    %1038 = arith.addf %1032, %1037 : vector<2x24xf32>
    %1039 = vector.extract_strided_slice %1011 {offsets = [0, 4], sizes = [2, 1], strides = [1, 1]} : vector<2x8xf32> to vector<2x1xf32>
    %1040 = vector.extract_strided_slice %617 {offsets = [4, 0], sizes = [1, 24], strides = [1, 1]} : vector<8x24xf32> to vector<1x24xf32>
    %1041 = vector.broadcast %1039 : vector<2x1xf32> to vector<2x24xf32>
    %1042 = vector.broadcast %1040 : vector<1x24xf32> to vector<2x24xf32>
    %1043 = arith.mulf %1041, %1042 : vector<2x24xf32>
    %1044 = arith.addf %1038, %1043 : vector<2x24xf32>
    %1045 = vector.extract_strided_slice %1011 {offsets = [0, 5], sizes = [2, 1], strides = [1, 1]} : vector<2x8xf32> to vector<2x1xf32>
    %1046 = vector.extract_strided_slice %617 {offsets = [5, 0], sizes = [1, 24], strides = [1, 1]} : vector<8x24xf32> to vector<1x24xf32>
    %1047 = vector.broadcast %1045 : vector<2x1xf32> to vector<2x24xf32>
    %1048 = vector.broadcast %1046 : vector<1x24xf32> to vector<2x24xf32>
    %1049 = arith.mulf %1047, %1048 : vector<2x24xf32>
    %1050 = arith.addf %1044, %1049 : vector<2x24xf32>
    %1051 = vector.extract_strided_slice %1011 {offsets = [0, 6], sizes = [2, 1], strides = [1, 1]} : vector<2x8xf32> to vector<2x1xf32>
    %1052 = vector.extract_strided_slice %617 {offsets = [6, 0], sizes = [1, 24], strides = [1, 1]} : vector<8x24xf32> to vector<1x24xf32>
    %1053 = vector.broadcast %1051 : vector<2x1xf32> to vector<2x24xf32>
    %1054 = vector.broadcast %1052 : vector<1x24xf32> to vector<2x24xf32>
    %1055 = arith.mulf %1053, %1054 : vector<2x24xf32>
    %1056 = arith.addf %1050, %1055 : vector<2x24xf32>
    %1057 = vector.extract_strided_slice %1011 {offsets = [0, 7], sizes = [2, 1], strides = [1, 1]} : vector<2x8xf32> to vector<2x1xf32>
    %1058 = vector.extract_strided_slice %617 {offsets = [7, 0], sizes = [1, 24], strides = [1, 1]} : vector<8x24xf32> to vector<1x24xf32>
    %1059 = vector.broadcast %1057 : vector<2x1xf32> to vector<2x24xf32>
    %1060 = vector.broadcast %1058 : vector<1x24xf32> to vector<2x24xf32>
    %1061 = arith.mulf %1059, %1060 : vector<2x24xf32>
    %1062 = arith.addf %1056, %1061 : vector<2x24xf32>
    %1063 = vector.extract_strided_slice %1012 {offsets = [0, 0], sizes = [2, 16], strides = [1, 1]} : vector<2x24xf32> to vector<2x16xf32>
    %1064 = vector.extract_strided_slice %1062 {offsets = [0, 0], sizes = [2, 16], strides = [1, 1]} : vector<2x24xf32> to vector<2x16xf32>
    %1065 = arith.addf %1063, %1064 : vector<2x16xf32>
    %1066 = arith.negf %1065 : vector<2x16xf32>
    %1067 = math.exp %1066 : vector<2x16xf32>
    %cst_78 = arith.constant 1.000000e+00 : f32
    %1068 = vector.broadcast %cst_78 : f32 to vector<2x16xf32>
    %1069 = arith.addf %1068, %1067 : vector<2x16xf32>
    %1070 = arith.divf %1068, %1069 : vector<2x16xf32>
    %1071 = vector.extract_strided_slice %1070 {offsets = [0, 0], sizes = [2, 8], strides = [1, 1]} : vector<2x16xf32> to vector<2x8xf32>
    %1072 = vector.extract_strided_slice %1070 {offsets = [0, 8], sizes = [2, 8], strides = [1, 1]} : vector<2x16xf32> to vector<2x8xf32>
    %1073 = vector.extract_strided_slice %1012 {offsets = [0, 16], sizes = [2, 8], strides = [1, 1]} : vector<2x24xf32> to vector<2x8xf32>
    %1074 = vector.extract_strided_slice %1062 {offsets = [0, 16], sizes = [2, 8], strides = [1, 1]} : vector<2x24xf32> to vector<2x8xf32>
    %1075 = arith.mulf %1071, %1074 : vector<2x8xf32>
    %1076 = arith.addf %1073, %1075 : vector<2x8xf32>
    %1077 = math.tanh %1076 : vector<2x8xf32>
    %cst_79 = arith.constant 1.000000e+00 : f32
    %1078 = vector.broadcast %cst_79 : f32 to vector<2x8xf32>
    %1079 = arith.subf %1078, %1072 : vector<2x8xf32>
    %1080 = arith.mulf %1079, %1077 : vector<2x8xf32>
    %1081 = arith.mulf %1072, %1011 : vector<2x8xf32>
    %1082 = arith.addf %1080, %1081 : vector<2x8xf32>
    %1083 = vector.extract_strided_slice %797 {offsets = [8, 0], sizes = [2, 24], strides = [1, 1]} : vector<16x24xf32> to vector<2x24xf32>
    %1084 = vector.shape_cast %619 : vector<1x24xf32> to vector<1x24xf32>
    %1085 = vector.broadcast %1084 : vector<1x24xf32> to vector<2x24xf32>
    %1086 = vector.extract_strided_slice %1082 {offsets = [0, 0], sizes = [2, 1], strides = [1, 1]} : vector<2x8xf32> to vector<2x1xf32>
    %1087 = vector.extract_strided_slice %617 {offsets = [0, 0], sizes = [1, 24], strides = [1, 1]} : vector<8x24xf32> to vector<1x24xf32>
    %1088 = vector.broadcast %1086 : vector<2x1xf32> to vector<2x24xf32>
    %1089 = vector.broadcast %1087 : vector<1x24xf32> to vector<2x24xf32>
    %1090 = arith.mulf %1088, %1089 : vector<2x24xf32>
    %1091 = arith.addf %1085, %1090 : vector<2x24xf32>
    %1092 = vector.extract_strided_slice %1082 {offsets = [0, 1], sizes = [2, 1], strides = [1, 1]} : vector<2x8xf32> to vector<2x1xf32>
    %1093 = vector.extract_strided_slice %617 {offsets = [1, 0], sizes = [1, 24], strides = [1, 1]} : vector<8x24xf32> to vector<1x24xf32>
    %1094 = vector.broadcast %1092 : vector<2x1xf32> to vector<2x24xf32>
    %1095 = vector.broadcast %1093 : vector<1x24xf32> to vector<2x24xf32>
    %1096 = arith.mulf %1094, %1095 : vector<2x24xf32>
    %1097 = arith.addf %1091, %1096 : vector<2x24xf32>
    %1098 = vector.extract_strided_slice %1082 {offsets = [0, 2], sizes = [2, 1], strides = [1, 1]} : vector<2x8xf32> to vector<2x1xf32>
    %1099 = vector.extract_strided_slice %617 {offsets = [2, 0], sizes = [1, 24], strides = [1, 1]} : vector<8x24xf32> to vector<1x24xf32>
    %1100 = vector.broadcast %1098 : vector<2x1xf32> to vector<2x24xf32>
    %1101 = vector.broadcast %1099 : vector<1x24xf32> to vector<2x24xf32>
    %1102 = arith.mulf %1100, %1101 : vector<2x24xf32>
    %1103 = arith.addf %1097, %1102 : vector<2x24xf32>
    %1104 = vector.extract_strided_slice %1082 {offsets = [0, 3], sizes = [2, 1], strides = [1, 1]} : vector<2x8xf32> to vector<2x1xf32>
    %1105 = vector.extract_strided_slice %617 {offsets = [3, 0], sizes = [1, 24], strides = [1, 1]} : vector<8x24xf32> to vector<1x24xf32>
    %1106 = vector.broadcast %1104 : vector<2x1xf32> to vector<2x24xf32>
    %1107 = vector.broadcast %1105 : vector<1x24xf32> to vector<2x24xf32>
    %1108 = arith.mulf %1106, %1107 : vector<2x24xf32>
    %1109 = arith.addf %1103, %1108 : vector<2x24xf32>
    %1110 = vector.extract_strided_slice %1082 {offsets = [0, 4], sizes = [2, 1], strides = [1, 1]} : vector<2x8xf32> to vector<2x1xf32>
    %1111 = vector.extract_strided_slice %617 {offsets = [4, 0], sizes = [1, 24], strides = [1, 1]} : vector<8x24xf32> to vector<1x24xf32>
    %1112 = vector.broadcast %1110 : vector<2x1xf32> to vector<2x24xf32>
    %1113 = vector.broadcast %1111 : vector<1x24xf32> to vector<2x24xf32>
    %1114 = arith.mulf %1112, %1113 : vector<2x24xf32>
    %1115 = arith.addf %1109, %1114 : vector<2x24xf32>
    %1116 = vector.extract_strided_slice %1082 {offsets = [0, 5], sizes = [2, 1], strides = [1, 1]} : vector<2x8xf32> to vector<2x1xf32>
    %1117 = vector.extract_strided_slice %617 {offsets = [5, 0], sizes = [1, 24], strides = [1, 1]} : vector<8x24xf32> to vector<1x24xf32>
    %1118 = vector.broadcast %1116 : vector<2x1xf32> to vector<2x24xf32>
    %1119 = vector.broadcast %1117 : vector<1x24xf32> to vector<2x24xf32>
    %1120 = arith.mulf %1118, %1119 : vector<2x24xf32>
    %1121 = arith.addf %1115, %1120 : vector<2x24xf32>
    %1122 = vector.extract_strided_slice %1082 {offsets = [0, 6], sizes = [2, 1], strides = [1, 1]} : vector<2x8xf32> to vector<2x1xf32>
    %1123 = vector.extract_strided_slice %617 {offsets = [6, 0], sizes = [1, 24], strides = [1, 1]} : vector<8x24xf32> to vector<1x24xf32>
    %1124 = vector.broadcast %1122 : vector<2x1xf32> to vector<2x24xf32>
    %1125 = vector.broadcast %1123 : vector<1x24xf32> to vector<2x24xf32>
    %1126 = arith.mulf %1124, %1125 : vector<2x24xf32>
    %1127 = arith.addf %1121, %1126 : vector<2x24xf32>
    %1128 = vector.extract_strided_slice %1082 {offsets = [0, 7], sizes = [2, 1], strides = [1, 1]} : vector<2x8xf32> to vector<2x1xf32>
    %1129 = vector.extract_strided_slice %617 {offsets = [7, 0], sizes = [1, 24], strides = [1, 1]} : vector<8x24xf32> to vector<1x24xf32>
    %1130 = vector.broadcast %1128 : vector<2x1xf32> to vector<2x24xf32>
    %1131 = vector.broadcast %1129 : vector<1x24xf32> to vector<2x24xf32>
    %1132 = arith.mulf %1130, %1131 : vector<2x24xf32>
    %1133 = arith.addf %1127, %1132 : vector<2x24xf32>
    %1134 = vector.extract_strided_slice %1083 {offsets = [0, 0], sizes = [2, 16], strides = [1, 1]} : vector<2x24xf32> to vector<2x16xf32>
    %1135 = vector.extract_strided_slice %1133 {offsets = [0, 0], sizes = [2, 16], strides = [1, 1]} : vector<2x24xf32> to vector<2x16xf32>
    %1136 = arith.addf %1134, %1135 : vector<2x16xf32>
    %1137 = arith.negf %1136 : vector<2x16xf32>
    %1138 = math.exp %1137 : vector<2x16xf32>
    %cst_80 = arith.constant 1.000000e+00 : f32
    %1139 = vector.broadcast %cst_80 : f32 to vector<2x16xf32>
    %1140 = arith.addf %1139, %1138 : vector<2x16xf32>
    %1141 = arith.divf %1139, %1140 : vector<2x16xf32>
    %1142 = vector.extract_strided_slice %1141 {offsets = [0, 0], sizes = [2, 8], strides = [1, 1]} : vector<2x16xf32> to vector<2x8xf32>
    %1143 = vector.extract_strided_slice %1141 {offsets = [0, 8], sizes = [2, 8], strides = [1, 1]} : vector<2x16xf32> to vector<2x8xf32>
    %1144 = vector.extract_strided_slice %1083 {offsets = [0, 16], sizes = [2, 8], strides = [1, 1]} : vector<2x24xf32> to vector<2x8xf32>
    %1145 = vector.extract_strided_slice %1133 {offsets = [0, 16], sizes = [2, 8], strides = [1, 1]} : vector<2x24xf32> to vector<2x8xf32>
    %1146 = arith.mulf %1142, %1145 : vector<2x8xf32>
    %1147 = arith.addf %1144, %1146 : vector<2x8xf32>
    %1148 = math.tanh %1147 : vector<2x8xf32>
    %cst_81 = arith.constant 1.000000e+00 : f32
    %1149 = vector.broadcast %cst_81 : f32 to vector<2x8xf32>
    %1150 = arith.subf %1149, %1143 : vector<2x8xf32>
    %1151 = arith.mulf %1150, %1148 : vector<2x8xf32>
    %1152 = arith.mulf %1143, %1082 : vector<2x8xf32>
    %1153 = arith.addf %1151, %1152 : vector<2x8xf32>
    %1154 = vector.extract_strided_slice %797 {offsets = [10, 0], sizes = [2, 24], strides = [1, 1]} : vector<16x24xf32> to vector<2x24xf32>
    %1155 = vector.shape_cast %619 : vector<1x24xf32> to vector<1x24xf32>
    %1156 = vector.broadcast %1155 : vector<1x24xf32> to vector<2x24xf32>
    %1157 = vector.extract_strided_slice %1153 {offsets = [0, 0], sizes = [2, 1], strides = [1, 1]} : vector<2x8xf32> to vector<2x1xf32>
    %1158 = vector.extract_strided_slice %617 {offsets = [0, 0], sizes = [1, 24], strides = [1, 1]} : vector<8x24xf32> to vector<1x24xf32>
    %1159 = vector.broadcast %1157 : vector<2x1xf32> to vector<2x24xf32>
    %1160 = vector.broadcast %1158 : vector<1x24xf32> to vector<2x24xf32>
    %1161 = arith.mulf %1159, %1160 : vector<2x24xf32>
    %1162 = arith.addf %1156, %1161 : vector<2x24xf32>
    %1163 = vector.extract_strided_slice %1153 {offsets = [0, 1], sizes = [2, 1], strides = [1, 1]} : vector<2x8xf32> to vector<2x1xf32>
    %1164 = vector.extract_strided_slice %617 {offsets = [1, 0], sizes = [1, 24], strides = [1, 1]} : vector<8x24xf32> to vector<1x24xf32>
    %1165 = vector.broadcast %1163 : vector<2x1xf32> to vector<2x24xf32>
    %1166 = vector.broadcast %1164 : vector<1x24xf32> to vector<2x24xf32>
    %1167 = arith.mulf %1165, %1166 : vector<2x24xf32>
    %1168 = arith.addf %1162, %1167 : vector<2x24xf32>
    %1169 = vector.extract_strided_slice %1153 {offsets = [0, 2], sizes = [2, 1], strides = [1, 1]} : vector<2x8xf32> to vector<2x1xf32>
    %1170 = vector.extract_strided_slice %617 {offsets = [2, 0], sizes = [1, 24], strides = [1, 1]} : vector<8x24xf32> to vector<1x24xf32>
    %1171 = vector.broadcast %1169 : vector<2x1xf32> to vector<2x24xf32>
    %1172 = vector.broadcast %1170 : vector<1x24xf32> to vector<2x24xf32>
    %1173 = arith.mulf %1171, %1172 : vector<2x24xf32>
    %1174 = arith.addf %1168, %1173 : vector<2x24xf32>
    %1175 = vector.extract_strided_slice %1153 {offsets = [0, 3], sizes = [2, 1], strides = [1, 1]} : vector<2x8xf32> to vector<2x1xf32>
    %1176 = vector.extract_strided_slice %617 {offsets = [3, 0], sizes = [1, 24], strides = [1, 1]} : vector<8x24xf32> to vector<1x24xf32>
    %1177 = vector.broadcast %1175 : vector<2x1xf32> to vector<2x24xf32>
    %1178 = vector.broadcast %1176 : vector<1x24xf32> to vector<2x24xf32>
    %1179 = arith.mulf %1177, %1178 : vector<2x24xf32>
    %1180 = arith.addf %1174, %1179 : vector<2x24xf32>
    %1181 = vector.extract_strided_slice %1153 {offsets = [0, 4], sizes = [2, 1], strides = [1, 1]} : vector<2x8xf32> to vector<2x1xf32>
    %1182 = vector.extract_strided_slice %617 {offsets = [4, 0], sizes = [1, 24], strides = [1, 1]} : vector<8x24xf32> to vector<1x24xf32>
    %1183 = vector.broadcast %1181 : vector<2x1xf32> to vector<2x24xf32>
    %1184 = vector.broadcast %1182 : vector<1x24xf32> to vector<2x24xf32>
    %1185 = arith.mulf %1183, %1184 : vector<2x24xf32>
    %1186 = arith.addf %1180, %1185 : vector<2x24xf32>
    %1187 = vector.extract_strided_slice %1153 {offsets = [0, 5], sizes = [2, 1], strides = [1, 1]} : vector<2x8xf32> to vector<2x1xf32>
    %1188 = vector.extract_strided_slice %617 {offsets = [5, 0], sizes = [1, 24], strides = [1, 1]} : vector<8x24xf32> to vector<1x24xf32>
    %1189 = vector.broadcast %1187 : vector<2x1xf32> to vector<2x24xf32>
    %1190 = vector.broadcast %1188 : vector<1x24xf32> to vector<2x24xf32>
    %1191 = arith.mulf %1189, %1190 : vector<2x24xf32>
    %1192 = arith.addf %1186, %1191 : vector<2x24xf32>
    %1193 = vector.extract_strided_slice %1153 {offsets = [0, 6], sizes = [2, 1], strides = [1, 1]} : vector<2x8xf32> to vector<2x1xf32>
    %1194 = vector.extract_strided_slice %617 {offsets = [6, 0], sizes = [1, 24], strides = [1, 1]} : vector<8x24xf32> to vector<1x24xf32>
    %1195 = vector.broadcast %1193 : vector<2x1xf32> to vector<2x24xf32>
    %1196 = vector.broadcast %1194 : vector<1x24xf32> to vector<2x24xf32>
    %1197 = arith.mulf %1195, %1196 : vector<2x24xf32>
    %1198 = arith.addf %1192, %1197 : vector<2x24xf32>
    %1199 = vector.extract_strided_slice %1153 {offsets = [0, 7], sizes = [2, 1], strides = [1, 1]} : vector<2x8xf32> to vector<2x1xf32>
    %1200 = vector.extract_strided_slice %617 {offsets = [7, 0], sizes = [1, 24], strides = [1, 1]} : vector<8x24xf32> to vector<1x24xf32>
    %1201 = vector.broadcast %1199 : vector<2x1xf32> to vector<2x24xf32>
    %1202 = vector.broadcast %1200 : vector<1x24xf32> to vector<2x24xf32>
    %1203 = arith.mulf %1201, %1202 : vector<2x24xf32>
    %1204 = arith.addf %1198, %1203 : vector<2x24xf32>
    %1205 = vector.extract_strided_slice %1154 {offsets = [0, 0], sizes = [2, 16], strides = [1, 1]} : vector<2x24xf32> to vector<2x16xf32>
    %1206 = vector.extract_strided_slice %1204 {offsets = [0, 0], sizes = [2, 16], strides = [1, 1]} : vector<2x24xf32> to vector<2x16xf32>
    %1207 = arith.addf %1205, %1206 : vector<2x16xf32>
    %1208 = arith.negf %1207 : vector<2x16xf32>
    %1209 = math.exp %1208 : vector<2x16xf32>
    %cst_82 = arith.constant 1.000000e+00 : f32
    %1210 = vector.broadcast %cst_82 : f32 to vector<2x16xf32>
    %1211 = arith.addf %1210, %1209 : vector<2x16xf32>
    %1212 = arith.divf %1210, %1211 : vector<2x16xf32>
    %1213 = vector.extract_strided_slice %1212 {offsets = [0, 0], sizes = [2, 8], strides = [1, 1]} : vector<2x16xf32> to vector<2x8xf32>
    %1214 = vector.extract_strided_slice %1212 {offsets = [0, 8], sizes = [2, 8], strides = [1, 1]} : vector<2x16xf32> to vector<2x8xf32>
    %1215 = vector.extract_strided_slice %1154 {offsets = [0, 16], sizes = [2, 8], strides = [1, 1]} : vector<2x24xf32> to vector<2x8xf32>
    %1216 = vector.extract_strided_slice %1204 {offsets = [0, 16], sizes = [2, 8], strides = [1, 1]} : vector<2x24xf32> to vector<2x8xf32>
    %1217 = arith.mulf %1213, %1216 : vector<2x8xf32>
    %1218 = arith.addf %1215, %1217 : vector<2x8xf32>
    %1219 = math.tanh %1218 : vector<2x8xf32>
    %cst_83 = arith.constant 1.000000e+00 : f32
    %1220 = vector.broadcast %cst_83 : f32 to vector<2x8xf32>
    %1221 = arith.subf %1220, %1214 : vector<2x8xf32>
    %1222 = arith.mulf %1221, %1219 : vector<2x8xf32>
    %1223 = arith.mulf %1214, %1153 : vector<2x8xf32>
    %1224 = arith.addf %1222, %1223 : vector<2x8xf32>
    %1225 = vector.extract_strided_slice %797 {offsets = [12, 0], sizes = [2, 24], strides = [1, 1]} : vector<16x24xf32> to vector<2x24xf32>
    %1226 = vector.shape_cast %619 : vector<1x24xf32> to vector<1x24xf32>
    %1227 = vector.broadcast %1226 : vector<1x24xf32> to vector<2x24xf32>
    %1228 = vector.extract_strided_slice %1224 {offsets = [0, 0], sizes = [2, 1], strides = [1, 1]} : vector<2x8xf32> to vector<2x1xf32>
    %1229 = vector.extract_strided_slice %617 {offsets = [0, 0], sizes = [1, 24], strides = [1, 1]} : vector<8x24xf32> to vector<1x24xf32>
    %1230 = vector.broadcast %1228 : vector<2x1xf32> to vector<2x24xf32>
    %1231 = vector.broadcast %1229 : vector<1x24xf32> to vector<2x24xf32>
    %1232 = arith.mulf %1230, %1231 : vector<2x24xf32>
    %1233 = arith.addf %1227, %1232 : vector<2x24xf32>
    %1234 = vector.extract_strided_slice %1224 {offsets = [0, 1], sizes = [2, 1], strides = [1, 1]} : vector<2x8xf32> to vector<2x1xf32>
    %1235 = vector.extract_strided_slice %617 {offsets = [1, 0], sizes = [1, 24], strides = [1, 1]} : vector<8x24xf32> to vector<1x24xf32>
    %1236 = vector.broadcast %1234 : vector<2x1xf32> to vector<2x24xf32>
    %1237 = vector.broadcast %1235 : vector<1x24xf32> to vector<2x24xf32>
    %1238 = arith.mulf %1236, %1237 : vector<2x24xf32>
    %1239 = arith.addf %1233, %1238 : vector<2x24xf32>
    %1240 = vector.extract_strided_slice %1224 {offsets = [0, 2], sizes = [2, 1], strides = [1, 1]} : vector<2x8xf32> to vector<2x1xf32>
    %1241 = vector.extract_strided_slice %617 {offsets = [2, 0], sizes = [1, 24], strides = [1, 1]} : vector<8x24xf32> to vector<1x24xf32>
    %1242 = vector.broadcast %1240 : vector<2x1xf32> to vector<2x24xf32>
    %1243 = vector.broadcast %1241 : vector<1x24xf32> to vector<2x24xf32>
    %1244 = arith.mulf %1242, %1243 : vector<2x24xf32>
    %1245 = arith.addf %1239, %1244 : vector<2x24xf32>
    %1246 = vector.extract_strided_slice %1224 {offsets = [0, 3], sizes = [2, 1], strides = [1, 1]} : vector<2x8xf32> to vector<2x1xf32>
    %1247 = vector.extract_strided_slice %617 {offsets = [3, 0], sizes = [1, 24], strides = [1, 1]} : vector<8x24xf32> to vector<1x24xf32>
    %1248 = vector.broadcast %1246 : vector<2x1xf32> to vector<2x24xf32>
    %1249 = vector.broadcast %1247 : vector<1x24xf32> to vector<2x24xf32>
    %1250 = arith.mulf %1248, %1249 : vector<2x24xf32>
    %1251 = arith.addf %1245, %1250 : vector<2x24xf32>
    %1252 = vector.extract_strided_slice %1224 {offsets = [0, 4], sizes = [2, 1], strides = [1, 1]} : vector<2x8xf32> to vector<2x1xf32>
    %1253 = vector.extract_strided_slice %617 {offsets = [4, 0], sizes = [1, 24], strides = [1, 1]} : vector<8x24xf32> to vector<1x24xf32>
    %1254 = vector.broadcast %1252 : vector<2x1xf32> to vector<2x24xf32>
    %1255 = vector.broadcast %1253 : vector<1x24xf32> to vector<2x24xf32>
    %1256 = arith.mulf %1254, %1255 : vector<2x24xf32>
    %1257 = arith.addf %1251, %1256 : vector<2x24xf32>
    %1258 = vector.extract_strided_slice %1224 {offsets = [0, 5], sizes = [2, 1], strides = [1, 1]} : vector<2x8xf32> to vector<2x1xf32>
    %1259 = vector.extract_strided_slice %617 {offsets = [5, 0], sizes = [1, 24], strides = [1, 1]} : vector<8x24xf32> to vector<1x24xf32>
    %1260 = vector.broadcast %1258 : vector<2x1xf32> to vector<2x24xf32>
    %1261 = vector.broadcast %1259 : vector<1x24xf32> to vector<2x24xf32>
    %1262 = arith.mulf %1260, %1261 : vector<2x24xf32>
    %1263 = arith.addf %1257, %1262 : vector<2x24xf32>
    %1264 = vector.extract_strided_slice %1224 {offsets = [0, 6], sizes = [2, 1], strides = [1, 1]} : vector<2x8xf32> to vector<2x1xf32>
    %1265 = vector.extract_strided_slice %617 {offsets = [6, 0], sizes = [1, 24], strides = [1, 1]} : vector<8x24xf32> to vector<1x24xf32>
    %1266 = vector.broadcast %1264 : vector<2x1xf32> to vector<2x24xf32>
    %1267 = vector.broadcast %1265 : vector<1x24xf32> to vector<2x24xf32>
    %1268 = arith.mulf %1266, %1267 : vector<2x24xf32>
    %1269 = arith.addf %1263, %1268 : vector<2x24xf32>
    %1270 = vector.extract_strided_slice %1224 {offsets = [0, 7], sizes = [2, 1], strides = [1, 1]} : vector<2x8xf32> to vector<2x1xf32>
    %1271 = vector.extract_strided_slice %617 {offsets = [7, 0], sizes = [1, 24], strides = [1, 1]} : vector<8x24xf32> to vector<1x24xf32>
    %1272 = vector.broadcast %1270 : vector<2x1xf32> to vector<2x24xf32>
    %1273 = vector.broadcast %1271 : vector<1x24xf32> to vector<2x24xf32>
    %1274 = arith.mulf %1272, %1273 : vector<2x24xf32>
    %1275 = arith.addf %1269, %1274 : vector<2x24xf32>
    %1276 = vector.extract_strided_slice %1225 {offsets = [0, 0], sizes = [2, 16], strides = [1, 1]} : vector<2x24xf32> to vector<2x16xf32>
    %1277 = vector.extract_strided_slice %1275 {offsets = [0, 0], sizes = [2, 16], strides = [1, 1]} : vector<2x24xf32> to vector<2x16xf32>
    %1278 = arith.addf %1276, %1277 : vector<2x16xf32>
    %1279 = arith.negf %1278 : vector<2x16xf32>
    %1280 = math.exp %1279 : vector<2x16xf32>
    %cst_84 = arith.constant 1.000000e+00 : f32
    %1281 = vector.broadcast %cst_84 : f32 to vector<2x16xf32>
    %1282 = arith.addf %1281, %1280 : vector<2x16xf32>
    %1283 = arith.divf %1281, %1282 : vector<2x16xf32>
    %1284 = vector.extract_strided_slice %1283 {offsets = [0, 0], sizes = [2, 8], strides = [1, 1]} : vector<2x16xf32> to vector<2x8xf32>
    %1285 = vector.extract_strided_slice %1283 {offsets = [0, 8], sizes = [2, 8], strides = [1, 1]} : vector<2x16xf32> to vector<2x8xf32>
    %1286 = vector.extract_strided_slice %1225 {offsets = [0, 16], sizes = [2, 8], strides = [1, 1]} : vector<2x24xf32> to vector<2x8xf32>
    %1287 = vector.extract_strided_slice %1275 {offsets = [0, 16], sizes = [2, 8], strides = [1, 1]} : vector<2x24xf32> to vector<2x8xf32>
    %1288 = arith.mulf %1284, %1287 : vector<2x8xf32>
    %1289 = arith.addf %1286, %1288 : vector<2x8xf32>
    %1290 = math.tanh %1289 : vector<2x8xf32>
    %cst_85 = arith.constant 1.000000e+00 : f32
    %1291 = vector.broadcast %cst_85 : f32 to vector<2x8xf32>
    %1292 = arith.subf %1291, %1285 : vector<2x8xf32>
    %1293 = arith.mulf %1292, %1290 : vector<2x8xf32>
    %1294 = arith.mulf %1285, %1224 : vector<2x8xf32>
    %1295 = arith.addf %1293, %1294 : vector<2x8xf32>
    %1296 = vector.extract_strided_slice %797 {offsets = [14, 0], sizes = [2, 24], strides = [1, 1]} : vector<16x24xf32> to vector<2x24xf32>
    %1297 = vector.shape_cast %619 : vector<1x24xf32> to vector<1x24xf32>
    %1298 = vector.broadcast %1297 : vector<1x24xf32> to vector<2x24xf32>
    %1299 = vector.extract_strided_slice %1295 {offsets = [0, 0], sizes = [2, 1], strides = [1, 1]} : vector<2x8xf32> to vector<2x1xf32>
    %1300 = vector.extract_strided_slice %617 {offsets = [0, 0], sizes = [1, 24], strides = [1, 1]} : vector<8x24xf32> to vector<1x24xf32>
    %1301 = vector.broadcast %1299 : vector<2x1xf32> to vector<2x24xf32>
    %1302 = vector.broadcast %1300 : vector<1x24xf32> to vector<2x24xf32>
    %1303 = arith.mulf %1301, %1302 : vector<2x24xf32>
    %1304 = arith.addf %1298, %1303 : vector<2x24xf32>
    %1305 = vector.extract_strided_slice %1295 {offsets = [0, 1], sizes = [2, 1], strides = [1, 1]} : vector<2x8xf32> to vector<2x1xf32>
    %1306 = vector.extract_strided_slice %617 {offsets = [1, 0], sizes = [1, 24], strides = [1, 1]} : vector<8x24xf32> to vector<1x24xf32>
    %1307 = vector.broadcast %1305 : vector<2x1xf32> to vector<2x24xf32>
    %1308 = vector.broadcast %1306 : vector<1x24xf32> to vector<2x24xf32>
    %1309 = arith.mulf %1307, %1308 : vector<2x24xf32>
    %1310 = arith.addf %1304, %1309 : vector<2x24xf32>
    %1311 = vector.extract_strided_slice %1295 {offsets = [0, 2], sizes = [2, 1], strides = [1, 1]} : vector<2x8xf32> to vector<2x1xf32>
    %1312 = vector.extract_strided_slice %617 {offsets = [2, 0], sizes = [1, 24], strides = [1, 1]} : vector<8x24xf32> to vector<1x24xf32>
    %1313 = vector.broadcast %1311 : vector<2x1xf32> to vector<2x24xf32>
    %1314 = vector.broadcast %1312 : vector<1x24xf32> to vector<2x24xf32>
    %1315 = arith.mulf %1313, %1314 : vector<2x24xf32>
    %1316 = arith.addf %1310, %1315 : vector<2x24xf32>
    %1317 = vector.extract_strided_slice %1295 {offsets = [0, 3], sizes = [2, 1], strides = [1, 1]} : vector<2x8xf32> to vector<2x1xf32>
    %1318 = vector.extract_strided_slice %617 {offsets = [3, 0], sizes = [1, 24], strides = [1, 1]} : vector<8x24xf32> to vector<1x24xf32>
    %1319 = vector.broadcast %1317 : vector<2x1xf32> to vector<2x24xf32>
    %1320 = vector.broadcast %1318 : vector<1x24xf32> to vector<2x24xf32>
    %1321 = arith.mulf %1319, %1320 : vector<2x24xf32>
    %1322 = arith.addf %1316, %1321 : vector<2x24xf32>
    %1323 = vector.extract_strided_slice %1295 {offsets = [0, 4], sizes = [2, 1], strides = [1, 1]} : vector<2x8xf32> to vector<2x1xf32>
    %1324 = vector.extract_strided_slice %617 {offsets = [4, 0], sizes = [1, 24], strides = [1, 1]} : vector<8x24xf32> to vector<1x24xf32>
    %1325 = vector.broadcast %1323 : vector<2x1xf32> to vector<2x24xf32>
    %1326 = vector.broadcast %1324 : vector<1x24xf32> to vector<2x24xf32>
    %1327 = arith.mulf %1325, %1326 : vector<2x24xf32>
    %1328 = arith.addf %1322, %1327 : vector<2x24xf32>
    %1329 = vector.extract_strided_slice %1295 {offsets = [0, 5], sizes = [2, 1], strides = [1, 1]} : vector<2x8xf32> to vector<2x1xf32>
    %1330 = vector.extract_strided_slice %617 {offsets = [5, 0], sizes = [1, 24], strides = [1, 1]} : vector<8x24xf32> to vector<1x24xf32>
    %1331 = vector.broadcast %1329 : vector<2x1xf32> to vector<2x24xf32>
    %1332 = vector.broadcast %1330 : vector<1x24xf32> to vector<2x24xf32>
    %1333 = arith.mulf %1331, %1332 : vector<2x24xf32>
    %1334 = arith.addf %1328, %1333 : vector<2x24xf32>
    %1335 = vector.extract_strided_slice %1295 {offsets = [0, 6], sizes = [2, 1], strides = [1, 1]} : vector<2x8xf32> to vector<2x1xf32>
    %1336 = vector.extract_strided_slice %617 {offsets = [6, 0], sizes = [1, 24], strides = [1, 1]} : vector<8x24xf32> to vector<1x24xf32>
    %1337 = vector.broadcast %1335 : vector<2x1xf32> to vector<2x24xf32>
    %1338 = vector.broadcast %1336 : vector<1x24xf32> to vector<2x24xf32>
    %1339 = arith.mulf %1337, %1338 : vector<2x24xf32>
    %1340 = arith.addf %1334, %1339 : vector<2x24xf32>
    %1341 = vector.extract_strided_slice %1295 {offsets = [0, 7], sizes = [2, 1], strides = [1, 1]} : vector<2x8xf32> to vector<2x1xf32>
    %1342 = vector.extract_strided_slice %617 {offsets = [7, 0], sizes = [1, 24], strides = [1, 1]} : vector<8x24xf32> to vector<1x24xf32>
    %1343 = vector.broadcast %1341 : vector<2x1xf32> to vector<2x24xf32>
    %1344 = vector.broadcast %1342 : vector<1x24xf32> to vector<2x24xf32>
    %1345 = arith.mulf %1343, %1344 : vector<2x24xf32>
    %1346 = arith.addf %1340, %1345 : vector<2x24xf32>
    %1347 = vector.extract_strided_slice %1296 {offsets = [0, 0], sizes = [2, 16], strides = [1, 1]} : vector<2x24xf32> to vector<2x16xf32>
    %1348 = vector.extract_strided_slice %1346 {offsets = [0, 0], sizes = [2, 16], strides = [1, 1]} : vector<2x24xf32> to vector<2x16xf32>
    %1349 = arith.addf %1347, %1348 : vector<2x16xf32>
    %1350 = arith.negf %1349 : vector<2x16xf32>
    %1351 = math.exp %1350 : vector<2x16xf32>
    %cst_86 = arith.constant 1.000000e+00 : f32
    %1352 = vector.broadcast %cst_86 : f32 to vector<2x16xf32>
    %1353 = arith.addf %1352, %1351 : vector<2x16xf32>
    %1354 = arith.divf %1352, %1353 : vector<2x16xf32>
    %1355 = vector.extract_strided_slice %1354 {offsets = [0, 0], sizes = [2, 8], strides = [1, 1]} : vector<2x16xf32> to vector<2x8xf32>
    %1356 = vector.extract_strided_slice %1354 {offsets = [0, 8], sizes = [2, 8], strides = [1, 1]} : vector<2x16xf32> to vector<2x8xf32>
    %1357 = vector.extract_strided_slice %1296 {offsets = [0, 16], sizes = [2, 8], strides = [1, 1]} : vector<2x24xf32> to vector<2x8xf32>
    %1358 = vector.extract_strided_slice %1346 {offsets = [0, 16], sizes = [2, 8], strides = [1, 1]} : vector<2x24xf32> to vector<2x8xf32>
    %1359 = arith.mulf %1355, %1358 : vector<2x8xf32>
    %1360 = arith.addf %1357, %1359 : vector<2x8xf32>
    %1361 = math.tanh %1360 : vector<2x8xf32>
    %cst_87 = arith.constant 1.000000e+00 : f32
    %1362 = vector.broadcast %cst_87 : f32 to vector<2x8xf32>
    %1363 = arith.subf %1362, %1356 : vector<2x8xf32>
    %1364 = arith.mulf %1363, %1361 : vector<2x8xf32>
    %1365 = arith.mulf %1356, %1295 : vector<2x8xf32>
    %1366 = arith.addf %1364, %1365 : vector<2x8xf32>
    %1367 = tpu.concatenate %869, %940, %1011, %1082, %1153, %1224, %1295, %1366 in 0 : vector<2x8xf32>, vector<2x8xf32>, vector<2x8xf32>, vector<2x8xf32>, vector<2x8xf32>, vector<2x8xf32>, vector<2x8xf32>, vector<2x8xf32> -> vector<16x8xf32>
    %1368 = vector.extract_strided_slice %307 {offsets = [0, 0], sizes = [16, 4], strides = [1, 1]} : vector<16x13xf32> to vector<16x4xf32>
    %1369 = arith.negf %1368 : vector<16x4xf32>
    %1370 = math.exp %1369 : vector<16x4xf32>
    %cst_88 = arith.constant 1.000000e+00 : f32
    %1371 = vector.broadcast %cst_88 : f32 to vector<16x4xf32>
    %1372 = arith.addf %1371, %1370 : vector<16x4xf32>
    %1373 = arith.divf %1371, %1372 : vector<16x4xf32>
    %1374 = vector.extract_strided_slice %307 {offsets = [0, 4], sizes = [16, 4], strides = [1, 1]} : vector<16x13xf32> to vector<16x4xf32>
    %1375 = vector.extract_strided_slice %307 {offsets = [0, 8], sizes = [16, 4], strides = [1, 1]} : vector<16x13xf32> to vector<16x4xf32>
    %1376 = arith.fptosi %1375 : vector<16x4xf32> to vector<16x4xi32>
    %1377 = vector.extract_strided_slice %307 {offsets = [0, 12], sizes = [16, 1], strides = [1, 1]} : vector<16x13xf32> to vector<16x1xf32>
    %1378 = arith.negf %1377 : vector<16x1xf32>
    %1379 = math.exp %1378 : vector<16x1xf32>
    %cst_89 = arith.constant 1.000000e+00 : f32
    %1380 = vector.broadcast %cst_89 : f32 to vector<16x1xf32>
    %1381 = arith.addf %1380, %1379 : vector<16x1xf32>
    %1382 = arith.divf %1380, %1381 : vector<16x1xf32>
    %cst_90 = arith.constant 1.000000e+01 : f32
    %1383 = vector.broadcast %cst_90 : f32 to vector<16x1xf32>
    %1384 = arith.mulf %1382, %1383 : vector<16x1xf32>
    %cst_91 = arith.constant 0.000000e+00 : f32
    %1385 = vector.broadcast %cst_91 : f32 to vector<16x1xf32>
    %1386 = vector.extract_strided_slice %1373 {offsets = [0, 0], sizes = [16, 1], strides = [1, 1]} : vector<16x4xf32> to vector<16x1xf32>
    %1387 = vector.extract_strided_slice %1374 {offsets = [0, 0], sizes = [16, 1], strides = [1, 1]} : vector<16x4xf32> to vector<16x1xf32>
    %1388 = arith.mulf %1386, %1387 : vector<16x1xf32>
    %1389 = arith.addf %1385, %1388 : vector<16x1xf32>
    %1390 = vector.extract_strided_slice %1373 {offsets = [0, 1], sizes = [16, 1], strides = [1, 1]} : vector<16x4xf32> to vector<16x1xf32>
    %1391 = vector.extract_strided_slice %1374 {offsets = [0, 1], sizes = [16, 1], strides = [1, 1]} : vector<16x4xf32> to vector<16x1xf32>
    %1392 = arith.mulf %1390, %1391 : vector<16x1xf32>
    %1393 = arith.addf %1389, %1392 : vector<16x1xf32>
    %1394 = vector.extract_strided_slice %1373 {offsets = [0, 2], sizes = [16, 1], strides = [1, 1]} : vector<16x4xf32> to vector<16x1xf32>
    %1395 = vector.extract_strided_slice %1374 {offsets = [0, 2], sizes = [16, 1], strides = [1, 1]} : vector<16x4xf32> to vector<16x1xf32>
    %1396 = arith.mulf %1394, %1395 : vector<16x1xf32>
    %1397 = arith.addf %1393, %1396 : vector<16x1xf32>
    %1398 = vector.extract_strided_slice %1373 {offsets = [0, 3], sizes = [16, 1], strides = [1, 1]} : vector<16x4xf32> to vector<16x1xf32>
    %1399 = vector.extract_strided_slice %1374 {offsets = [0, 3], sizes = [16, 1], strides = [1, 1]} : vector<16x4xf32> to vector<16x1xf32>
    %1400 = arith.mulf %1398, %1399 : vector<16x1xf32>
    %1401 = arith.addf %1397, %1400 : vector<16x1xf32>
    %cst_92 = arith.constant 9.99999997E-7 : f32
    %1402 = vector.broadcast %cst_92 : f32 to vector<16x1xf32>
    %1403 = arith.addf %1401, %1402 : vector<16x1xf32>
    %cst_93 = arith.constant 0.000000e+00 : f32
    %1404 = vector.broadcast %cst_93 : f32 to vector<16x1xf32>
    %1405 = vector.extract_strided_slice %1376 {offsets = [0, 0], sizes = [16, 1], strides = [1, 1]} : vector<16x4xi32> to vector<16x1xi32>
    %cst_94 = arith.constant 0.000000e+00 : f32
    %1406 = vector.broadcast %cst_94 : f32 to vector<16x1xf32>
    %c0_i32_95 = arith.constant 0 : i32
    %1407 = vector.broadcast %c0_i32_95 : i32 to vector<16x1xi32>
    %1408 = arith.cmpi eq, %1405, %1407 : vector<16x1xi32>
    %1409 = vector.extract_strided_slice %1367 {offsets = [0, 0], sizes = [16, 1], strides = [1, 1]} : vector<16x8xf32> to vector<16x1xf32>
    %1410 = arith.select %1408, %1409, %1406 : vector<16x1xi1>, vector<16x1xf32>
    %c1_i32_96 = arith.constant 1 : i32
    %1411 = vector.broadcast %c1_i32_96 : i32 to vector<16x1xi32>
    %1412 = arith.cmpi eq, %1405, %1411 : vector<16x1xi32>
    %1413 = vector.extract_strided_slice %1367 {offsets = [0, 1], sizes = [16, 1], strides = [1, 1]} : vector<16x8xf32> to vector<16x1xf32>
    %1414 = arith.select %1412, %1413, %1410 : vector<16x1xi1>, vector<16x1xf32>
    %c2_i32_97 = arith.constant 2 : i32
    %1415 = vector.broadcast %c2_i32_97 : i32 to vector<16x1xi32>
    %1416 = arith.cmpi eq, %1405, %1415 : vector<16x1xi32>
    %1417 = vector.extract_strided_slice %1367 {offsets = [0, 2], sizes = [16, 1], strides = [1, 1]} : vector<16x8xf32> to vector<16x1xf32>
    %1418 = arith.select %1416, %1417, %1414 : vector<16x1xi1>, vector<16x1xf32>
    %c3_i32_98 = arith.constant 3 : i32
    %1419 = vector.broadcast %c3_i32_98 : i32 to vector<16x1xi32>
    %1420 = arith.cmpi eq, %1405, %1419 : vector<16x1xi32>
    %1421 = vector.extract_strided_slice %1367 {offsets = [0, 3], sizes = [16, 1], strides = [1, 1]} : vector<16x8xf32> to vector<16x1xf32>
    %1422 = arith.select %1420, %1421, %1418 : vector<16x1xi1>, vector<16x1xf32>
    %c4_i32_99 = arith.constant 4 : i32
    %1423 = vector.broadcast %c4_i32_99 : i32 to vector<16x1xi32>
    %1424 = arith.cmpi eq, %1405, %1423 : vector<16x1xi32>
    %1425 = vector.extract_strided_slice %1367 {offsets = [0, 4], sizes = [16, 1], strides = [1, 1]} : vector<16x8xf32> to vector<16x1xf32>
    %1426 = arith.select %1424, %1425, %1422 : vector<16x1xi1>, vector<16x1xf32>
    %c5_i32_100 = arith.constant 5 : i32
    %1427 = vector.broadcast %c5_i32_100 : i32 to vector<16x1xi32>
    %1428 = arith.cmpi eq, %1405, %1427 : vector<16x1xi32>
    %1429 = vector.extract_strided_slice %1367 {offsets = [0, 5], sizes = [16, 1], strides = [1, 1]} : vector<16x8xf32> to vector<16x1xf32>
    %1430 = arith.select %1428, %1429, %1426 : vector<16x1xi1>, vector<16x1xf32>
    %c6_i32_101 = arith.constant 6 : i32
    %1431 = vector.broadcast %c6_i32_101 : i32 to vector<16x1xi32>
    %1432 = arith.cmpi eq, %1405, %1431 : vector<16x1xi32>
    %1433 = vector.extract_strided_slice %1367 {offsets = [0, 6], sizes = [16, 1], strides = [1, 1]} : vector<16x8xf32> to vector<16x1xf32>
    %1434 = arith.select %1432, %1433, %1430 : vector<16x1xi1>, vector<16x1xf32>
    %c7_i32_102 = arith.constant 7 : i32
    %1435 = vector.broadcast %c7_i32_102 : i32 to vector<16x1xi32>
    %1436 = arith.cmpi eq, %1405, %1435 : vector<16x1xi32>
    %1437 = vector.extract_strided_slice %1367 {offsets = [0, 7], sizes = [16, 1], strides = [1, 1]} : vector<16x8xf32> to vector<16x1xf32>
    %1438 = arith.select %1436, %1437, %1434 : vector<16x1xi1>, vector<16x1xf32>
    %1439 = arith.negf %1438 : vector<16x1xf32>
    %1440 = math.exp %1439 : vector<16x1xf32>
    %cst_103 = arith.constant 1.000000e+00 : f32
    %1441 = vector.broadcast %cst_103 : f32 to vector<16x1xf32>
    %1442 = arith.addf %1441, %1440 : vector<16x1xf32>
    %1443 = arith.divf %1441, %1442 : vector<16x1xf32>
    %1444 = vector.extract_strided_slice %1373 {offsets = [0, 0], sizes = [16, 1], strides = [1, 1]} : vector<16x4xf32> to vector<16x1xf32>
    %1445 = arith.subf %1443, %1444 : vector<16x1xf32>
    %1446 = vector.extract_strided_slice %1374 {offsets = [0, 0], sizes = [16, 1], strides = [1, 1]} : vector<16x4xf32> to vector<16x1xf32>
    %1447 = arith.mulf %1445, %1446 : vector<16x1xf32>
    %1448 = arith.mulf %1384, %1447 : vector<16x1xf32>
    %1449 = arith.divf %1448, %1403 : vector<16x1xf32>
    %1450 = arith.addf %1404, %1449 : vector<16x1xf32>
    %1451 = vector.extract_strided_slice %1376 {offsets = [0, 1], sizes = [16, 1], strides = [1, 1]} : vector<16x4xi32> to vector<16x1xi32>
    %cst_104 = arith.constant 0.000000e+00 : f32
    %1452 = vector.broadcast %cst_104 : f32 to vector<16x1xf32>
    %c0_i32_105 = arith.constant 0 : i32
    %1453 = vector.broadcast %c0_i32_105 : i32 to vector<16x1xi32>
    %1454 = arith.cmpi eq, %1451, %1453 : vector<16x1xi32>
    %1455 = vector.extract_strided_slice %1367 {offsets = [0, 0], sizes = [16, 1], strides = [1, 1]} : vector<16x8xf32> to vector<16x1xf32>
    %1456 = arith.select %1454, %1455, %1452 : vector<16x1xi1>, vector<16x1xf32>
    %c1_i32_106 = arith.constant 1 : i32
    %1457 = vector.broadcast %c1_i32_106 : i32 to vector<16x1xi32>
    %1458 = arith.cmpi eq, %1451, %1457 : vector<16x1xi32>
    %1459 = vector.extract_strided_slice %1367 {offsets = [0, 1], sizes = [16, 1], strides = [1, 1]} : vector<16x8xf32> to vector<16x1xf32>
    %1460 = arith.select %1458, %1459, %1456 : vector<16x1xi1>, vector<16x1xf32>
    %c2_i32_107 = arith.constant 2 : i32
    %1461 = vector.broadcast %c2_i32_107 : i32 to vector<16x1xi32>
    %1462 = arith.cmpi eq, %1451, %1461 : vector<16x1xi32>
    %1463 = vector.extract_strided_slice %1367 {offsets = [0, 2], sizes = [16, 1], strides = [1, 1]} : vector<16x8xf32> to vector<16x1xf32>
    %1464 = arith.select %1462, %1463, %1460 : vector<16x1xi1>, vector<16x1xf32>
    %c3_i32_108 = arith.constant 3 : i32
    %1465 = vector.broadcast %c3_i32_108 : i32 to vector<16x1xi32>
    %1466 = arith.cmpi eq, %1451, %1465 : vector<16x1xi32>
    %1467 = vector.extract_strided_slice %1367 {offsets = [0, 3], sizes = [16, 1], strides = [1, 1]} : vector<16x8xf32> to vector<16x1xf32>
    %1468 = arith.select %1466, %1467, %1464 : vector<16x1xi1>, vector<16x1xf32>
    %c4_i32_109 = arith.constant 4 : i32
    %1469 = vector.broadcast %c4_i32_109 : i32 to vector<16x1xi32>
    %1470 = arith.cmpi eq, %1451, %1469 : vector<16x1xi32>
    %1471 = vector.extract_strided_slice %1367 {offsets = [0, 4], sizes = [16, 1], strides = [1, 1]} : vector<16x8xf32> to vector<16x1xf32>
    %1472 = arith.select %1470, %1471, %1468 : vector<16x1xi1>, vector<16x1xf32>
    %c5_i32_110 = arith.constant 5 : i32
    %1473 = vector.broadcast %c5_i32_110 : i32 to vector<16x1xi32>
    %1474 = arith.cmpi eq, %1451, %1473 : vector<16x1xi32>
    %1475 = vector.extract_strided_slice %1367 {offsets = [0, 5], sizes = [16, 1], strides = [1, 1]} : vector<16x8xf32> to vector<16x1xf32>
    %1476 = arith.select %1474, %1475, %1472 : vector<16x1xi1>, vector<16x1xf32>
    %c6_i32_111 = arith.constant 6 : i32
    %1477 = vector.broadcast %c6_i32_111 : i32 to vector<16x1xi32>
    %1478 = arith.cmpi eq, %1451, %1477 : vector<16x1xi32>
    %1479 = vector.extract_strided_slice %1367 {offsets = [0, 6], sizes = [16, 1], strides = [1, 1]} : vector<16x8xf32> to vector<16x1xf32>
    %1480 = arith.select %1478, %1479, %1476 : vector<16x1xi1>, vector<16x1xf32>
    %c7_i32_112 = arith.constant 7 : i32
    %1481 = vector.broadcast %c7_i32_112 : i32 to vector<16x1xi32>
    %1482 = arith.cmpi eq, %1451, %1481 : vector<16x1xi32>
    %1483 = vector.extract_strided_slice %1367 {offsets = [0, 7], sizes = [16, 1], strides = [1, 1]} : vector<16x8xf32> to vector<16x1xf32>
    %1484 = arith.select %1482, %1483, %1480 : vector<16x1xi1>, vector<16x1xf32>
    %1485 = arith.negf %1484 : vector<16x1xf32>
    %1486 = math.exp %1485 : vector<16x1xf32>
    %cst_113 = arith.constant 1.000000e+00 : f32
    %1487 = vector.broadcast %cst_113 : f32 to vector<16x1xf32>
    %1488 = arith.addf %1487, %1486 : vector<16x1xf32>
    %1489 = arith.divf %1487, %1488 : vector<16x1xf32>
    %1490 = vector.extract_strided_slice %1373 {offsets = [0, 1], sizes = [16, 1], strides = [1, 1]} : vector<16x4xf32> to vector<16x1xf32>
    %1491 = arith.subf %1489, %1490 : vector<16x1xf32>
    %1492 = vector.extract_strided_slice %1374 {offsets = [0, 1], sizes = [16, 1], strides = [1, 1]} : vector<16x4xf32> to vector<16x1xf32>
    %1493 = arith.mulf %1491, %1492 : vector<16x1xf32>
    %1494 = arith.mulf %1384, %1493 : vector<16x1xf32>
    %1495 = arith.divf %1494, %1403 : vector<16x1xf32>
    %1496 = arith.addf %1450, %1495 : vector<16x1xf32>
    %1497 = vector.extract_strided_slice %1376 {offsets = [0, 2], sizes = [16, 1], strides = [1, 1]} : vector<16x4xi32> to vector<16x1xi32>
    %cst_114 = arith.constant 0.000000e+00 : f32
    %1498 = vector.broadcast %cst_114 : f32 to vector<16x1xf32>
    %c0_i32_115 = arith.constant 0 : i32
    %1499 = vector.broadcast %c0_i32_115 : i32 to vector<16x1xi32>
    %1500 = arith.cmpi eq, %1497, %1499 : vector<16x1xi32>
    %1501 = vector.extract_strided_slice %1367 {offsets = [0, 0], sizes = [16, 1], strides = [1, 1]} : vector<16x8xf32> to vector<16x1xf32>
    %1502 = arith.select %1500, %1501, %1498 : vector<16x1xi1>, vector<16x1xf32>
    %c1_i32_116 = arith.constant 1 : i32
    %1503 = vector.broadcast %c1_i32_116 : i32 to vector<16x1xi32>
    %1504 = arith.cmpi eq, %1497, %1503 : vector<16x1xi32>
    %1505 = vector.extract_strided_slice %1367 {offsets = [0, 1], sizes = [16, 1], strides = [1, 1]} : vector<16x8xf32> to vector<16x1xf32>
    %1506 = arith.select %1504, %1505, %1502 : vector<16x1xi1>, vector<16x1xf32>
    %c2_i32_117 = arith.constant 2 : i32
    %1507 = vector.broadcast %c2_i32_117 : i32 to vector<16x1xi32>
    %1508 = arith.cmpi eq, %1497, %1507 : vector<16x1xi32>
    %1509 = vector.extract_strided_slice %1367 {offsets = [0, 2], sizes = [16, 1], strides = [1, 1]} : vector<16x8xf32> to vector<16x1xf32>
    %1510 = arith.select %1508, %1509, %1506 : vector<16x1xi1>, vector<16x1xf32>
    %c3_i32_118 = arith.constant 3 : i32
    %1511 = vector.broadcast %c3_i32_118 : i32 to vector<16x1xi32>
    %1512 = arith.cmpi eq, %1497, %1511 : vector<16x1xi32>
    %1513 = vector.extract_strided_slice %1367 {offsets = [0, 3], sizes = [16, 1], strides = [1, 1]} : vector<16x8xf32> to vector<16x1xf32>
    %1514 = arith.select %1512, %1513, %1510 : vector<16x1xi1>, vector<16x1xf32>
    %c4_i32_119 = arith.constant 4 : i32
    %1515 = vector.broadcast %c4_i32_119 : i32 to vector<16x1xi32>
    %1516 = arith.cmpi eq, %1497, %1515 : vector<16x1xi32>
    %1517 = vector.extract_strided_slice %1367 {offsets = [0, 4], sizes = [16, 1], strides = [1, 1]} : vector<16x8xf32> to vector<16x1xf32>
    %1518 = arith.select %1516, %1517, %1514 : vector<16x1xi1>, vector<16x1xf32>
    %c5_i32_120 = arith.constant 5 : i32
    %1519 = vector.broadcast %c5_i32_120 : i32 to vector<16x1xi32>
    %1520 = arith.cmpi eq, %1497, %1519 : vector<16x1xi32>
    %1521 = vector.extract_strided_slice %1367 {offsets = [0, 5], sizes = [16, 1], strides = [1, 1]} : vector<16x8xf32> to vector<16x1xf32>
    %1522 = arith.select %1520, %1521, %1518 : vector<16x1xi1>, vector<16x1xf32>
    %c6_i32_121 = arith.constant 6 : i32
    %1523 = vector.broadcast %c6_i32_121 : i32 to vector<16x1xi32>
    %1524 = arith.cmpi eq, %1497, %1523 : vector<16x1xi32>
    %1525 = vector.extract_strided_slice %1367 {offsets = [0, 6], sizes = [16, 1], strides = [1, 1]} : vector<16x8xf32> to vector<16x1xf32>
    %1526 = arith.select %1524, %1525, %1522 : vector<16x1xi1>, vector<16x1xf32>
    %c7_i32_122 = arith.constant 7 : i32
    %1527 = vector.broadcast %c7_i32_122 : i32 to vector<16x1xi32>
    %1528 = arith.cmpi eq, %1497, %1527 : vector<16x1xi32>
    %1529 = vector.extract_strided_slice %1367 {offsets = [0, 7], sizes = [16, 1], strides = [1, 1]} : vector<16x8xf32> to vector<16x1xf32>
    %1530 = arith.select %1528, %1529, %1526 : vector<16x1xi1>, vector<16x1xf32>
    %1531 = arith.negf %1530 : vector<16x1xf32>
    %1532 = math.exp %1531 : vector<16x1xf32>
    %cst_123 = arith.constant 1.000000e+00 : f32
    %1533 = vector.broadcast %cst_123 : f32 to vector<16x1xf32>
    %1534 = arith.addf %1533, %1532 : vector<16x1xf32>
    %1535 = arith.divf %1533, %1534 : vector<16x1xf32>
    %1536 = vector.extract_strided_slice %1373 {offsets = [0, 2], sizes = [16, 1], strides = [1, 1]} : vector<16x4xf32> to vector<16x1xf32>
    %1537 = arith.subf %1535, %1536 : vector<16x1xf32>
    %1538 = vector.extract_strided_slice %1374 {offsets = [0, 2], sizes = [16, 1], strides = [1, 1]} : vector<16x4xf32> to vector<16x1xf32>
    %1539 = arith.mulf %1537, %1538 : vector<16x1xf32>
    %1540 = arith.mulf %1384, %1539 : vector<16x1xf32>
    %1541 = arith.divf %1540, %1403 : vector<16x1xf32>
    %1542 = arith.addf %1496, %1541 : vector<16x1xf32>
    %1543 = vector.extract_strided_slice %1376 {offsets = [0, 3], sizes = [16, 1], strides = [1, 1]} : vector<16x4xi32> to vector<16x1xi32>
    %cst_124 = arith.constant 0.000000e+00 : f32
    %1544 = vector.broadcast %cst_124 : f32 to vector<16x1xf32>
    %c0_i32_125 = arith.constant 0 : i32
    %1545 = vector.broadcast %c0_i32_125 : i32 to vector<16x1xi32>
    %1546 = arith.cmpi eq, %1543, %1545 : vector<16x1xi32>
    %1547 = vector.extract_strided_slice %1367 {offsets = [0, 0], sizes = [16, 1], strides = [1, 1]} : vector<16x8xf32> to vector<16x1xf32>
    %1548 = arith.select %1546, %1547, %1544 : vector<16x1xi1>, vector<16x1xf32>
    %c1_i32_126 = arith.constant 1 : i32
    %1549 = vector.broadcast %c1_i32_126 : i32 to vector<16x1xi32>
    %1550 = arith.cmpi eq, %1543, %1549 : vector<16x1xi32>
    %1551 = vector.extract_strided_slice %1367 {offsets = [0, 1], sizes = [16, 1], strides = [1, 1]} : vector<16x8xf32> to vector<16x1xf32>
    %1552 = arith.select %1550, %1551, %1548 : vector<16x1xi1>, vector<16x1xf32>
    %c2_i32_127 = arith.constant 2 : i32
    %1553 = vector.broadcast %c2_i32_127 : i32 to vector<16x1xi32>
    %1554 = arith.cmpi eq, %1543, %1553 : vector<16x1xi32>
    %1555 = vector.extract_strided_slice %1367 {offsets = [0, 2], sizes = [16, 1], strides = [1, 1]} : vector<16x8xf32> to vector<16x1xf32>
    %1556 = arith.select %1554, %1555, %1552 : vector<16x1xi1>, vector<16x1xf32>
    %c3_i32_128 = arith.constant 3 : i32
    %1557 = vector.broadcast %c3_i32_128 : i32 to vector<16x1xi32>
    %1558 = arith.cmpi eq, %1543, %1557 : vector<16x1xi32>
    %1559 = vector.extract_strided_slice %1367 {offsets = [0, 3], sizes = [16, 1], strides = [1, 1]} : vector<16x8xf32> to vector<16x1xf32>
    %1560 = arith.select %1558, %1559, %1556 : vector<16x1xi1>, vector<16x1xf32>
    %c4_i32_129 = arith.constant 4 : i32
    %1561 = vector.broadcast %c4_i32_129 : i32 to vector<16x1xi32>
    %1562 = arith.cmpi eq, %1543, %1561 : vector<16x1xi32>
    %1563 = vector.extract_strided_slice %1367 {offsets = [0, 4], sizes = [16, 1], strides = [1, 1]} : vector<16x8xf32> to vector<16x1xf32>
    %1564 = arith.select %1562, %1563, %1560 : vector<16x1xi1>, vector<16x1xf32>
    %c5_i32_130 = arith.constant 5 : i32
    %1565 = vector.broadcast %c5_i32_130 : i32 to vector<16x1xi32>
    %1566 = arith.cmpi eq, %1543, %1565 : vector<16x1xi32>
    %1567 = vector.extract_strided_slice %1367 {offsets = [0, 5], sizes = [16, 1], strides = [1, 1]} : vector<16x8xf32> to vector<16x1xf32>
    %1568 = arith.select %1566, %1567, %1564 : vector<16x1xi1>, vector<16x1xf32>
    %c6_i32_131 = arith.constant 6 : i32
    %1569 = vector.broadcast %c6_i32_131 : i32 to vector<16x1xi32>
    %1570 = arith.cmpi eq, %1543, %1569 : vector<16x1xi32>
    %1571 = vector.extract_strided_slice %1367 {offsets = [0, 6], sizes = [16, 1], strides = [1, 1]} : vector<16x8xf32> to vector<16x1xf32>
    %1572 = arith.select %1570, %1571, %1568 : vector<16x1xi1>, vector<16x1xf32>
    %c7_i32_132 = arith.constant 7 : i32
    %1573 = vector.broadcast %c7_i32_132 : i32 to vector<16x1xi32>
    %1574 = arith.cmpi eq, %1543, %1573 : vector<16x1xi32>
    %1575 = vector.extract_strided_slice %1367 {offsets = [0, 7], sizes = [16, 1], strides = [1, 1]} : vector<16x8xf32> to vector<16x1xf32>
    %1576 = arith.select %1574, %1575, %1572 : vector<16x1xi1>, vector<16x1xf32>
    %1577 = arith.negf %1576 : vector<16x1xf32>
    %1578 = math.exp %1577 : vector<16x1xf32>
    %cst_133 = arith.constant 1.000000e+00 : f32
    %1579 = vector.broadcast %cst_133 : f32 to vector<16x1xf32>
    %1580 = arith.addf %1579, %1578 : vector<16x1xf32>
    %1581 = arith.divf %1579, %1580 : vector<16x1xf32>
    %1582 = vector.extract_strided_slice %1373 {offsets = [0, 3], sizes = [16, 1], strides = [1, 1]} : vector<16x4xf32> to vector<16x1xf32>
    %1583 = arith.subf %1581, %1582 : vector<16x1xf32>
    %1584 = vector.extract_strided_slice %1374 {offsets = [0, 3], sizes = [16, 1], strides = [1, 1]} : vector<16x4xf32> to vector<16x1xf32>
    %1585 = arith.mulf %1583, %1584 : vector<16x1xf32>
    %1586 = arith.mulf %1384, %1585 : vector<16x1xf32>
    %1587 = arith.divf %1586, %1403 : vector<16x1xf32>
    %1588 = arith.addf %1542, %1587 : vector<16x1xf32>
    %1589 = arith.negf %1588 : vector<16x1xf32>
    %1590 = math.exp %1589 : vector<16x1xf32>
    %cst_134 = arith.constant 1.000000e+00 : f32
    %1591 = vector.broadcast %cst_134 : f32 to vector<16x1xf32>
    %1592 = arith.addf %1591, %1590 : vector<16x1xf32>
    %1593 = arith.divf %1591, %1592 : vector<16x1xf32>
    %c0_135 = arith.constant 0 : index
    %c0_136 = arith.constant 0 : index
    %1594 = vector.load %arg5[%c0_135, %c0_136] : memref<16x1xf32, #tpu.memory_space<vmem>>, vector<16x1xf32>
    tpu.vector_store %arg5[%c0_135, %c0_136], %1593 {strides = array<i32>} : memref<16x1xf32, #tpu.memory_space<vmem>>, vector<16x1xf32>,
    return
  }
  func.func @transform_0(%arg0: i32) -> (i32, i32) {
    %c0_i32 = arith.constant 0 : i32
    %c0_i32_0 = arith.constant 0 : i32
    %c0_i32_1 = arith.constant 0 : i32
    return %c0_i32, %c0_i32_0 : i32, i32
  }
  func.func @transform_1(%arg0: i32) -> (i32, i32) {
    %c0_i32 = arith.constant 0 : i32
    %c0_i32_0 = arith.constant 0 : i32
    %c0_i32_1 = arith.constant 0 : i32
    return %c0_i32, %c0_i32_0 : i32, i32
  }
  func.func @transform_2(%arg0: i32) -> (i32, i32) {
    %c0_i32 = arith.constant 0 : i32
    %c0_i32_0 = arith.constant 0 : i32
    %c0_i32_1 = arith.constant 0 : i32
    return %c0_i32, %c0_i32_0 : i32, i32
  }
  func.func @transform_3(%arg0: i32) -> (i32, i32) {
    %c0_i32 = arith.constant 0 : i32
    %c0_i32_0 = arith.constant 0 : i32
    %c0_i32_1 = arith.constant 0 : i32
    return %c0_i32, %c0_i32_0 : i32, i32
  }
  func.func @transform_4(%arg0: i32) -> (i32, i32) {
    %c0_i32 = arith.constant 0 : i32
    %c0_i32_0 = arith.constant 0 : i32
    %c0_i32_1 = arith.constant 0 : i32
    return %c0_i32, %c0_i32_0 : i32, i32
  }
}

</mosaic_0001>

<llo_original>
// kernel: idct_forward.1
$region0: #{idct_forward.1}
  #allocation0 [shape = 'u32[]', space=smem, size = 0x4, offset = 0x4, fixed_abs, tag = 'smem constant byte address 0x4 - core index']
  #allocation1 [shape = 'u32[144,128]{1,0:T(1,128)}', space=vmem, size = 0x12000, scoped, tag = 'internal scratch']
  %s0 = inlined_call_operand.vmem [shape: s32[16,3], index: 0, kind: input, shape index: {}]
  %s1 = inlined_call_operand.vmem [shape: f32[20,13], index: 1, kind: input, shape index: {}]
  %s2 = inlined_call_operand.vmem [shape: f32[8,16], index: 2, kind: input, shape index: {}]
  %s3 = inlined_call_operand.vmem [shape: f32[42,24], index: 3, kind: input, shape index: {}]
  %s4 = inlined_call_operand.vmem [shape: f32[16,1], index: 4, kind: output, shape index: {}]
  %s5 = sld [smem:[#allocation0]]
  $region26: #{idct_forward.1} parent=0
    _
  %s7 = ssub.s32 1, %s5
  %s8 = scalar_select 0, %s7, %s5
  // Predicated region
  $region2: #{idct_forward.1} parent=0 // pred_check
    _
  $region3: #{idct_forward.1} parent=0 // pred_check_branch
    %10 = sbr.rel (0) target = $region5
  $region4: #{idct_forward.1} parent=0 // pred_region
    _
  $region5: #{idct_forward.1} parent=0 // pred_fallthru
    _
  // Predicated region
  $region6: #{idct_forward.1} parent=0 // pred_check
    _
  $region7: #{idct_forward.1} parent=0 // pred_check_branch
    %12 = sbr.rel (0) target = $region9
  $region8: #{idct_forward.1} parent=0 // pred_region
    _
  $region9: #{idct_forward.1} parent=0 // pred_fallthru
    _
  // Predicated region
  $region10: #{idct_forward.1} parent=0 // pred_check
    _
  $region11: #{idct_forward.1} parent=0 // pred_check_branch
    %14 = sbr.rel (0) target = $region13
  $region12: #{idct_forward.1} parent=0 // pred_region
    _
  $region13: #{idct_forward.1} parent=0 // pred_fallthru
    _
  // Predicated region
  $region14: #{idct_forward.1} parent=0 // pred_check
    _
  $region15: #{idct_forward.1} parent=0 // pred_check_branch
    %16 = sbr.rel (0) target = $region17
  $region16: #{idct_forward.1} parent=0 // pred_region
    _
  $region17: #{idct_forward.1} parent=0 // pred_fallthru
    _
  %v17 = vld [vmem:[%s0] sm:$0xff]
  %v18 = vld [vmem:[%s0 + $0x8] sm:$0xff]
  %v19 = vcvt.s32.f32 %v17
  %v20 = vcvt.s32.f32 %v18
  %v21 = vld [vmem:[%s1] sm:$0xff]
  %v22 = vld [vmem:[%s1 + $0x8] sm:$0xff]
  %v23 = vld [vmem:[%s1 + $0x10] sm:$0xf]
  %vm24 = vcmp.eq.s32.totalorder %v17, 0
  %vm25 = vcmp.eq.s32.totalorder %v18, 0
  %v26 = vsel %vm24, 1, 0
  %v27 = vsel %vm25, 1, 0
  %28 = vset.pattern.permute.xlu0 0
  %29 = vperm.xlu0 %28, %v26
  %v30 = vpop.permute.xlu0 %29
  %31 = vset.pattern.permute.xlu0 0
  %32 = vperm.xlu0 %31, %v27
  %v33 = vpop.permute.xlu0 %32
  %vm34 = vcmp.eq.s32.totalorder %v30, 1
  %vm35 = vcmp.eq.s32.totalorder %v33, 1
  %v36 = vlaneseq
  %v37 = vshrl.u32 %v36, 7
  %v38 = vsub.s32 0, %v37
  %v39 = vrot.slane %v21, %v38
  %v40 = vsel %vm34, %v39, 0.0
  %v41 = vsel %vm35, %v39, 0.0
  %42 = vset.pattern.permute.xlu0 2
  %43 = vperm.xlu0 %42, %v26
  %v44 = vpop.permute.xlu0 %43
  %45 = vset.pattern.permute.xlu0 2
  %46 = vperm.xlu0 %45, %v27
  %v47 = vpop.permute.xlu0 %46
  %vm48 = vcmp.eq.s32.totalorder %v44, 1
  %vm49 = vcmp.eq.s32.totalorder %v47, 1
  %v50 = vsel %vm48, %v39, 0.0
  %v51 = vsel %vm49, %v39, 0.0
  %vm52 = vcmp.eq.s32.totalorder %v17, 1
  %vm53 = vcmp.eq.s32.totalorder %v18, 1
  %v54 = vsel %vm52, 1, 0
  %v55 = vsel %vm53, 1, 0
  %56 = vset.pattern.permute.xlu0 0
  %57 = vperm.xlu0 %56, %v54
  %v58 = vpop.permute.xlu0 %57
  %59 = vset.pattern.permute.xlu0 0
  %60 = vperm.xlu0 %59, %v55
  %v61 = vpop.permute.xlu0 %60
  %vm62 = vcmp.eq.s32.totalorder %v58, 1
  %vm63 = vcmp.eq.s32.totalorder %v61, 1
  %v64 = vlaneseq
  %v65 = vshrl.u32 %v64, 7
  %v66 = vsub.s32 1, %v65
  %v67 = vrot.slane %v21, %v66
  %v68 = vsel %vm62, %v67, %v40
  %v69 = vsel %vm63, %v67, %v41
  %70 = vset.pattern.permute.xlu0 2
  %71 = vperm.xlu0 %70, %v54
  %v72 = vpop.permute.xlu0 %71
  %73 = vset.pattern.permute.xlu0 2
  %74 = vperm.xlu0 %73, %v55
  %v75 = vpop.permute.xlu0 %74
  %vm76 = vcmp.eq.s32.totalorder %v72, 1
  %vm77 = vcmp.eq.s32.totalorder %v75, 1
  %v78 = vsel %vm76, %v67, %v50
  %v79 = vsel %vm77, %v67, %v51
  %vm80 = vcmp.eq.s32.totalorder %v17, 2
  %vm81 = vcmp.eq.s32.totalorder %v18, 2
  %v82 = vsel %vm80, 1, 0
  %v83 = vsel %vm81, 1, 0
  %84 = vset.pattern.permute.xlu0 0
  %85 = vperm.xlu0 %84, %v82
  %v86 = vpop.permute.xlu0 %85
  %87 = vset.pattern.permute.xlu0 0
  %88 = vperm.xlu0 %87, %v83
  %v89 = vpop.permute.xlu0 %88
  %vm90 = vcmp.eq.s32.totalorder %v86, 1
  %vm91 = vcmp.eq.s32.totalorder %v89, 1
  %v92 = vlaneseq
  %v93 = vshrl.u32 %v92, 7
  %v94 = vsub.s32 2, %v93
  %v95 = vrot.slane %v21, %v94
  %v96 = vsel %vm90, %v95, %v68
  %v97 = vsel %vm91, %v95, %v69
  %98 = vset.pattern.permute.xlu0 2
  %99 = vperm.xlu0 %98, %v82
  %v100 = vpop.permute.xlu0 %99
  %101 = vset.pattern.permute.xlu0 2
  %102 = vperm.xlu0 %101, %v83
  %v103 = vpop.permute.xlu0 %102
  %vm104 = vcmp.eq.s32.totalorder %v100, 1
  %vm105 = vcmp.eq.s32.totalorder %v103, 1
  %v106 = vsel %vm104, %v95, %v78
  %v107 = vsel %vm105, %v95, %v79
  %vm108 = vcmp.eq.s32.totalorder %v17, 3
  %vm109 = vcmp.eq.s32.totalorder %v18, 3
  %v110 = vsel %vm108, 1, 0
  %v111 = vsel %vm109, 1, 0
  %112 = vset.pattern.permute.xlu0 0
  %113 = vperm.xlu0 %112, %v110
  %v114 = vpop.permute.xlu0 %113
  %115 = vset.pattern.permute.xlu0 0
  %116 = vperm.xlu0 %115, %v111
  %v117 = vpop.permute.xlu0 %116
  %vm118 = vcmp.eq.s32.totalorder %v114, 1
  %vm119 = vcmp.eq.s32.totalorder %v117, 1
  %v120 = vlaneseq
  %v121 = vshrl.u32 %v120, 7
  %v122 = vsub.s32 3, %v121
  %v123 = vrot.slane %v21, %v122
  %v124 = vsel %vm118, %v123, %v96
  %v125 = vsel %vm119, %v123, %v97
  %126 = vset.pattern.permute.xlu0 2
  %127 = vperm.xlu0 %126, %v110
  %v128 = vpop.permute.xlu0 %127
  %129 = vset.pattern.permute.xlu0 2
  %130 = vperm.xlu0 %129, %v111
  %v131 = vpop.permute.xlu0 %130
  %vm132 = vcmp.eq.s32.totalorder %v128, 1
  %vm133 = vcmp.eq.s32.totalorder %v131, 1
  %v134 = vsel %vm132, %v123, %v106
  %v135 = vsel %vm133, %v123, %v107
  %vm136 = vcmp.eq.s32.totalorder %v17, 4
  %vm137 = vcmp.eq.s32.totalorder %v18, 4
  %v138 = vsel %vm136, 1, 0
  %v139 = vsel %vm137, 1, 0
  %140 = vset.pattern.permute.xlu0 0
  %141 = vperm.xlu0 %140, %v138
  %v142 = vpop.permute.xlu0 %141
  %143 = vset.pattern.permute.xlu0 0
  %144 = vperm.xlu0 %143, %v139
  %v145 = vpop.permute.xlu0 %144
  %vm146 = vcmp.eq.s32.totalorder %v142, 1
  %vm147 = vcmp.eq.s32.totalorder %v145, 1
  %v148 = vlaneseq
  %v149 = vshrl.u32 %v148, 7
  %v150 = vsub.s32 4, %v149
  %v151 = vrot.slane %v21, %v150
  %v152 = vsel %vm146, %v151, %v124
  %v153 = vsel %vm147, %v151, %v125
  %154 = vset.pattern.permute.xlu0 2
  %155 = vperm.xlu0 %154, %v138
  %v156 = vpop.permute.xlu0 %155
  %157 = vset.pattern.permute.xlu0 2
  %158 = vperm.xlu0 %157, %v139
  %v159 = vpop.permute.xlu0 %158
  %vm160 = vcmp.eq.s32.totalorder %v156, 1
  %vm161 = vcmp.eq.s32.totalorder %v159, 1
  %v162 = vsel %vm160, %v151, %v134
  %v163 = vsel %vm161, %v151, %v135
  %vm164 = vcmp.eq.s32.totalorder %v17, 5
  %vm165 = vcmp.eq.s32.totalorder %v18, 5
  %v166 = vsel %vm164, 1, 0
  %v167 = vsel %vm165, 1, 0
  %168 = vset.pattern.permute.xlu0 0
  %169 = vperm.xlu0 %168, %v166
  %v170 = vpop.permute.xlu0 %169
  %171 = vset.pattern.permute.xlu0 0
  %172 = vperm.xlu0 %171, %v167
  %v173 = vpop.permute.xlu0 %172
  %vm174 = vcmp.eq.s32.totalorder %v170, 1
  %vm175 = vcmp.eq.s32.totalorder %v173, 1
  %v176 = vlaneseq
  %v177 = vshrl.u32 %v176, 7
  %v178 = vsub.s32 5, %v177
  %v179 = vrot.slane %v21, %v178
  %v180 = vsel %vm174, %v179, %v152
  %v181 = vsel %vm175, %v179, %v153
  %182 = vset.pattern.permute.xlu0 2
  %183 = vperm.xlu0 %182, %v166
  %v184 = vpop.permute.xlu0 %183
  %185 = vset.pattern.permute.xlu0 2
  %186 = vperm.xlu0 %185, %v167
  %v187 = vpop.permute.xlu0 %186
  %vm188 = vcmp.eq.s32.totalorder %v184, 1
  %vm189 = vcmp.eq.s32.totalorder %v187, 1
  %v190 = vsel %vm188, %v179, %v162
  %v191 = vsel %vm189, %v179, %v163
  %vm192 = vcmp.eq.s32.totalorder %v17, 6
  %vm193 = vcmp.eq.s32.totalorder %v18, 6
  %v194 = vsel %vm192, 1, 0
  %v195 = vsel %vm193, 1, 0
  %196 = vset.pattern.permute.xlu0 0
  %197 = vperm.xlu0 %196, %v194
  %v198 = vpop.permute.xlu0 %197
  %199 = vset.pattern.permute.xlu0 0
  %200 = vperm.xlu0 %199, %v195
  %v201 = vpop.permute.xlu0 %200
  %vm202 = vcmp.eq.s32.totalorder %v198, 1
  %vm203 = vcmp.eq.s32.totalorder %v201, 1
  %v204 = vlaneseq
  %v205 = vshrl.u32 %v204, 7
  %v206 = vsub.s32 6, %v205
  %v207 = vrot.slane %v21, %v206
  %v208 = vsel %vm202, %v207, %v180
  %v209 = vsel %vm203, %v207, %v181
  %210 = vset.pattern.permute.xlu0 2
  %211 = vperm.xlu0 %210, %v194
  %v212 = vpop.permute.xlu0 %211
  %213 = vset.pattern.permute.xlu0 2
  %214 = vperm.xlu0 %213, %v195
  %v215 = vpop.permute.xlu0 %214
  %vm216 = vcmp.eq.s32.totalorder %v212, 1
  %vm217 = vcmp.eq.s32.totalorder %v215, 1
  %v218 = vsel %vm216, %v207, %v190
  %v219 = vsel %vm217, %v207, %v191
  %vm220 = vcmp.eq.s32.totalorder %v17, 7
  %vm221 = vcmp.eq.s32.totalorder %v18, 7
  %v222 = vsel %vm220, 1, 0
  %v223 = vsel %vm221, 1, 0
  %224 = vset.pattern.permute.xlu0 0
  %225 = vperm.xlu0 %224, %v222
  %v226 = vpop.permute.xlu0 %225
  %227 = vset.pattern.permute.xlu0 0
  %228 = vperm.xlu0 %227, %v223
  %v229 = vpop.permute.xlu0 %228
  %vm230 = vcmp.eq.s32.totalorder %v226, 1
  %vm231 = vcmp.eq.s32.totalorder %v229, 1
  %v232 = vlaneseq
  %v233 = vshrl.u32 %v232, 7
  %v234 = vsub.s32 7, %v233
  %v235 = vrot.slane %v21, %v234
  %v236 = vsel %vm230, %v235, %v208
  %v237 = vsel %vm231, %v235, %v209
  %238 = vset.pattern.permute.xlu0 2
  %239 = vperm.xlu0 %238, %v222
  %v240 = vpop.permute.xlu0 %239
  %241 = vset.pattern.permute.xlu0 2
  %242 = vperm.xlu0 %241, %v223
  %v243 = vpop.permute.xlu0 %242
  %vm244 = vcmp.eq.s32.totalorder %v240, 1
  %vm245 = vcmp.eq.s32.totalorder %v243, 1
  %v246 = vsel %vm244, %v235, %v218
  %v247 = vsel %vm245, %v235, %v219
  %vm248 = vcmp.eq.s32.totalorder %v17, 8
  %vm249 = vcmp.eq.s32.totalorder %v18, 8
  %v250 = vsel %vm248, 1, 0
  %v251 = vsel %vm249, 1, 0
  %252 = vset.pattern.permute.xlu0 0
  %253 = vperm.xlu0 %252, %v250
  %v254 = vpop.permute.xlu0 %253
  %255 = vset.pattern.permute.xlu0 0
  %256 = vperm.xlu0 %255, %v251
  %v257 = vpop.permute.xlu0 %256
  %vm258 = vcmp.eq.s32.totalorder %v254, 1
  %vm259 = vcmp.eq.s32.totalorder %v257, 1
  %v260 = vlaneseq
  %v261 = vshrl.u32 %v260, 7
  %v262 = vsub.s32 0, %v261
  %v263 = vrot.slane %v22, %v262
  %v264 = vsel %vm258, %v263, %v236
  %v265 = vsel %vm259, %v263, %v237
  %266 = vset.pattern.permute.xlu0 2
  %267 = vperm.xlu0 %266, %v250
  %v268 = vpop.permute.xlu0 %267
  %269 = vset.pattern.permute.xlu0 2
  %270 = vperm.xlu0 %269, %v251
  %v271 = vpop.permute.xlu0 %270
  %vm272 = vcmp.eq.s32.totalorder %v268, 1
  %vm273 = vcmp.eq.s32.totalorder %v271, 1
  %v274 = vsel %vm272, %v263, %v246
  %v275 = vsel %vm273, %v263, %v247
  %vm276 = vcmp.eq.s32.totalorder %v17, 9
  %vm277 = vcmp.eq.s32.totalorder %v18, 9
  %v278 = vsel %vm276, 1, 0
  %v279 = vsel %vm277, 1, 0
  %280 = vset.pattern.permute.xlu0 0
  %281 = vperm.xlu0 %280, %v278
  %v282 = vpop.permute.xlu0 %281
  %283 = vset.pattern.permute.xlu0 0
  %284 = vperm.xlu0 %283, %v279
  %v285 = vpop.permute.xlu0 %284
  %vm286 = vcmp.eq.s32.totalorder %v282, 1
  %vm287 = vcmp.eq.s32.totalorder %v285, 1
  %v288 = vlaneseq
  %v289 = vshrl.u32 %v288, 7
  %v290 = vsub.s32 1, %v289
  %v291 = vrot.slane %v22, %v290
  %v292 = vsel %vm286, %v291, %v264
  %v293 = vsel %vm287, %v291, %v265
  %294 = vset.pattern.permute.xlu0 2
  %295 = vperm.xlu0 %294, %v278
  %v296 = vpop.permute.xlu0 %295
  %297 = vset.pattern.permute.xlu0 2
  %298 = vperm.xlu0 %297, %v279
  %v299 = vpop.permute.xlu0 %298
  %vm300 = vcmp.eq.s32.totalorder %v296, 1
  %vm301 = vcmp.eq.s32.totalorder %v299, 1
  %v302 = vsel %vm300, %v291, %v274
  %v303 = vsel %vm301, %v291, %v275
  %vm304 = vcmp.eq.s32.totalorder %v17, 10
  %vm305 = vcmp.eq.s32.totalorder %v18, 10
  %v306 = vsel %vm304, 1, 0
  %v307 = vsel %vm305, 1, 0
  %308 = vset.pattern.permute.xlu0 0
  %309 = vperm.xlu0 %308, %v306
  %v310 = vpop.permute.xlu0 %309
  %311 = vset.pattern.permute.xlu0 0
  %312 = vperm.xlu0 %311, %v307
  %v313 = vpop.permute.xlu0 %312
  %vm314 = vcmp.eq.s32.totalorder %v310, 1
  %vm315 = vcmp.eq.s32.totalorder %v313, 1
  %v316 = vlaneseq
  %v317 = vshrl.u32 %v316, 7
  %v318 = vsub.s32 2, %v317
  %v319 = vrot.slane %v22, %v318
  %v320 = vsel %vm314, %v319, %v292
  %v321 = vsel %vm315, %v319, %v293
  %322 = vset.pattern.permute.xlu0 2
  %323 = vperm.xlu0 %322, %v306
  %v324 = vpop.permute.xlu0 %323
  %325 = vset.pattern.permute.xlu0 2
  %326 = vperm.xlu0 %325, %v307
  %v327 = vpop.permute.xlu0 %326
  %vm328 = vcmp.eq.s32.totalorder %v324, 1
  %vm329 = vcmp.eq.s32.totalorder %v327, 1
  %v330 = vsel %vm328, %v319, %v302
  %v331 = vsel %vm329, %v319, %v303
  %vm332 = vcmp.eq.s32.totalorder %v17, 11
  %vm333 = vcmp.eq.s32.totalorder %v18, 11
  %v334 = vsel %vm332, 1, 0
  %v335 = vsel %vm333, 1, 0
  %336 = vset.pattern.permute.xlu0 0
  %337 = vperm.xlu0 %336, %v334
  %v338 = vpop.permute.xlu0 %337
  %339 = vset.pattern.permute.xlu0 0
  %340 = vperm.xlu0 %339, %v335
  %v341 = vpop.permute.xlu0 %340
  %vm342 = vcmp.eq.s32.totalorder %v338, 1
  %vm343 = vcmp.eq.s32.totalorder %v341, 1
  %v344 = vlaneseq
  %v345 = vshrl.u32 %v344, 7
  %v346 = vsub.s32 3, %v345
  %v347 = vrot.slane %v22, %v346
  %v348 = vsel %vm342, %v347, %v320
  %v349 = vsel %vm343, %v347, %v321
  %350 = vset.pattern.permute.xlu0 2
  %351 = vperm.xlu0 %350, %v334
  %v352 = vpop.permute.xlu0 %351
  %353 = vset.pattern.permute.xlu0 2
  %354 = vperm.xlu0 %353, %v335
  %v355 = vpop.permute.xlu0 %354
  %vm356 = vcmp.eq.s32.totalorder %v352, 1
  %vm357 = vcmp.eq.s32.totalorder %v355, 1
  %v358 = vsel %vm356, %v347, %v330
  %v359 = vsel %vm357, %v347, %v331
  %vm360 = vcmp.eq.s32.totalorder %v17, 12
  %vm361 = vcmp.eq.s32.totalorder %v18, 12
  %v362 = vsel %vm360, 1, 0
  %v363 = vsel %vm361, 1, 0
  %364 = vset.pattern.permute.xlu0 0
  %365 = vperm.xlu0 %364, %v362
  %v366 = vpop.permute.xlu0 %365
  %367 = vset.pattern.permute.xlu0 0
  %368 = vperm.xlu0 %367, %v363
  %v369 = vpop.permute.xlu0 %368
  %vm370 = vcmp.eq.s32.totalorder %v366, 1
  %vm371 = vcmp.eq.s32.totalorder %v369, 1
  %v372 = vlaneseq
  %v373 = vshrl.u32 %v372, 7
  %v374 = vsub.s32 4, %v373
  %v375 = vrot.slane %v22, %v374
  %v376 = vsel %vm370, %v375, %v348
  %v377 = vsel %vm371, %v375, %v349
  %378 = vset.pattern.permute.xlu0 2
  %379 = vperm.xlu0 %378, %v362
  %v380 = vpop.permute.xlu0 %379
  %381 = vset.pattern.permute.xlu0 2
  %382 = vperm.xlu0 %381, %v363
  %v383 = vpop.permute.xlu0 %382
  %vm384 = vcmp.eq.s32.totalorder %v380, 1
  %vm385 = vcmp.eq.s32.totalorder %v383, 1
  %v386 = vsel %vm384, %v375, %v358
  %v387 = vsel %vm385, %v375, %v359
  %vm388 = vcmp.eq.s32.totalorder %v17, 13
  %vm389 = vcmp.eq.s32.totalorder %v18, 13
  %v390 = vsel %vm388, 1, 0
  %v391 = vsel %vm389, 1, 0
  %392 = vset.pattern.permute.xlu0 0
  %393 = vperm.xlu0 %392, %v390
  %v394 = vpop.permute.xlu0 %393
  %395 = vset.pattern.permute.xlu0 0
  %396 = vperm.xlu0 %395, %v391
  %v397 = vpop.permute.xlu0 %396
  %vm398 = vcmp.eq.s32.totalorder %v394, 1
  %vm399 = vcmp.eq.s32.totalorder %v397, 1
  %v400 = vlaneseq
  %v401 = vshrl.u32 %v400, 7
  %v402 = vsub.s32 5, %v401
  %v403 = vrot.slane %v22, %v402
  %v404 = vsel %vm398, %v403, %v376
  %v405 = vsel %vm399, %v403, %v377
  %406 = vset.pattern.permute.xlu0 2
  %407 = vperm.xlu0 %406, %v390
  %v408 = vpop.permute.xlu0 %407
  %409 = vset.pattern.permute.xlu0 2
  %410 = vperm.xlu0 %409, %v391
  %v411 = vpop.permute.xlu0 %410
  %vm412 = vcmp.eq.s32.totalorder %v408, 1
  %vm413 = vcmp.eq.s32.totalorder %v411, 1
  %v414 = vsel %vm412, %v403, %v386
  %v415 = vsel %vm413, %v403, %v387
  %vm416 = vcmp.eq.s32.totalorder %v17, 14
  %vm417 = vcmp.eq.s32.totalorder %v18, 14
  %v418 = vsel %vm416, 1, 0
  %v419 = vsel %vm417, 1, 0
  %420 = vset.pattern.permute.xlu0 0
  %421 = vperm.xlu0 %420, %v418
  %v422 = vpop.permute.xlu0 %421
  %423 = vset.pattern.permute.xlu0 0
  %424 = vperm.xlu0 %423, %v419
  %v425 = vpop.permute.xlu0 %424
  %vm426 = vcmp.eq.s32.totalorder %v422, 1
  %vm427 = vcmp.eq.s32.totalorder %v425, 1
  %v428 = vlaneseq
  %v429 = vshrl.u32 %v428, 7
  %v430 = vsub.s32 6, %v429
  %v431 = vrot.slane %v22, %v430
  %v432 = vsel %vm426, %v431, %v404
  %v433 = vsel %vm427, %v431, %v405
  %434 = vset.pattern.permute.xlu0 2
  %435 = vperm.xlu0 %434, %v418
  %v436 = vpop.permute.xlu0 %435
  %437 = vset.pattern.permute.xlu0 2
  %438 = vperm.xlu0 %437, %v419
  %v439 = vpop.permute.xlu0 %438
  %vm440 = vcmp.eq.s32.totalorder %v436, 1
  %vm441 = vcmp.eq.s32.totalorder %v439, 1
  %v442 = vsel %vm440, %v431, %v414
  %v443 = vsel %vm441, %v431, %v415
  %vm444 = vcmp.eq.s32.totalorder %v17, 15
  %vm445 = vcmp.eq.s32.totalorder %v18, 15
  %v446 = vsel %vm444, 1, 0
  %v447 = vsel %vm445, 1, 0
  %448 = vset.pattern.permute.xlu0 0
  %449 = vperm.xlu0 %448, %v446
  %v450 = vpop.permute.xlu0 %449
  %451 = vset.pattern.permute.xlu0 0
  %452 = vperm.xlu0 %451, %v447
  %v453 = vpop.permute.xlu0 %452
  %vm454 = vcmp.eq.s32.totalorder %v450, 1
  %vm455 = vcmp.eq.s32.totalorder %v453, 1
  %v456 = vlaneseq
  %v457 = vshrl.u32 %v456, 7
  %v458 = vsub.s32 7, %v457
  %v459 = vrot.slane %v22, %v458
  %v460 = vsel %vm454, %v459, %v432
  %v461 = vsel %vm455, %v459, %v433
  %462 = vset.pattern.permute.xlu0 2
  %463 = vperm.xlu0 %462, %v446
  %v464 = vpop.permute.xlu0 %463
  %465 = vset.pattern.permute.xlu0 2
  %466 = vperm.xlu0 %465, %v447
  %v467 = vpop.permute.xlu0 %466
  %vm468 = vcmp.eq.s32.totalorder %v464, 1
  %vm469 = vcmp.eq.s32.totalorder %v467, 1
  %v470 = vsel %vm468, %v459, %v442
  %v471 = vsel %vm469, %v459, %v443
  %vm472 = vcmp.eq.s32.totalorder %v17, 16
  %vm473 = vcmp.eq.s32.totalorder %v18, 16
  %v474 = vsel %vm472, 1, 0
  %v475 = vsel %vm473, 1, 0
  %476 = vset.pattern.permute.xlu0 0
  %477 = vperm.xlu0 %476, %v474
  %v478 = vpop.permute.xlu0 %477
  %479 = vset.pattern.permute.xlu0 0
  %480 = vperm.xlu0 %479, %v475
  %v481 = vpop.permute.xlu0 %480
  %vm482 = vcmp.eq.s32.totalorder %v478, 1
  %vm483 = vcmp.eq.s32.totalorder %v481, 1
  %v484 = vlaneseq
  %v485 = vshrl.u32 %v484, 7
  %v486 = vsub.s32 0, %v485
  %v487 = vrot.slane %v23, %v486
  %v488 = vsel %vm482, %v487, %v460
  %v489 = vsel %vm483, %v487, %v461
  %490 = vset.pattern.permute.xlu0 2
  %491 = vperm.xlu0 %490, %v474
  %v492 = vpop.permute.xlu0 %491
  %493 = vset.pattern.permute.xlu0 2
  %494 = vperm.xlu0 %493, %v475
  %v495 = vpop.permute.xlu0 %494
  %vm496 = vcmp.eq.s32.totalorder %v492, 1
  %vm497 = vcmp.eq.s32.totalorder %v495, 1
  %v498 = vsel %vm496, %v487, %v470
  %v499 = vsel %vm497, %v487, %v471
  %vm500 = vcmp.eq.s32.totalorder %v17, 17
  %vm501 = vcmp.eq.s32.totalorder %v18, 17
  %v502 = vsel %vm500, 1, 0
  %v503 = vsel %vm501, 1, 0
  %504 = vset.pattern.permute.xlu0 0
  %505 = vperm.xlu0 %504, %v502
  %v506 = vpop.permute.xlu0 %505
  %507 = vset.pattern.permute.xlu0 0
  %508 = vperm.xlu0 %507, %v503
  %v509 = vpop.permute.xlu0 %508
  %vm510 = vcmp.eq.s32.totalorder %v506, 1
  %vm511 = vcmp.eq.s32.totalorder %v509, 1
  %v512 = vlaneseq
  %v513 = vshrl.u32 %v512, 7
  %v514 = vsub.s32 1, %v513
  %v515 = vrot.slane %v23, %v514
  %v516 = vsel %vm510, %v515, %v488
  %v517 = vsel %vm511, %v515, %v489
  %518 = vset.pattern.permute.xlu0 2
  %519 = vperm.xlu0 %518, %v502
  %v520 = vpop.permute.xlu0 %519
  %521 = vset.pattern.permute.xlu0 2
  %522 = vperm.xlu0 %521, %v503
  %v523 = vpop.permute.xlu0 %522
  %vm524 = vcmp.eq.s32.totalorder %v520, 1
  %vm525 = vcmp.eq.s32.totalorder %v523, 1
  %v526 = vsel %vm524, %v515, %v498
  %v527 = vsel %vm525, %v515, %v499
  %vm528 = vcmp.eq.s32.totalorder %v17, 18
  %vm529 = vcmp.eq.s32.totalorder %v18, 18
  %v530 = vsel %vm528, 1, 0
  %v531 = vsel %vm529, 1, 0
  %532 = vset.pattern.permute.xlu0 0
  %533 = vperm.xlu0 %532, %v530
  %v534 = vpop.permute.xlu0 %533
  %535 = vset.pattern.permute.xlu0 0
  %536 = vperm.xlu0 %535, %v531
  %v537 = vpop.permute.xlu0 %536
  %vm538 = vcmp.eq.s32.totalorder %v534, 1
  %vm539 = vcmp.eq.s32.totalorder %v537, 1
  %v540 = vlaneseq
  %v541 = vshrl.u32 %v540, 7
  %v542 = vsub.s32 2, %v541
  %v543 = vrot.slane %v23, %v542
  %v544 = vsel %vm538, %v543, %v516
  %v545 = vsel %vm539, %v543, %v517
  %546 = vset.pattern.permute.xlu0 2
  %547 = vperm.xlu0 %546, %v530
  %v548 = vpop.permute.xlu0 %547
  %549 = vset.pattern.permute.xlu0 2
  %550 = vperm.xlu0 %549, %v531
  %v551 = vpop.permute.xlu0 %550
  %vm552 = vcmp.eq.s32.totalorder %v548, 1
  %vm553 = vcmp.eq.s32.totalorder %v551, 1
  %v554 = vsel %vm552, %v543, %v526
  %v555 = vsel %vm553, %v543, %v527
  %vm556 = vcmp.eq.s32.totalorder %v17, 19
  %vm557 = vcmp.eq.s32.totalorder %v18, 19
  %v558 = vsel %vm556, 1, 0
  %v559 = vsel %vm557, 1, 0
  %560 = vset.pattern.permute.xlu0 0
  %561 = vperm.xlu0 %560, %v558
  %v562 = vpop.permute.xlu0 %561
  %563 = vset.pattern.permute.xlu0 0
  %564 = vperm.xlu0 %563, %v559
  %v565 = vpop.permute.xlu0 %564
  %vm566 = vcmp.eq.s32.totalorder %v562, 1
  %vm567 = vcmp.eq.s32.totalorder %v565, 1
  %v568 = vlaneseq
  %v569 = vshrl.u32 %v568, 7
  %v570 = vsub.s32 3, %v569
  %v571 = vrot.slane %v23, %v570
  %v572 = vsel %vm566, %v571, %v544
  %v573 = vsel %vm567, %v571, %v545
  %574 = vset.pattern.permute.xlu0 2
  %575 = vperm.xlu0 %574, %v558
  %v576 = vpop.permute.xlu0 %575
  %577 = vset.pattern.permute.xlu0 2
  %578 = vperm.xlu0 %577, %v559
  %v579 = vpop.permute.xlu0 %578
  %vm580 = vcmp.eq.s32.totalorder %v576, 1
  %vm581 = vcmp.eq.s32.totalorder %v579, 1
  %v582 = vsel %vm580, %v571, %v554
  %v583 = vsel %vm581, %v571, %v555
  %v584 = vxor.u32 %v572, 2147483648
  %v585 = vxor.u32 %v573, 2147483648
  %v586 = vmul.f32 %v584, 1.442695
  %v587 = vpow.pop %v586
  %v588 = vmul.f32 %v585, 1.442695
  %v589 = vpow.pop %v588
  %v590 = vadd.f32 %v587, 1.0
  %v591 = vadd.f32 %v589, 1.0
  %v592 = vrcp.pop %v590
  %v593 = vmul.f32 1.0, %v592
  %v594 = vrcp.pop %v591
  %v595 = vmul.f32 1.0, %v594
  %v596 = vcvt.f32.s32.to.zero.pseudo %v572
  %v597 = vcvt.f32.s32.to.zero.pseudo %v573
  %v598 = vld [vmem:[%s2] sm:$0xff]
  %601 = vrot.lane.b32.xlu0 %v572, 124
  %v602 = vpop.permute.xlu0 %601
  %603 = vrot.lane.b32.xlu0 %v573, 124
  %v604 = vpop.permute.xlu0 %603
  %v607 = vmul.f32 %v593, %v602
  %v608 = vmul.f32 %v595, %v604
  %v609 = vadd.f32 %v607, 0.0
  %v610 = vadd.f32 %v608, 0.0
  %vm611 = vcmp.eq.s32.totalorder %v596, 0
  %vm612 = vcmp.eq.s32.totalorder %v597, 0
  %v613 = vsel %vm611, 1, 0
  %v614 = vsel %vm612, 1, 0
  %615 = vset.pattern.permute.xlu0 8
  %616 = vperm.xlu0 %615, %v613
  %v617 = vpop.permute.xlu0 %616
  %618 = vset.pattern.permute.xlu0 8
  %619 = vperm.xlu0 %618, %v614
  %v620 = vpop.permute.xlu0 %619
  %vm621 = vcmp.eq.s32.totalorder %v617, 1
  %vm622 = vcmp.eq.s32.totalorder %v620, 1
  %v623 = vlaneseq
  %v624 = vshrl.u32 %v623, 7
  %v625 = vsub.s32 0, %v624
  %v626 = vrot.slane %v598, %v625
  %v627 = vsel %vm621, %v626, 0.0
  %v628 = vsel %vm622, %v626, 0.0
  %vm629 = vcmp.eq.s32.totalorder %v596, 1
  %vm630 = vcmp.eq.s32.totalorder %v597, 1
  %v631 = vsel %vm629, 1, 0
  %v632 = vsel %vm630, 1, 0
  %633 = vset.pattern.permute.xlu0 8
  %634 = vperm.xlu0 %633, %v631
  %v635 = vpop.permute.xlu0 %634
  %636 = vset.pattern.permute.xlu0 8
  %637 = vperm.xlu0 %636, %v632
  %v638 = vpop.permute.xlu0 %637
  %vm639 = vcmp.eq.s32.totalorder %v635, 1
  %vm640 = vcmp.eq.s32.totalorder %v638, 1
  %v641 = vlaneseq
  %v642 = vshrl.u32 %v641, 7
  %v643 = vsub.s32 1, %v642
  %v644 = vrot.slane %v598, %v643
  %v645 = vsel %vm639, %v644, %v627
  %v646 = vsel %vm640, %v644, %v628
  %vm647 = vcmp.eq.s32.totalorder %v596, 2
  %vm648 = vcmp.eq.s32.totalorder %v597, 2
  %v649 = vsel %vm647, 1, 0
  %v650 = vsel %vm648, 1, 0
  %651 = vset.pattern.permute.xlu0 8
  %652 = vperm.xlu0 %651, %v649
  %v653 = vpop.permute.xlu0 %652
  %654 = vset.pattern.permute.xlu0 8
  %655 = vperm.xlu0 %654, %v650
  %v656 = vpop.permute.xlu0 %655
  %vm657 = vcmp.eq.s32.totalorder %v653, 1
  %vm658 = vcmp.eq.s32.totalorder %v656, 1
  %v659 = vlaneseq
  %v660 = vshrl.u32 %v659, 7
  %v661 = vsub.s32 2, %v660
  %v662 = vrot.slane %v598, %v661
  %v663 = vsel %vm657, %v662, %v645
  %v664 = vsel %vm658, %v662, %v646
  %vm665 = vcmp.eq.s32.totalorder %v596, 3
  %vm666 = vcmp.eq.s32.totalorder %v597, 3
  %v667 = vsel %vm665, 1, 0
  %v668 = vsel %vm666, 1, 0
  %669 = vset.pattern.permute.xlu0 8
  %670 = vperm.xlu0 %669, %v667
  %v671 = vpop.permute.xlu0 %670
  %672 = vset.pattern.permute.xlu0 8
  %673 = vperm.xlu0 %672, %v668
  %v674 = vpop.permute.xlu0 %673
  %vm675 = vcmp.eq.s32.totalorder %v671, 1
  %vm676 = vcmp.eq.s32.totalorder %v674, 1
  %v677 = vlaneseq
  %v678 = vshrl.u32 %v677, 7
  %v679 = vsub.s32 3, %v678
  %v680 = vrot.slane %v598, %v679
  %v681 = vsel %vm675, %v680, %v663
  %v682 = vsel %vm676, %v680, %v664
  %vm683 = vcmp.eq.s32.totalorder %v596, 4
  %vm684 = vcmp.eq.s32.totalorder %v597, 4
  %v685 = vsel %vm683, 1, 0
  %v686 = vsel %vm684, 1, 0
  %687 = vset.pattern.permute.xlu0 8
  %688 = vperm.xlu0 %687, %v685
  %v689 = vpop.permute.xlu0 %688
  %690 = vset.pattern.permute.xlu0 8
  %691 = vperm.xlu0 %690, %v686
  %v692 = vpop.permute.xlu0 %691
  %vm693 = vcmp.eq.s32.totalorder %v689, 1
  %vm694 = vcmp.eq.s32.totalorder %v692, 1
  %v695 = vlaneseq
  %v696 = vshrl.u32 %v695, 7
  %v697 = vsub.s32 4, %v696
  %v698 = vrot.slane %v598, %v697
  %v699 = vsel %vm693, %v698, %v681
  %v700 = vsel %vm694, %v698, %v682
  %vm701 = vcmp.eq.s32.totalorder %v596, 5
  %vm702 = vcmp.eq.s32.totalorder %v597, 5
  %v703 = vsel %vm701, 1, 0
  %v704 = vsel %vm702, 1, 0
  %705 = vset.pattern.permute.xlu0 8
  %706 = vperm.xlu0 %705, %v703
  %v707 = vpop.permute.xlu0 %706
  %708 = vset.pattern.permute.xlu0 8
  %709 = vperm.xlu0 %708, %v704
  %v710 = vpop.permute.xlu0 %709
  %vm711 = vcmp.eq.s32.totalorder %v707, 1
  %vm712 = vcmp.eq.s32.totalorder %v710, 1
  %v713 = vlaneseq
  %v714 = vshrl.u32 %v713, 7
  %v715 = vsub.s32 5, %v714
  %v716 = vrot.slane %v598, %v715
  %v717 = vsel %vm711, %v716, %v699
  %v718 = vsel %vm712, %v716, %v700
  %vm719 = vcmp.eq.s32.totalorder %v596, 6
  %vm720 = vcmp.eq.s32.totalorder %v597, 6
  %v721 = vsel %vm719, 1, 0
  %v722 = vsel %vm720, 1, 0
  %723 = vset.pattern.permute.xlu0 8
  %724 = vperm.xlu0 %723, %v721
  %v725 = vpop.permute.xlu0 %724
  %726 = vset.pattern.permute.xlu0 8
  %727 = vperm.xlu0 %726, %v722
  %v728 = vpop.permute.xlu0 %727
  %vm729 = vcmp.eq.s32.totalorder %v725, 1
  %vm730 = vcmp.eq.s32.totalorder %v728, 1
  %v731 = vlaneseq
  %v732 = vshrl.u32 %v731, 7
  %v733 = vsub.s32 6, %v732
  %v734 = vrot.slane %v598, %v733
  %v735 = vsel %vm729, %v734, %v717
  %v736 = vsel %vm730, %v734, %v718
  %vm737 = vcmp.eq.s32.totalorder %v596, 7
  %vm738 = vcmp.eq.s32.totalorder %v597, 7
  %v739 = vsel %vm737, 1, 0
  %v740 = vsel %vm738, 1, 0
  %741 = vset.pattern.permute.xlu0 8
  %742 = vperm.xlu0 %741, %v739
  %v743 = vpop.permute.xlu0 %742
  %744 = vset.pattern.permute.xlu0 8
  %745 = vperm.xlu0 %744, %v740
  %v746 = vpop.permute.xlu0 %745
  %vm747 = vcmp.eq.s32.totalorder %v743, 1
  %vm748 = vcmp.eq.s32.totalorder %v746, 1
  %v749 = vlaneseq
  %v750 = vshrl.u32 %v749, 7
  %v751 = vsub.s32 7, %v750
  %v752 = vrot.slane %v598, %v751
  %v753 = vsel %vm747, %v752, %v735
  %v754 = vsel %vm748, %v752, %v736
  %756 = vset.pattern.permute.xlu0 0
  %757 = vperm.xlu0 %756, %v607
  %v758 = vpop.permute.xlu0 %757
  %761 = vset.pattern.permute.xlu0 0
  %762 = vperm.xlu0 %761, %v608
  %v763 = vpop.permute.xlu0 %762
  %v765 = vmul.f32 %v758, %v753
  %v766 = vmul.f32 %v763, %v754
  %v767 = vadd.f32 %v765, 0.0
  %v768 = vadd.f32 %v766, 0.0
  %769 = vrot.lane.b32.xlu0 %v607, 127
  %v770 = vpop.permute.xlu0 %769
  %771 = vrot.lane.b32.xlu0 %v608, 127
  %v772 = vpop.permute.xlu0 %771
  %v775 = vadd.f32 %v609, %v770
  %v776 = vadd.f32 %v610, %v772
  %777 = vset.pattern.permute.xlu0 9
  %778 = vperm.xlu0 %777, %v613
  %v779 = vpop.permute.xlu0 %778
  %780 = vset.pattern.permute.xlu0 9
  %781 = vperm.xlu0 %780, %v614
  %v782 = vpop.permute.xlu0 %781
  %vm783 = vcmp.eq.s32.totalorder %v779, 1
  %vm784 = vcmp.eq.s32.totalorder %v782, 1
  %v785 = vsel %vm783, %v626, 0.0
  %v786 = vsel %vm784, %v626, 0.0
  %787 = vset.pattern.permute.xlu0 9
  %788 = vperm.xlu0 %787, %v631
  %v789 = vpop.permute.xlu0 %788
  %790 = vset.pattern.permute.xlu0 9
  %791 = vperm.xlu0 %790, %v632
  %v792 = vpop.permute.xlu0 %791
  %vm793 = vcmp.eq.s32.totalorder %v789, 1
  %vm794 = vcmp.eq.s32.totalorder %v792, 1
  %v795 = vsel %vm793, %v644, %v785
  %v796 = vsel %vm794, %v644, %v786
  %797 = vset.pattern.permute.xlu0 9
  %798 = vperm.xlu0 %797, %v649
  %v799 = vpop.permute.xlu0 %798
  %800 = vset.pattern.permute.xlu0 9
  %801 = vperm.xlu0 %800, %v650
  %v802 = vpop.permute.xlu0 %801
  %vm803 = vcmp.eq.s32.totalorder %v799, 1
  %vm804 = vcmp.eq.s32.totalorder %v802, 1
  %v805 = vsel %vm803, %v662, %v795
  %v806 = vsel %vm804, %v662, %v796
  %807 = vset.pattern.permute.xlu0 9
  %808 = vperm.xlu0 %807, %v667
  %v809 = vpop.permute.xlu0 %808
  %810 = vset.pattern.permute.xlu0 9
  %811 = vperm.xlu0 %810, %v668
  %v812 = vpop.permute.xlu0 %811
  %vm813 = vcmp.eq.s32.totalorder %v809, 1
  %vm814 = vcmp.eq.s32.totalorder %v812, 1
  %v815 = vsel %vm813, %v680, %v805
  %v816 = vsel %vm814, %v680, %v806
  %817 = vset.pattern.permute.xlu0 9
  %818 = vperm.xlu0 %817, %v685
  %v819 = vpop.permute.xlu0 %818
  %820 = vset.pattern.permute.xlu0 9
  %821 = vperm.xlu0 %820, %v686
  %v822 = vpop.permute.xlu0 %821
  %vm823 = vcmp.eq.s32.totalorder %v819, 1
  %vm824 = vcmp.eq.s32.totalorder %v822, 1
  %v825 = vsel %vm823, %v698, %v815
  %v826 = vsel %vm824, %v698, %v816
  %827 = vset.pattern.permute.xlu0 9
  %828 = vperm.xlu0 %827, %v703
  %v829 = vpop.permute.xlu0 %828
  %830 = vset.pattern.permute.xlu0 9
  %831 = vperm.xlu0 %830, %v704
  %v832 = vpop.permute.xlu0 %831
  %vm833 = vcmp.eq.s32.totalorder %v829, 1
  %vm834 = vcmp.eq.s32.totalorder %v832, 1
  %v835 = vsel %vm833, %v716, %v825
  %v836 = vsel %vm834, %v716, %v826
  %837 = vset.pattern.permute.xlu0 9
  %838 = vperm.xlu0 %837, %v721
  %v839 = vpop.permute.xlu0 %838
  %840 = vset.pattern.permute.xlu0 9
  %841 = vperm.xlu0 %840, %v722
  %v842 = vpop.permute.xlu0 %841
  %vm843 = vcmp.eq.s32.totalorder %v839, 1
  %vm844 = vcmp.eq.s32.totalorder %v842, 1
  %v845 = vsel %vm843, %v734, %v835
  %v846 = vsel %vm844, %v734, %v836
  %847 = vset.pattern.permute.xlu0 9
  %848 = vperm.xlu0 %847, %v739
  %v849 = vpop.permute.xlu0 %848
  %850 = vset.pattern.permute.xlu0 9
  %851 = vperm.xlu0 %850, %v740
  %v852 = vpop.permute.xlu0 %851
  %vm853 = vcmp.eq.s32.totalorder %v849, 1
  %vm854 = vcmp.eq.s32.totalorder %v852, 1
  %v855 = vsel %vm853, %v752, %v845
  %v856 = vsel %vm854, %v752, %v846
  %857 = vset.pattern.permute.xlu0 1
  %858 = vperm.xlu0 %857, %v607
  %v859 = vpop.permute.xlu0 %858
  %861 = vset.pattern.permute.xlu0 1
  %862 = vperm.xlu0 %861, %v608
  %v863 = vpop.permute.xlu0 %862
  %v865 = vmul.f32 %v859, %v855
  %v866 = vmul.f32 %v863, %v856
  %v867 = vadd.f32 %v767, %v865
  %v868 = vadd.f32 %v768, %v866
  %869 = vrot.lane.b32.xlu0 %v607, 126
  %v870 = vpop.permute.xlu0 %869
  %871 = vrot.lane.b32.xlu0 %v608, 126
  %v872 = vpop.permute.xlu0 %871
  %v875 = vadd.f32 %v775, %v870
  %v876 = vadd.f32 %v776, %v872
  %877 = vset.pattern.permute.xlu0 10
  %878 = vperm.xlu0 %877, %v613
  %v879 = vpop.permute.xlu0 %878
  %880 = vset.pattern.permute.xlu0 10
  %881 = vperm.xlu0 %880, %v614
  %v882 = vpop.permute.xlu0 %881
  %vm883 = vcmp.eq.s32.totalorder %v879, 1
  %vm884 = vcmp.eq.s32.totalorder %v882, 1
  %v885 = vsel %vm883, %v626, 0.0
  %v886 = vsel %vm884, %v626, 0.0
  %887 = vset.pattern.permute.xlu0 10
  %888 = vperm.xlu0 %887, %v631
  %v889 = vpop.permute.xlu0 %888
  %890 = vset.pattern.permute.xlu0 10
  %891 = vperm.xlu0 %890, %v632
  %v892 = vpop.permute.xlu0 %891
  %vm893 = vcmp.eq.s32.totalorder %v889, 1
  %vm894 = vcmp.eq.s32.totalorder %v892, 1
  %v895 = vsel %vm893, %v644, %v885
  %v896 = vsel %vm894, %v644, %v886
  %897 = vset.pattern.permute.xlu0 10
  %898 = vperm.xlu0 %897, %v649
  %v899 = vpop.permute.xlu0 %898
  %900 = vset.pattern.permute.xlu0 10
  %901 = vperm.xlu0 %900, %v650
  %v902 = vpop.permute.xlu0 %901
  %vm903 = vcmp.eq.s32.totalorder %v899, 1
  %vm904 = vcmp.eq.s32.totalorder %v902, 1
  %v905 = vsel %vm903, %v662, %v895
  %v906 = vsel %vm904, %v662, %v896
  %907 = vset.pattern.permute.xlu0 10
  %908 = vperm.xlu0 %907, %v667
  %v909 = vpop.permute.xlu0 %908
  %910 = vset.pattern.permute.xlu0 10
  %911 = vperm.xlu0 %910, %v668
  %v912 = vpop.permute.xlu0 %911
  %vm913 = vcmp.eq.s32.totalorder %v909, 1
  %vm914 = vcmp.eq.s32.totalorder %v912, 1
  %v915 = vsel %vm913, %v680, %v905
  %v916 = vsel %vm914, %v680, %v906
  %917 = vset.pattern.permute.xlu0 10
  %918 = vperm.xlu0 %917, %v685
  %v919 = vpop.permute.xlu0 %918
  %920 = vset.pattern.permute.xlu0 10
  %921 = vperm.xlu0 %920, %v686
  %v922 = vpop.permute.xlu0 %921
  %vm923 = vcmp.eq.s32.totalorder %v919, 1
  %vm924 = vcmp.eq.s32.totalorder %v922, 1
  %v925 = vsel %vm923, %v698, %v915
  %v926 = vsel %vm924, %v698, %v916
  %927 = vset.pattern.permute.xlu0 10
  %928 = vperm.xlu0 %927, %v703
  %v929 = vpop.permute.xlu0 %928
  %930 = vset.pattern.permute.xlu0 10
  %931 = vperm.xlu0 %930, %v704
  %v932 = vpop.permute.xlu0 %931
  %vm933 = vcmp.eq.s32.totalorder %v929, 1
  %vm934 = vcmp.eq.s32.totalorder %v932, 1
  %v935 = vsel %vm933, %v716, %v925
  %v936 = vsel %vm934, %v716, %v926
  %937 = vset.pattern.permute.xlu0 10
  %938 = vperm.xlu0 %937, %v721
  %v939 = vpop.permute.xlu0 %938
  %940 = vset.pattern.permute.xlu0 10
  %941 = vperm.xlu0 %940, %v722
  %v942 = vpop.permute.xlu0 %941
  %vm943 = vcmp.eq.s32.totalorder %v939, 1
  %vm944 = vcmp.eq.s32.totalorder %v942, 1
  %v945 = vsel %vm943, %v734, %v935
  %v946 = vsel %vm944, %v734, %v936
  %947 = vset.pattern.permute.xlu0 10
  %948 = vperm.xlu0 %947, %v739
  %v949 = vpop.permute.xlu0 %948
  %950 = vset.pattern.permute.xlu0 10
  %951 = vperm.xlu0 %950, %v740
  %v952 = vpop.permute.xlu0 %951
  %vm953 = vcmp.eq.s32.totalorder %v949, 1
  %vm954 = vcmp.eq.s32.totalorder %v952, 1
  %v955 = vsel %vm953, %v752, %v945
  %v956 = vsel %vm954, %v752, %v946
  %957 = vset.pattern.permute.xlu0 2
  %958 = vperm.xlu0 %957, %v607
  %v959 = vpop.permute.xlu0 %958
  %961 = vset.pattern.permute.xlu0 2
  %962 = vperm.xlu0 %961, %v608
  %v963 = vpop.permute.xlu0 %962
  %v965 = vmul.f32 %v959, %v955
  %v966 = vmul.f32 %v963, %v956
  %v967 = vadd.f32 %v867, %v965
  %v968 = vadd.f32 %v868, %v966
  %969 = vrot.lane.b32.xlu0 %v607, 125
  %v970 = vpop.permute.xlu0 %969
  %971 = vrot.lane.b32.xlu0 %v608, 125
  %v972 = vpop.permute.xlu0 %971
  %v975 = vadd.f32 %v875, %v970
  %v976 = vadd.f32 %v876, %v972
  %977 = vset.pattern.permute.xlu0 11
  %978 = vperm.xlu0 %977, %v613
  %v979 = vpop.permute.xlu0 %978
  %980 = vset.pattern.permute.xlu0 11
  %981 = vperm.xlu0 %980, %v614
  %v982 = vpop.permute.xlu0 %981
  %vm983 = vcmp.eq.s32.totalorder %v979, 1
  %vm984 = vcmp.eq.s32.totalorder %v982, 1
  %v985 = vsel %vm983, %v626, 0.0
  %v986 = vsel %vm984, %v626, 0.0
  %987 = vset.pattern.permute.xlu0 11
  %988 = vperm.xlu0 %987, %v631
  %v989 = vpop.permute.xlu0 %988
  %990 = vset.pattern.permute.xlu0 11
  %991 = vperm.xlu0 %990, %v632
  %v992 = vpop.permute.xlu0 %991
  %vm993 = vcmp.eq.s32.totalorder %v989, 1
  %vm994 = vcmp.eq.s32.totalorder %v992, 1
  %v995 = vsel %vm993, %v644, %v985
  %v996 = vsel %vm994, %v644, %v986
  %997 = vset.pattern.permute.xlu0 11
  %998 = vperm.xlu0 %997, %v649
  %v999 = vpop.permute.xlu0 %998
  %1000 = vset.pattern.permute.xlu0 11
  %1001 = vperm.xlu0 %1000, %v650
  %v1002 = vpop.permute.xlu0 %1001
  %vm1003 = vcmp.eq.s32.totalorder %v999, 1
  %vm1004 = vcmp.eq.s32.totalorder %v1002, 1
  %v1005 = vsel %vm1003, %v662, %v995
  %v1006 = vsel %vm1004, %v662, %v996
  %1007 = vset.pattern.permute.xlu0 11
  %1008 = vperm.xlu0 %1007, %v667
  %v1009 = vpop.permute.xlu0 %1008
  %1010 = vset.pattern.permute.xlu0 11
  %1011 = vperm.xlu0 %1010, %v668
  %v1012 = vpop.permute.xlu0 %1011
  %vm1013 = vcmp.eq.s32.totalorder %v1009, 1
  %vm1014 = vcmp.eq.s32.totalorder %v1012, 1
  %v1015 = vsel %vm1013, %v680, %v1005
  %v1016 = vsel %vm1014, %v680, %v1006
  %1017 = vset.pattern.permute.xlu0 11
  %1018 = vperm.xlu0 %1017, %v685
  %v1019 = vpop.permute.xlu0 %1018
  %1020 = vset.pattern.permute.xlu0 11
  %1021 = vperm.xlu0 %1020, %v686
  %v1022 = vpop.permute.xlu0 %1021
  %vm1023 = vcmp.eq.s32.totalorder %v1019, 1
  %vm1024 = vcmp.eq.s32.totalorder %v1022, 1
  %v1025 = vsel %vm1023, %v698, %v1015
  %v1026 = vsel %vm1024, %v698, %v1016
  %1027 = vset.pattern.permute.xlu0 11
  %1028 = vperm.xlu0 %1027, %v703
  %v1029 = vpop.permute.xlu0 %1028
  %1030 = vset.pattern.permute.xlu0 11
  %1031 = vperm.xlu0 %1030, %v704
  %v1032 = vpop.permute.xlu0 %1031
  %vm1033 = vcmp.eq.s32.totalorder %v1029, 1
  %vm1034 = vcmp.eq.s32.totalorder %v1032, 1
  %v1035 = vsel %vm1033, %v716, %v1025
  %v1036 = vsel %vm1034, %v716, %v1026
  %1037 = vset.pattern.permute.xlu0 11
  %1038 = vperm.xlu0 %1037, %v721
  %v1039 = vpop.permute.xlu0 %1038
  %1040 = vset.pattern.permute.xlu0 11
  %1041 = vperm.xlu0 %1040, %v722
  %v1042 = vpop.permute.xlu0 %1041
  %vm1043 = vcmp.eq.s32.totalorder %v1039, 1
  %vm1044 = vcmp.eq.s32.totalorder %v1042, 1
  %v1045 = vsel %vm1043, %v734, %v1035
  %v1046 = vsel %vm1044, %v734, %v1036
  %1047 = vset.pattern.permute.xlu0 11
  %1048 = vperm.xlu0 %1047, %v739
  %v1049 = vpop.permute.xlu0 %1048
  %1050 = vset.pattern.permute.xlu0 11
  %1051 = vperm.xlu0 %1050, %v740
  %v1052 = vpop.permute.xlu0 %1051
  %vm1053 = vcmp.eq.s32.totalorder %v1049, 1
  %vm1054 = vcmp.eq.s32.totalorder %v1052, 1
  %v1055 = vsel %vm1053, %v752, %v1045
  %v1056 = vsel %vm1054, %v752, %v1046
  %1057 = vset.pattern.permute.xlu0 3
  %1058 = vperm.xlu0 %1057, %v607
  %v1059 = vpop.permute.xlu0 %1058
  %1061 = vset.pattern.permute.xlu0 3
  %1062 = vperm.xlu0 %1061, %v608
  %v1063 = vpop.permute.xlu0 %1062
  %v1065 = vmul.f32 %v1059, %v1055
  %v1066 = vmul.f32 %v1063, %v1056
  %v1067 = vadd.f32 %v967, %v1065
  %v1068 = vadd.f32 %v968, %v1066
  %v1069 = vadd.f32 %v975, 1e-06
  %v1070 = vadd.f32 %v976, 1e-06
  %1072 = vset.pattern.permute.xlu0 0
  %1073 = vperm.xlu0 %1072, %v1069
  %v1074 = vpop.permute.xlu0 %1073
  %1077 = vset.pattern.permute.xlu0 0
  %1078 = vperm.xlu0 %1077, %v1070
  %v1079 = vpop.permute.xlu0 %1078
  %v1081 = vrcp.pop %v1074
  %v1082 = vmul.f32 %v1067, %v1081
  %v1083 = vrcp.pop %v1079
  %v1084 = vmul.f32 %v1068, %v1083
  %v1085 = vld [vmem:[%s3] sm:$0xff]
  %v1086 = vld [vmem:[%s3 + $0x8] sm:$0xff]
  %v1087 = vld [vmem:[%s3 + $0x10] sm:$0xff]
  %v1088 = vld [vmem:[%s3 + $0x18] sm:$0xff]
  %v1089 = vld [vmem:[%s3 + $0x20] sm:$0xff]
  %v1090 = vld [vmem:[%s3 + $0x28] sm:$0x1]
  %v1091 = vld [vmem:[%s3 + $0x29] sm:$0x1]
  %v1092 = vlaneseq
  %v1093 = vshrl.u32 %v1092, 7
  %v1094 = vsub.s32 0, %v1093
  %v1095 = vrot.slane %v1090, %v1094
  %1097 = vset.pattern.permute.xlu0 0
  %1098 = vperm.xlu0 %1097, %v1082
  %v1099 = vpop.permute.xlu0 %1098
  %1102 = vset.pattern.permute.xlu0 0
  %1103 = vperm.xlu0 %1102, %v1084
  %v1104 = vpop.permute.xlu0 %1103
  %v1106 = vlaneseq
  %v1107 = vshrl.u32 %v1106, 7
  %v1108 = vsub.s32 0, %v1107
  %v1109 = vrot.slane %v1085, %v1108
  %v1110 = vmul.f32 %v1099, %v1109
  %v1111 = vmul.f32 %v1104, %v1109
  %v1112 = vadd.f32 %v1095, %v1110
  %v1113 = vadd.f32 %v1095, %v1111
  %1114 = vset.pattern.permute.xlu0 1
  %1115 = vperm.xlu0 %1114, %v1082
  %v1116 = vpop.permute.xlu0 %1115
  %1118 = vset.pattern.permute.xlu0 1
  %1119 = vperm.xlu0 %1118, %v1084
  %v1120 = vpop.permute.xlu0 %1119
  %v1122 = vlaneseq
  %v1123 = vshrl.u32 %v1122, 7
  %v1124 = vsub.s32 1, %v1123
  %v1125 = vrot.slane %v1085, %v1124
  %v1126 = vmul.f32 %v1116, %v1125
  %v1127 = vmul.f32 %v1120, %v1125
  %v1128 = vadd.f32 %v1112, %v1126
  %v1129 = vadd.f32 %v1113, %v1127
  %1130 = vset.pattern.permute.xlu0 2
  %1131 = vperm.xlu0 %1130, %v1082
  %v1132 = vpop.permute.xlu0 %1131
  %1134 = vset.pattern.permute.xlu0 2
  %1135 = vperm.xlu0 %1134, %v1084
  %v1136 = vpop.permute.xlu0 %1135
  %v1138 = vlaneseq
  %v1139 = vshrl.u32 %v1138, 7
  %v1140 = vsub.s32 2, %v1139
  %v1141 = vrot.slane %v1085, %v1140
  %v1142 = vmul.f32 %v1132, %v1141
  %v1143 = vmul.f32 %v1136, %v1141
  %v1144 = vadd.f32 %v1128, %v1142
  %v1145 = vadd.f32 %v1129, %v1143
  %1146 = vset.pattern.permute.xlu0 3
  %1147 = vperm.xlu0 %1146, %v1082
  %v1148 = vpop.permute.xlu0 %1147
  %1150 = vset.pattern.permute.xlu0 3
  %1151 = vperm.xlu0 %1150, %v1084
  %v1152 = vpop.permute.xlu0 %1151
  %v1154 = vlaneseq
  %v1155 = vshrl.u32 %v1154, 7
  %v1156 = vsub.s32 3, %v1155
  %v1157 = vrot.slane %v1085, %v1156
  %v1158 = vmul.f32 %v1148, %v1157
  %v1159 = vmul.f32 %v1152, %v1157
  %v1160 = vadd.f32 %v1144, %v1158
  %v1161 = vadd.f32 %v1145, %v1159
  %1162 = vset.pattern.permute.xlu0 4
  %1163 = vperm.xlu0 %1162, %v1082
  %v1164 = vpop.permute.xlu0 %1163
  %1166 = vset.pattern.permute.xlu0 4
  %1167 = vperm.xlu0 %1166, %v1084
  %v1168 = vpop.permute.xlu0 %1167
  %v1170 = vlaneseq
  %v1171 = vshrl.u32 %v1170, 7
  %v1172 = vsub.s32 4, %v1171
  %v1173 = vrot.slane %v1085, %v1172
  %v1174 = vmul.f32 %v1164, %v1173
  %v1175 = vmul.f32 %v1168, %v1173
  %v1176 = vadd.f32 %v1160, %v1174
  %v1177 = vadd.f32 %v1161, %v1175
  %1178 = vset.pattern.permute.xlu0 5
  %1179 = vperm.xlu0 %1178, %v1082
  %v1180 = vpop.permute.xlu0 %1179
  %1182 = vset.pattern.permute.xlu0 5
  %1183 = vperm.xlu0 %1182, %v1084
  %v1184 = vpop.permute.xlu0 %1183
  %v1186 = vlaneseq
  %v1187 = vshrl.u32 %v1186, 7
  %v1188 = vsub.s32 5, %v1187
  %v1189 = vrot.slane %v1085, %v1188
  %v1190 = vmul.f32 %v1180, %v1189
  %v1191 = vmul.f32 %v1184, %v1189
  %v1192 = vadd.f32 %v1176, %v1190
  %v1193 = vadd.f32 %v1177, %v1191
  %1194 = vset.pattern.permute.xlu0 6
  %1195 = vperm.xlu0 %1194, %v1082
  %v1196 = vpop.permute.xlu0 %1195
  %1198 = vset.pattern.permute.xlu0 6
  %1199 = vperm.xlu0 %1198, %v1084
  %v1200 = vpop.permute.xlu0 %1199
  %v1202 = vlaneseq
  %v1203 = vshrl.u32 %v1202, 7
  %v1204 = vsub.s32 6, %v1203
  %v1205 = vrot.slane %v1085, %v1204
  %v1206 = vmul.f32 %v1196, %v1205
  %v1207 = vmul.f32 %v1200, %v1205
  %v1208 = vadd.f32 %v1192, %v1206
  %v1209 = vadd.f32 %v1193, %v1207
  %1210 = vset.pattern.permute.xlu0 7
  %1211 = vperm.xlu0 %1210, %v1082
  %v1212 = vpop.permute.xlu0 %1211
  %1214 = vset.pattern.permute.xlu0 7
  %1215 = vperm.xlu0 %1214, %v1084
  %v1216 = vpop.permute.xlu0 %1215
  %v1218 = vlaneseq
  %v1219 = vshrl.u32 %v1218, 7
  %v1220 = vsub.s32 7, %v1219
  %v1221 = vrot.slane %v1085, %v1220
  %v1222 = vmul.f32 %v1212, %v1221
  %v1223 = vmul.f32 %v1216, %v1221
  %v1224 = vadd.f32 %v1208, %v1222
  %v1225 = vadd.f32 %v1209, %v1223
  %1226 = vset.pattern.permute.xlu0 8
  %1227 = vperm.xlu0 %1226, %v1082
  %v1228 = vpop.permute.xlu0 %1227
  %1230 = vset.pattern.permute.xlu0 8
  %1231 = vperm.xlu0 %1230, %v1084
  %v1232 = vpop.permute.xlu0 %1231
  %v1234 = vlaneseq
  %v1235 = vshrl.u32 %v1234, 7
  %v1236 = vsub.s32 0, %v1235
  %v1237 = vrot.slane %v1086, %v1236
  %v1238 = vmul.f32 %v1228, %v1237
  %v1239 = vmul.f32 %v1232, %v1237
  %v1240 = vadd.f32 %v1224, %v1238
  %v1241 = vadd.f32 %v1225, %v1239
  %1242 = vset.pattern.permute.xlu0 9
  %1243 = vperm.xlu0 %1242, %v1082
  %v1244 = vpop.permute.xlu0 %1243
  %1246 = vset.pattern.permute.xlu0 9
  %1247 = vperm.xlu0 %1246, %v1084
  %v1248 = vpop.permute.xlu0 %1247
  %v1250 = vlaneseq
  %v1251 = vshrl.u32 %v1250, 7
  %v1252 = vsub.s32 1, %v1251
  %v1253 = vrot.slane %v1086, %v1252
  %v1254 = vmul.f32 %v1244, %v1253
  %v1255 = vmul.f32 %v1248, %v1253
  %v1256 = vadd.f32 %v1240, %v1254
  %v1257 = vadd.f32 %v1241, %v1255
  %1258 = vset.pattern.permute.xlu0 10
  %1259 = vperm.xlu0 %1258, %v1082
  %v1260 = vpop.permute.xlu0 %1259
  %1262 = vset.pattern.permute.xlu0 10
  %1263 = vperm.xlu0 %1262, %v1084
  %v1264 = vpop.permute.xlu0 %1263
  %v1266 = vlaneseq
  %v1267 = vshrl.u32 %v1266, 7
  %v1268 = vsub.s32 2, %v1267
  %v1269 = vrot.slane %v1086, %v1268
  %v1270 = vmul.f32 %v1260, %v1269
  %v1271 = vmul.f32 %v1264, %v1269
  %v1272 = vadd.f32 %v1256, %v1270
  %v1273 = vadd.f32 %v1257, %v1271
  %1274 = vset.pattern.permute.xlu0 11
  %1275 = vperm.xlu0 %1274, %v1082
  %v1276 = vpop.permute.xlu0 %1275
  %1278 = vset.pattern.permute.xlu0 11
  %1279 = vperm.xlu0 %1278, %v1084
  %v1280 = vpop.permute.xlu0 %1279
  %v1282 = vlaneseq
  %v1283 = vshrl.u32 %v1282, 7
  %v1284 = vsub.s32 3, %v1283
  %v1285 = vrot.slane %v1086, %v1284
  %v1286 = vmul.f32 %v1276, %v1285
  %v1287 = vmul.f32 %v1280, %v1285
  %v1288 = vadd.f32 %v1272, %v1286
  %v1289 = vadd.f32 %v1273, %v1287
  %1290 = vset.pattern.permute.xlu0 12
  %1291 = vperm.xlu0 %1290, %v1082
  %v1292 = vpop.permute.xlu0 %1291
  %1294 = vset.pattern.permute.xlu0 12
  %1295 = vperm.xlu0 %1294, %v1084
  %v1296 = vpop.permute.xlu0 %1295
  %v1298 = vlaneseq
  %v1299 = vshrl.u32 %v1298, 7
  %v1300 = vsub.s32 4, %v1299
  %v1301 = vrot.slane %v1086, %v1300
  %v1302 = vmul.f32 %v1292, %v1301
  %v1303 = vmul.f32 %v1296, %v1301
  %v1304 = vadd.f32 %v1288, %v1302
  %v1305 = vadd.f32 %v1289, %v1303
  %1306 = vset.pattern.permute.xlu0 13
  %1307 = vperm.xlu0 %1306, %v1082
  %v1308 = vpop.permute.xlu0 %1307
  %1310 = vset.pattern.permute.xlu0 13
  %1311 = vperm.xlu0 %1310, %v1084
  %v1312 = vpop.permute.xlu0 %1311
  %v1314 = vlaneseq
  %v1315 = vshrl.u32 %v1314, 7
  %v1316 = vsub.s32 5, %v1315
  %v1317 = vrot.slane %v1086, %v1316
  %v1318 = vmul.f32 %v1308, %v1317
  %v1319 = vmul.f32 %v1312, %v1317
  %v1320 = vadd.f32 %v1304, %v1318
  %v1321 = vadd.f32 %v1305, %v1319
  %1322 = vset.pattern.permute.xlu0 14
  %1323 = vperm.xlu0 %1322, %v1082
  %v1324 = vpop.permute.xlu0 %1323
  %1326 = vset.pattern.permute.xlu0 14
  %1327 = vperm.xlu0 %1326, %v1084
  %v1328 = vpop.permute.xlu0 %1327
  %v1330 = vlaneseq
  %v1331 = vshrl.u32 %v1330, 7
  %v1332 = vsub.s32 6, %v1331
  %v1333 = vrot.slane %v1086, %v1332
  %v1334 = vmul.f32 %v1324, %v1333
  %v1335 = vmul.f32 %v1328, %v1333
  %v1336 = vadd.f32 %v1320, %v1334
  %v1337 = vadd.f32 %v1321, %v1335
  %1338 = vset.pattern.permute.xlu0 15
  %1339 = vperm.xlu0 %1338, %v1082
  %v1340 = vpop.permute.xlu0 %1339
  %1342 = vset.pattern.permute.xlu0 15
  %1343 = vperm.xlu0 %1342, %v1084
  %v1344 = vpop.permute.xlu0 %1343
  %v1346 = vlaneseq
  %v1347 = vshrl.u32 %v1346, 7
  %v1348 = vsub.s32 7, %v1347
  %v1349 = vrot.slane %v1086, %v1348
  %v1350 = vmul.f32 %v1340, %v1349
  %v1351 = vmul.f32 %v1344, %v1349
  %v1352 = vadd.f32 %v1336, %v1350
  %v1353 = vadd.f32 %v1337, %v1351
  %1355 = vset.pattern.permute.xlu0 1
  %1356 = vperm.xlu0 %1355, %v19
  %v1357 = vpop.permute.xlu0 %1356
  %1360 = vset.pattern.permute.xlu0 1
  %1361 = vperm.xlu0 %1360, %v20
  %v1362 = vpop.permute.xlu0 %1361
  %v1364 = vlaneseq
  %v1365 = vshrl.u32 %v1364, 7
  %v1366 = vsub.s32 0, %v1365
  %v1367 = vrot.slane %v1087, %v1366
  %v1368 = vmul.f32 %v1357, %v1367
  %v1369 = vmul.f32 %v1362, %v1367
  %v1370 = vadd.f32 %v1352, %v1368
  %v1371 = vadd.f32 %v1353, %v1369
  %v1372 = vlaneseq
  %v1373 = vshrl.u32 %v1372, 7
  %v1374 = vsub.s32 1, %v1373
  %v1375 = vrot.slane %v1087, %v1374
  %v1376 = vmul.f32 %v1357, %v1375
  %v1377 = vmul.f32 %v1362, %v1375
  %v1378 = vadd.f32 %v1370, %v1376
  %v1379 = vadd.f32 %v1371, %v1377
  %v1380 = vlaneseq
  %v1381 = vshrl.u32 %v1380, 7
  %v1382 = vsub.s32 2, %v1381
  %v1383 = vrot.slane %v1087, %v1382
  %v1384 = vmul.f32 %v1357, %v1383
  %v1385 = vmul.f32 %v1362, %v1383
  %v1386 = vadd.f32 %v1378, %v1384
  %v1387 = vadd.f32 %v1379, %v1385
  %v1388 = vlaneseq
  %v1389 = vshrl.u32 %v1388, 7
  %v1390 = vsub.s32 3, %v1389
  %v1391 = vrot.slane %v1087, %v1390
  %v1392 = vmul.f32 %v1357, %v1391
  %v1393 = vmul.f32 %v1362, %v1391
  %v1394 = vadd.f32 %v1386, %v1392
  %v1395 = vadd.f32 %v1387, %v1393
  %v1396 = vlaneseq
  %v1397 = vshrl.u32 %v1396, 7
  %v1398 = vsub.s32 4, %v1397
  %v1399 = vrot.slane %v1087, %v1398
  %v1400 = vmul.f32 %v1357, %v1399
  %v1401 = vmul.f32 %v1362, %v1399
  %v1402 = vadd.f32 %v1394, %v1400
  %v1403 = vadd.f32 %v1395, %v1401
  %v1404 = vlaneseq
  %v1405 = vshrl.u32 %v1404, 7
  %v1406 = vsub.s32 5, %v1405
  %v1407 = vrot.slane %v1087, %v1406
  %v1408 = vmul.f32 %v1357, %v1407
  %v1409 = vmul.f32 %v1362, %v1407
  %v1410 = vadd.f32 %v1402, %v1408
  %v1411 = vadd.f32 %v1403, %v1409
  %v1412 = vlaneseq
  %v1413 = vshrl.u32 %v1412, 7
  %v1414 = vsub.s32 6, %v1413
  %v1415 = vrot.slane %v1087, %v1414
  %v1416 = vmul.f32 %v1357, %v1415
  %v1417 = vmul.f32 %v1362, %v1415
  %v1418 = vadd.f32 %v1410, %v1416
  %v1419 = vadd.f32 %v1411, %v1417
  %v1420 = vlaneseq
  %v1421 = vshrl.u32 %v1420, 7
  %v1422 = vsub.s32 7, %v1421
  %v1423 = vrot.slane %v1087, %v1422
  %v1424 = vmul.f32 %v1357, %v1423
  %v1425 = vmul.f32 %v1362, %v1423
  %v1426 = vadd.f32 %v1418, %v1424
  %v1427 = vadd.f32 %v1419, %v1425
  %v1428 = vlaneseq
  %v1429 = vshrl.u32 %v1428, 7
  %v1430 = vsub.s32 0, %v1429
  %v1431 = vrot.slane %v1088, %v1430
  %v1432 = vmul.f32 %v1357, %v1431
  %v1433 = vmul.f32 %v1362, %v1431
  %v1434 = vadd.f32 %v1426, %v1432
  %v1435 = vadd.f32 %v1427, %v1433
  %v1436 = vlaneseq
  %v1437 = vshrl.u32 %v1436, 7
  %v1438 = vsub.s32 1, %v1437
  %v1439 = vrot.slane %v1088, %v1438
  %v1440 = vmul.f32 %v1357, %v1439
  %v1441 = vmul.f32 %v1362, %v1439
  %v1442 = vadd.f32 %v1434, %v1440
  %v1443 = vadd.f32 %v1435, %v1441
  %v1444 = vlaneseq
  %v1445 = vshrl.u32 %v1444, 7
  %v1446 = vsub.s32 2, %v1445
  %v1447 = vrot.slane %v1088, %v1446
  %v1448 = vmul.f32 %v1357, %v1447
  %v1449 = vmul.f32 %v1362, %v1447
  %v1450 = vadd.f32 %v1442, %v1448
  %v1451 = vadd.f32 %v1443, %v1449
  %v1452 = vlaneseq
  %v1453 = vshrl.u32 %v1452, 7
  %v1454 = vsub.s32 3, %v1453
  %v1455 = vrot.slane %v1088, %v1454
  %v1456 = vmul.f32 %v1357, %v1455
  %v1457 = vmul.f32 %v1362, %v1455
  %v1458 = vadd.f32 %v1450, %v1456
  %v1459 = vadd.f32 %v1451, %v1457
  %v1460 = vlaneseq
  %v1461 = vshrl.u32 %v1460, 7
  %v1462 = vsub.s32 4, %v1461
  %v1463 = vrot.slane %v1088, %v1462
  %v1464 = vmul.f32 %v1357, %v1463
  %v1465 = vmul.f32 %v1362, %v1463
  %v1466 = vadd.f32 %v1458, %v1464
  %v1467 = vadd.f32 %v1459, %v1465
  %v1468 = vlaneseq
  %v1469 = vshrl.u32 %v1468, 7
  %v1470 = vsub.s32 5, %v1469
  %v1471 = vrot.slane %v1088, %v1470
  %v1472 = vmul.f32 %v1357, %v1471
  %v1473 = vmul.f32 %v1362, %v1471
  %v1474 = vadd.f32 %v1466, %v1472
  %v1475 = vadd.f32 %v1467, %v1473
  %v1476 = vlaneseq
  %v1477 = vshrl.u32 %v1476, 7
  %v1478 = vsub.s32 6, %v1477
  %v1479 = vrot.slane %v1088, %v1478
  %v1480 = vmul.f32 %v1357, %v1479
  %v1481 = vmul.f32 %v1362, %v1479
  %v1482 = vadd.f32 %v1474, %v1480
  %v1483 = vadd.f32 %v1475, %v1481
  %v1484 = vlaneseq
  %v1485 = vshrl.u32 %v1484, 7
  %v1486 = vsub.s32 7, %v1485
  %v1487 = vrot.slane %v1088, %v1486
  %v1488 = vmul.f32 %v1357, %v1487
  %v1489 = vmul.f32 %v1362, %v1487
  %v1490 = vadd.f32 %v1482, %v1488
  %v1491 = vadd.f32 %v1483, %v1489
  %v1492 = vlaneseq
  %v1493 = vshrl.u32 %v1492, 7
  %v1494 = vsub.s32 0, %v1493
  %v1495 = vrot.slane %v1091, %v1494
  %v1496 = vlaneseq
  %v1497 = vshrl.u32 %v1496, 7
  %v1498 = vsub.s32 0, %v1497
  %v1499 = vrot.slane %v1089, %v1498
  %v1500 = vmul.f32 %v1499, 0.0
  %v1501 = vadd.f32 %v1495, %v1500
  %v1502 = vlaneseq
  %v1503 = vshrl.u32 %v1502, 7
  %v1504 = vsub.s32 1, %v1503
  %v1505 = vrot.slane %v1089, %v1504
  %v1506 = vmul.f32 %v1505, 0.0
  %v1507 = vadd.f32 %v1501, %v1506
  %v1508 = vlaneseq
  %v1509 = vshrl.u32 %v1508, 7
  %v1510 = vsub.s32 2, %v1509
  %v1511 = vrot.slane %v1089, %v1510
  %v1512 = vmul.f32 %v1511, 0.0
  %v1513 = vadd.f32 %v1507, %v1512
  %v1514 = vlaneseq
  %v1515 = vshrl.u32 %v1514, 7
  %v1516 = vsub.s32 3, %v1515
  %v1517 = vrot.slane %v1089, %v1516
  %v1518 = vmul.f32 %v1517, 0.0
  %v1519 = vadd.f32 %v1513, %v1518
  %v1520 = vlaneseq
  %v1521 = vshrl.u32 %v1520, 7
  %v1522 = vsub.s32 4, %v1521
  %v1523 = vrot.slane %v1089, %v1522
  %v1524 = vmul.f32 %v1523, 0.0
  %v1525 = vadd.f32 %v1519, %v1524
  %v1526 = vlaneseq
  %v1527 = vshrl.u32 %v1526, 7
  %v1528 = vsub.s32 5, %v1527
  %v1529 = vrot.slane %v1089, %v1528
  %v1530 = vmul.f32 %v1529, 0.0
  %v1531 = vadd.f32 %v1525, %v1530
  %v1532 = vlaneseq
  %v1533 = vshrl.u32 %v1532, 7
  %v1534 = vsub.s32 6, %v1533
  %v1535 = vrot.slane %v1089, %v1534
  %v1536 = vmul.f32 %v1535, 0.0
  %v1537 = vadd.f32 %v1531, %v1536
  %v1538 = vlaneseq
  %v1539 = vshrl.u32 %v1538, 7
  %v1540 = vsub.s32 7, %v1539
  %v1541 = vrot.slane %v1089, %v1540
  %v1542 = vmul.f32 %v1541, 0.0
  %v1543 = vadd.f32 %v1537, %v1542
  %v1544 = vadd.f32 %v1490, %v1543
  %v1545 = vxor.u32 %v1544, 2147483648
  %v1546 = vmul.f32 %v1545, 1.442695
  %v1547 = vpow.pop %v1546
  %v1548 = vadd.f32 %v1547, 1.0
  %v1549 = vrcp.pop %v1548
  %v1550 = vmul.f32 1.0, %v1549
  %1552 = vrot.lane.b32.xlu0 %v1543, 112
  %v1553 = vpop.permute.xlu0 %1552
  %v1555 = vmul.f32 %v1550, %v1553
  %1557 = vrot.lane.b32.xlu0 %v1555, 16
  %v1558 = vpop.permute.xlu0 %1557
  %v1560 = vadd.f32 %v1490, %v1558
  %v1561 = vtanh.pop %v1560
  %v1562 = vsub.f32 1.0, %v1550
  %1564 = vrot.lane.b32.xlu0 %v1561, 120
  %v1565 = vpop.permute.xlu0 %1564
  %v1567 = vmul.f32 %v1562, %v1565
  %v1568 = vmul.f32 %v1550, 0.0
  %v1569 = vadd.f32 %v1567, %v1568
  %1571 = vset.pattern.permute.xlu0 8
  %1572 = vperm.xlu0 %1571, %v1569
  %v1573 = vpop.permute.xlu0 %1572
  %v1575 = vmul.f32 %v1573, %v1499
  %v1576 = vadd.f32 %v1495, %v1575
  %1577 = vset.pattern.permute.xlu0 9
  %1578 = vperm.xlu0 %1577, %v1569
  %v1579 = vpop.permute.xlu0 %1578
  %v1581 = vmul.f32 %v1579, %v1505
  %v1582 = vadd.f32 %v1576, %v1581
  %1583 = vset.pattern.permute.xlu0 10
  %1584 = vperm.xlu0 %1583, %v1569
  %v1585 = vpop.permute.xlu0 %1584
  %v1587 = vmul.f32 %v1585, %v1511
  %v1588 = vadd.f32 %v1582, %v1587
  %1589 = vset.pattern.permute.xlu0 11
  %1590 = vperm.xlu0 %1589, %v1569
  %v1591 = vpop.permute.xlu0 %1590
  %v1593 = vmul.f32 %v1591, %v1517
  %v1594 = vadd.f32 %v1588, %v1593
  %1595 = vset.pattern.permute.xlu0 12
  %1596 = vperm.xlu0 %1595, %v1569
  %v1597 = vpop.permute.xlu0 %1596
  %v1599 = vmul.f32 %v1597, %v1523
  %v1600 = vadd.f32 %v1594, %v1599
  %1601 = vset.pattern.permute.xlu0 13
  %1602 = vperm.xlu0 %1601, %v1569
  %v1603 = vpop.permute.xlu0 %1602
  %v1605 = vmul.f32 %v1603, %v1529
  %v1606 = vadd.f32 %v1600, %v1605
  %1607 = vset.pattern.permute.xlu0 14
  %1608 = vperm.xlu0 %1607, %v1569
  %v1609 = vpop.permute.xlu0 %1608
  %v1611 = vmul.f32 %v1609, %v1535
  %v1612 = vadd.f32 %v1606, %v1611
  %1613 = vset.pattern.permute.xlu0 15
  %1614 = vperm.xlu0 %1613, %v1569
  %v1615 = vpop.permute.xlu0 %1614
  %v1617 = vmul.f32 %v1615, %v1541
  %v1618 = vadd.f32 %v1612, %v1617
  %v1620 = vrot.slane %v1618, 6
  %v1622 = vadd.f32 %v1490, %v1620
  %v1623 = vxor.u32 %v1622, 2147483648
  %v1624 = vmul.f32 %v1623, 1.442695
  %v1625 = vpow.pop %v1624
  %v1626 = vadd.f32 %v1625, 1.0
  %v1627 = vrcp.pop %v1626
  %v1628 = vmul.f32 1.0, %v1627
  %1629 = vrot.lane.b32.xlu0 %v1620, 112
  %v1630 = vpop.permute.xlu0 %1629
  %v1632 = vmul.f32 %v1628, %v1630
  %1634 = vrot.lane.b32.xlu0 %v1632, 16
  %v1635 = vpop.permute.xlu0 %1634
  %v1637 = vadd.f32 %v1490, %v1635
  %v1638 = vtanh.pop %v1637
  %v1639 = vsub.f32 1.0, %v1628
  %1641 = vrot.lane.b32.xlu0 %v1638, 120
  %v1642 = vpop.permute.xlu0 %1641
  %v1644 = vmul.f32 %v1639, %v1642
  %v1645 = vrot.slane %v1569, 6
  %v1647 = vmul.f32 %v1628, %v1645
  %v1648 = vadd.f32 %v1644, %v1647
  %1650 = vset.pattern.permute.xlu0 8
  %1651 = vperm.xlu0 %1650, %v1648
  %v1652 = vpop.permute.xlu0 %1651
  %v1654 = vmul.f32 %v1652, %v1499
  %v1655 = vadd.f32 %v1495, %v1654
  %1656 = vset.pattern.permute.xlu0 9
  %1657 = vperm.xlu0 %1656, %v1648
  %v1658 = vpop.permute.xlu0 %1657
  %v1660 = vmul.f32 %v1658, %v1505
  %v1661 = vadd.f32 %v1655, %v1660
  %1662 = vset.pattern.permute.xlu0 10
  %1663 = vperm.xlu0 %1662, %v1648
  %v1664 = vpop.permute.xlu0 %1663
  %v1666 = vmul.f32 %v1664, %v1511
  %v1667 = vadd.f32 %v1661, %v1666
  %1668 = vset.pattern.permute.xlu0 11
  %1669 = vperm.xlu0 %1668, %v1648
  %v1670 = vpop.permute.xlu0 %1669
  %v1672 = vmul.f32 %v1670, %v1517
  %v1673 = vadd.f32 %v1667, %v1672
  %1674 = vset.pattern.permute.xlu0 12
  %1675 = vperm.xlu0 %1674, %v1648
  %v1676 = vpop.permute.xlu0 %1675
  %v1678 = vmul.f32 %v1676, %v1523
  %v1679 = vadd.f32 %v1673, %v1678
  %1680 = vset.pattern.permute.xlu0 13
  %1681 = vperm.xlu0 %1680, %v1648
  %v1682 = vpop.permute.xlu0 %1681
  %v1684 = vmul.f32 %v1682, %v1529
  %v1685 = vadd.f32 %v1679, %v1684
  %1686 = vset.pattern.permute.xlu0 14
  %1687 = vperm.xlu0 %1686, %v1648
  %v1688 = vpop.permute.xlu0 %1687
  %v1690 = vmul.f32 %v1688, %v1535
  %v1691 = vadd.f32 %v1685, %v1690
  %1692 = vset.pattern.permute.xlu0 15
  %1693 = vperm.xlu0 %1692, %v1648
  %v1694 = vpop.permute.xlu0 %1693
  %v1696 = vmul.f32 %v1694, %v1541
  %v1697 = vadd.f32 %v1691, %v1696
  %v1699 = vrot.slane %v1697, 6
  %v1701 = vadd.f32 %v1490, %v1699
  %v1702 = vxor.u32 %v1701, 2147483648
  %v1703 = vmul.f32 %v1702, 1.442695
  %v1704 = vpow.pop %v1703
  %v1705 = vadd.f32 %v1704, 1.0
  %v1706 = vrcp.pop %v1705
  %v1707 = vmul.f32 1.0, %v1706
  %1708 = vrot.lane.b32.xlu0 %v1699, 112
  %v1709 = vpop.permute.xlu0 %1708
  %v1711 = vmul.f32 %v1707, %v1709
  %1713 = vrot.lane.b32.xlu0 %v1711, 16
  %v1714 = vpop.permute.xlu0 %1713
  %v1716 = vadd.f32 %v1490, %v1714
  %v1717 = vtanh.pop %v1716
  %v1718 = vsub.f32 1.0, %v1707
  %1720 = vrot.lane.b32.xlu0 %v1717, 120
  %v1721 = vpop.permute.xlu0 %1720
  %v1723 = vmul.f32 %v1718, %v1721
  %v1724 = vrot.slane %v1648, 6
  %v1726 = vmul.f32 %v1707, %v1724
  %v1727 = vadd.f32 %v1723, %v1726
  %1729 = vset.pattern.permute.xlu0 8
  %1730 = vperm.xlu0 %1729, %v1727
  %v1731 = vpop.permute.xlu0 %1730
  %v1733 = vmul.f32 %v1731, %v1499
  %v1734 = vadd.f32 %v1495, %v1733
  %1735 = vset.pattern.permute.xlu0 9
  %1736 = vperm.xlu0 %1735, %v1727
  %v1737 = vpop.permute.xlu0 %1736
  %v1739 = vmul.f32 %v1737, %v1505
  %v1740 = vadd.f32 %v1734, %v1739
  %1741 = vset.pattern.permute.xlu0 10
  %1742 = vperm.xlu0 %1741, %v1727
  %v1743 = vpop.permute.xlu0 %1742
  %v1745 = vmul.f32 %v1743, %v1511
  %v1746 = vadd.f32 %v1740, %v1745
  %1747 = vset.pattern.permute.xlu0 11
  %1748 = vperm.xlu0 %1747, %v1727
  %v1749 = vpop.permute.xlu0 %1748
  %v1751 = vmul.f32 %v1749, %v1517
  %v1752 = vadd.f32 %v1746, %v1751
  %1753 = vset.pattern.permute.xlu0 12
  %1754 = vperm.xlu0 %1753, %v1727
  %v1755 = vpop.permute.xlu0 %1754
  %v1757 = vmul.f32 %v1755, %v1523
  %v1758 = vadd.f32 %v1752, %v1757
  %1759 = vset.pattern.permute.xlu0 13
  %1760 = vperm.xlu0 %1759, %v1727
  %v1761 = vpop.permute.xlu0 %1760
  %v1763 = vmul.f32 %v1761, %v1529
  %v1764 = vadd.f32 %v1758, %v1763
  %1765 = vset.pattern.permute.xlu0 14
  %1766 = vperm.xlu0 %1765, %v1727
  %v1767 = vpop.permute.xlu0 %1766
  %v1769 = vmul.f32 %v1767, %v1535
  %v1770 = vadd.f32 %v1764, %v1769
  %1771 = vset.pattern.permute.xlu0 15
  %1772 = vperm.xlu0 %1771, %v1727
  %v1773 = vpop.permute.xlu0 %1772
  %v1775 = vmul.f32 %v1773, %v1541
  %v1776 = vadd.f32 %v1770, %v1775
  %v1778 = vrot.slane %v1776, 6
  %v1780 = vadd.f32 %v1490, %v1778
  %v1781 = vxor.u32 %v1780, 2147483648
  %v1782 = vmul.f32 %v1781, 1.442695
  %v1783 = vpow.pop %v1782
  %v1784 = vadd.f32 %v1783, 1.0
  %v1785 = vrcp.pop %v1784
  %v1786 = vmul.f32 1.0, %v1785
  %1787 = vrot.lane.b32.xlu0 %v1778, 112
  %v1788 = vpop.permute.xlu0 %1787
  %v1790 = vmul.f32 %v1786, %v1788
  %1792 = vrot.lane.b32.xlu0 %v1790, 16
  %v1793 = vpop.permute.xlu0 %1792
  %v1795 = vadd.f32 %v1490, %v1793
  %v1796 = vtanh.pop %v1795
  %v1797 = vsub.f32 1.0, %v1786
  %1799 = vrot.lane.b32.xlu0 %v1796, 120
  %v1800 = vpop.permute.xlu0 %1799
  %v1802 = vmul.f32 %v1797, %v1800
  %v1803 = vrot.slane %v1727, 6
  %v1805 = vmul.f32 %v1786, %v1803
  %v1806 = vadd.f32 %v1802, %v1805
  %1808 = vset.pattern.permute.xlu0 8
  %1809 = vperm.xlu0 %1808, %v1806
  %v1810 = vpop.permute.xlu0 %1809
  %v1812 = vmul.f32 %v1810, %v1499
  %v1813 = vadd.f32 %v1495, %v1812
  %1814 = vset.pattern.permute.xlu0 9
  %1815 = vperm.xlu0 %1814, %v1806
  %v1816 = vpop.permute.xlu0 %1815
  %v1818 = vmul.f32 %v1816, %v1505
  %v1819 = vadd.f32 %v1813, %v1818
  %1820 = vset.pattern.permute.xlu0 10
  %1821 = vperm.xlu0 %1820, %v1806
  %v1822 = vpop.permute.xlu0 %1821
  %v1824 = vmul.f32 %v1822, %v1511
  %v1825 = vadd.f32 %v1819, %v1824
  %1826 = vset.pattern.permute.xlu0 11
  %1827 = vperm.xlu0 %1826, %v1806
  %v1828 = vpop.permute.xlu0 %1827
  %v1830 = vmul.f32 %v1828, %v1517
  %v1831 = vadd.f32 %v1825, %v1830
  %1832 = vset.pattern.permute.xlu0 12
  %1833 = vperm.xlu0 %1832, %v1806
  %v1834 = vpop.permute.xlu0 %1833
  %v1836 = vmul.f32 %v1834, %v1523
  %v1837 = vadd.f32 %v1831, %v1836
  %1838 = vset.pattern.permute.xlu0 13
  %1839 = vperm.xlu0 %1838, %v1806
  %v1840 = vpop.permute.xlu0 %1839
  %v1842 = vmul.f32 %v1840, %v1529
  %v1843 = vadd.f32 %v1837, %v1842
  %1844 = vset.pattern.permute.xlu0 14
  %1845 = vperm.xlu0 %1844, %v1806
  %v1846 = vpop.permute.xlu0 %1845
  %v1848 = vmul.f32 %v1846, %v1535
  %v1849 = vadd.f32 %v1843, %v1848
  %1850 = vset.pattern.permute.xlu0 15
  %1851 = vperm.xlu0 %1850, %v1806
  %v1852 = vpop.permute.xlu0 %1851
  %v1854 = vmul.f32 %v1852, %v1541
  %v1855 = vadd.f32 %v1849, %v1854
  %v1857 = vrot.slane %v1855, 6
  %v1859 = vadd.f32 %v1491, %v1857
  %v1860 = vxor.u32 %v1859, 2147483648
  %v1861 = vmul.f32 %v1860, 1.442695
  %v1862 = vpow.pop %v1861
  %v1863 = vadd.f32 %v1862, 1.0
  %v1864 = vrcp.pop %v1863
  %v1865 = vmul.f32 1.0, %v1864
  %1866 = vrot.lane.b32.xlu0 %v1857, 112
  %v1867 = vpop.permute.xlu0 %1866
  %v1869 = vmul.f32 %v1865, %v1867
  %1871 = vrot.lane.b32.xlu0 %v1869, 16
  %v1872 = vpop.permute.xlu0 %1871
  %v1874 = vadd.f32 %v1491, %v1872
  %v1875 = vtanh.pop %v1874
  %v1876 = vsub.f32 1.0, %v1865
  %1878 = vrot.lane.b32.xlu0 %v1875, 120
  %v1879 = vpop.permute.xlu0 %1878
  %v1881 = vmul.f32 %v1876, %v1879
  %v1882 = vrot.slane %v1806, 6
  %v1884 = vmul.f32 %v1865, %v1882
  %v1885 = vadd.f32 %v1881, %v1884
  %1887 = vset.pattern.permute.xlu0 8
  %1888 = vperm.xlu0 %1887, %v1885
  %v1889 = vpop.permute.xlu0 %1888
  %v1891 = vmul.f32 %v1889, %v1499
  %v1892 = vadd.f32 %v1495, %v1891
  %1893 = vset.pattern.permute.xlu0 9
  %1894 = vperm.xlu0 %1893, %v1885
  %v1895 = vpop.permute.xlu0 %1894
  %v1897 = vmul.f32 %v1895, %v1505
  %v1898 = vadd.f32 %v1892, %v1897
  %1899 = vset.pattern.permute.xlu0 10
  %1900 = vperm.xlu0 %1899, %v1885
  %v1901 = vpop.permute.xlu0 %1900
  %v1903 = vmul.f32 %v1901, %v1511
  %v1904 = vadd.f32 %v1898, %v1903
  %1905 = vset.pattern.permute.xlu0 11
  %1906 = vperm.xlu0 %1905, %v1885
  %v1907 = vpop.permute.xlu0 %1906
  %v1909 = vmul.f32 %v1907, %v1517
  %v1910 = vadd.f32 %v1904, %v1909
  %1911 = vset.pattern.permute.xlu0 12
  %1912 = vperm.xlu0 %1911, %v1885
  %v1913 = vpop.permute.xlu0 %1912
  %v1915 = vmul.f32 %v1913, %v1523
  %v1916 = vadd.f32 %v1910, %v1915
  %1917 = vset.pattern.permute.xlu0 13
  %1918 = vperm.xlu0 %1917, %v1885
  %v1919 = vpop.permute.xlu0 %1918
  %v1921 = vmul.f32 %v1919, %v1529
  %v1922 = vadd.f32 %v1916, %v1921
  %1923 = vset.pattern.permute.xlu0 14
  %1924 = vperm.xlu0 %1923, %v1885
  %v1925 = vpop.permute.xlu0 %1924
  %v1927 = vmul.f32 %v1925, %v1535
  %v1928 = vadd.f32 %v1922, %v1927
  %1929 = vset.pattern.permute.xlu0 15
  %1930 = vperm.xlu0 %1929, %v1885
  %v1931 = vpop.permute.xlu0 %1930
  %v1933 = vmul.f32 %v1931, %v1541
  %v1934 = vadd.f32 %v1928, %v1933
  %v1936 = vrot.slane %v1934, 6
  %v1938 = vadd.f32 %v1491, %v1936
  %v1939 = vxor.u32 %v1938, 2147483648
  %v1940 = vmul.f32 %v1939, 1.442695
  %v1941 = vpow.pop %v1940
  %v1942 = vadd.f32 %v1941, 1.0
  %v1943 = vrcp.pop %v1942
  %v1944 = vmul.f32 1.0, %v1943
  %1945 = vrot.lane.b32.xlu0 %v1936, 112
  %v1946 = vpop.permute.xlu0 %1945
  %v1948 = vmul.f32 %v1944, %v1946
  %1950 = vrot.lane.b32.xlu0 %v1948, 16
  %v1951 = vpop.permute.xlu0 %1950
  %v1953 = vadd.f32 %v1491, %v1951
  %v1954 = vtanh.pop %v1953
  %v1955 = vsub.f32 1.0, %v1944
  %1957 = vrot.lane.b32.xlu0 %v1954, 120
  %v1958 = vpop.permute.xlu0 %1957
  %v1960 = vmul.f32 %v1955, %v1958
  %v1961 = vrot.slane %v1885, 6
  %v1963 = vmul.f32 %v1944, %v1961
  %v1964 = vadd.f32 %v1960, %v1963
  %1966 = vset.pattern.permute.xlu0 8
  %1967 = vperm.xlu0 %1966, %v1964
  %v1968 = vpop.permute.xlu0 %1967
  %v1970 = vmul.f32 %v1968, %v1499
  %v1971 = vadd.f32 %v1495, %v1970
  %1972 = vset.pattern.permute.xlu0 9
  %1973 = vperm.xlu0 %1972, %v1964
  %v1974 = vpop.permute.xlu0 %1973
  %v1976 = vmul.f32 %v1974, %v1505
  %v1977 = vadd.f32 %v1971, %v1976
  %1978 = vset.pattern.permute.xlu0 10
  %1979 = vperm.xlu0 %1978, %v1964
  %v1980 = vpop.permute.xlu0 %1979
  %v1982 = vmul.f32 %v1980, %v1511
  %v1983 = vadd.f32 %v1977, %v1982
  %1984 = vset.pattern.permute.xlu0 11
  %1985 = vperm.xlu0 %1984, %v1964
  %v1986 = vpop.permute.xlu0 %1985
  %v1988 = vmul.f32 %v1986, %v1517
  %v1989 = vadd.f32 %v1983, %v1988
  %1990 = vset.pattern.permute.xlu0 12
  %1991 = vperm.xlu0 %1990, %v1964
  %v1992 = vpop.permute.xlu0 %1991
  %v1994 = vmul.f32 %v1992, %v1523
  %v1995 = vadd.f32 %v1989, %v1994
  %1996 = vset.pattern.permute.xlu0 13
  %1997 = vperm.xlu0 %1996, %v1964
  %v1998 = vpop.permute.xlu0 %1997
  %v2000 = vmul.f32 %v1998, %v1529
  %v2001 = vadd.f32 %v1995, %v2000
  %2002 = vset.pattern.permute.xlu0 14
  %2003 = vperm.xlu0 %2002, %v1964
  %v2004 = vpop.permute.xlu0 %2003
  %v2006 = vmul.f32 %v2004, %v1535
  %v2007 = vadd.f32 %v2001, %v2006
  %2008 = vset.pattern.permute.xlu0 15
  %2009 = vperm.xlu0 %2008, %v1964
  %v2010 = vpop.permute.xlu0 %2009
  %v2012 = vmul.f32 %v2010, %v1541
  %v2013 = vadd.f32 %v2007, %v2012
  %v2015 = vrot.slane %v2013, 6
  %v2017 = vadd.f32 %v1491, %v2015
  %v2018 = vxor.u32 %v2017, 2147483648
  %v2019 = vmul.f32 %v2018, 1.442695
  %v2020 = vpow.pop %v2019
  %v2021 = vadd.f32 %v2020, 1.0
  %v2022 = vrcp.pop %v2021
  %v2023 = vmul.f32 1.0, %v2022
  %2024 = vrot.lane.b32.xlu0 %v2015, 112
  %v2025 = vpop.permute.xlu0 %2024
  %v2027 = vmul.f32 %v2023, %v2025
  %2029 = vrot.lane.b32.xlu0 %v2027, 16
  %v2030 = vpop.permute.xlu0 %2029
  %v2032 = vadd.f32 %v1491, %v2030
  %v2033 = vtanh.pop %v2032
  %v2034 = vsub.f32 1.0, %v2023
  %2036 = vrot.lane.b32.xlu0 %v2033, 120
  %v2037 = vpop.permute.xlu0 %2036
  %v2039 = vmul.f32 %v2034, %v2037
  %v2040 = vrot.slane %v1964, 6
  %v2042 = vmul.f32 %v2023, %v2040
  %v2043 = vadd.f32 %v2039, %v2042
  %2045 = vset.pattern.permute.xlu0 8
  %2046 = vperm.xlu0 %2045, %v2043
  %v2047 = vpop.permute.xlu0 %2046
  %v2049 = vmul.f32 %v2047, %v1499
  %v2050 = vadd.f32 %v1495, %v2049
  %2051 = vset.pattern.permute.xlu0 9
  %2052 = vperm.xlu0 %2051, %v2043
  %v2053 = vpop.permute.xlu0 %2052
  %v2055 = vmul.f32 %v2053, %v1505
  %v2056 = vadd.f32 %v2050, %v2055
  %2057 = vset.pattern.permute.xlu0 10
  %2058 = vperm.xlu0 %2057, %v2043
  %v2059 = vpop.permute.xlu0 %2058
  %v2061 = vmul.f32 %v2059, %v1511
  %v2062 = vadd.f32 %v2056, %v2061
  %2063 = vset.pattern.permute.xlu0 11
  %2064 = vperm.xlu0 %2063, %v2043
  %v2065 = vpop.permute.xlu0 %2064
  %v2067 = vmul.f32 %v2065, %v1517
  %v2068 = vadd.f32 %v2062, %v2067
  %2069 = vset.pattern.permute.xlu0 12
  %2070 = vperm.xlu0 %2069, %v2043
  %v2071 = vpop.permute.xlu0 %2070
  %v2073 = vmul.f32 %v2071, %v1523
  %v2074 = vadd.f32 %v2068, %v2073
  %2075 = vset.pattern.permute.xlu0 13
  %2076 = vperm.xlu0 %2075, %v2043
  %v2077 = vpop.permute.xlu0 %2076
  %v2079 = vmul.f32 %v2077, %v1529
  %v2080 = vadd.f32 %v2074, %v2079
  %2081 = vset.pattern.permute.xlu0 14
  %2082 = vperm.xlu0 %2081, %v2043
  %v2083 = vpop.permute.xlu0 %2082
  %v2085 = vmul.f32 %v2083, %v1535
  %v2086 = vadd.f32 %v2080, %v2085
  %2087 = vset.pattern.permute.xlu0 15
  %2088 = vperm.xlu0 %2087, %v2043
  %v2089 = vpop.permute.xlu0 %2088
  %v2091 = vmul.f32 %v2089, %v1541
  %v2092 = vadd.f32 %v2086, %v2091
  %v2094 = vrot.slane %v2092, 6
  %v2096 = vadd.f32 %v1491, %v2094
  %v2097 = vxor.u32 %v2096, 2147483648
  %v2098 = vmul.f32 %v2097, 1.442695
  %v2099 = vpow.pop %v2098
  %v2100 = vadd.f32 %v2099, 1.0
  %v2101 = vrcp.pop %v2100
  %v2102 = vmul.f32 1.0, %v2101
  %2103 = vrot.lane.b32.xlu0 %v2094, 112
  %v2104 = vpop.permute.xlu0 %2103
  %v2106 = vmul.f32 %v2102, %v2104
  %2108 = vrot.lane.b32.xlu0 %v2106, 16
  %v2109 = vpop.permute.xlu0 %2108
  %v2111 = vadd.f32 %v1491, %v2109
  %v2112 = vtanh.pop %v2111
  %v2113 = vsub.f32 1.0, %v2102
  %2115 = vrot.lane.b32.xlu0 %v2112, 120
  %v2116 = vpop.permute.xlu0 %2115
  %v2118 = vmul.f32 %v2113, %v2116
  %v2119 = vrot.slane %v2043, 6
  %v2121 = vmul.f32 %v2102, %v2119
  %v2122 = vadd.f32 %v2118, %v2121
  %vm2123 = vcmask 1041408
  %v2124 = vsel %vm2123, %v1569, %v1648
  %vm2125 = vcmask 1043456
  %v2126 = vsel %vm2125, %v2124, %v1727
  %vm2127 = vcmask 1045504
  %v2128 = vsel %vm2127, %v2126, %v1806
  %v2129 = vsel %vm2123, %v1885, %v1964
  %v2130 = vsel %vm2125, %v2129, %v2043
  %v2131 = vsel %vm2127, %v2130, %v2122
  %v2132 = vxor.u32 %v582, 2147483648
  %v2133 = vxor.u32 %v583, 2147483648
  %v2134 = vmul.f32 %v2132, 1.442695
  %v2135 = vpow.pop %v2134
  %v2136 = vmul.f32 %v2133, 1.442695
  %v2137 = vpow.pop %v2136
  %v2138 = vadd.f32 %v2135, 1.0
  %v2139 = vadd.f32 %v2137, 1.0
  %v2140 = vrcp.pop %v2138
  %v2141 = vmul.f32 1.0, %v2140
  %v2142 = vrcp.pop %v2139
  %v2143 = vmul.f32 1.0, %v2142
  %v2144 = vcvt.f32.s32.to.zero.pseudo %v582
  %v2145 = vcvt.f32.s32.to.zero.pseudo %v583
  %v2146 = vmul.f32 %v2141, 10.0
  %v2147 = vmul.f32 %v2143, 10.0
  %2150 = vrot.lane.b32.xlu0 %v582, 124
  %v2151 = vpop.permute.xlu0 %2150
  %2152 = vrot.lane.b32.xlu0 %v583, 124
  %v2153 = vpop.permute.xlu0 %2152
  %v2156 = vmul.f32 %v2141, %v2151
  %v2157 = vmul.f32 %v2143, %v2153
  %v2158 = vadd.f32 %v2156, 0.0
  %v2159 = vadd.f32 %v2157, 0.0
  %2162 = vrot.lane.b32.xlu0 %v2156, 127
  %v2163 = vpop.permute.xlu0 %2162
  %2164 = vrot.lane.b32.xlu0 %v2157, 127
  %v2165 = vpop.permute.xlu0 %2164
  %v2168 = vadd.f32 %v2158, %v2163
  %v2169 = vadd.f32 %v2159, %v2165
  %2170 = vrot.lane.b32.xlu0 %v2156, 126
  %v2171 = vpop.permute.xlu0 %2170
  %2172 = vrot.lane.b32.xlu0 %v2157, 126
  %v2173 = vpop.permute.xlu0 %2172
  %v2176 = vadd.f32 %v2168, %v2171
  %v2177 = vadd.f32 %v2169, %v2173
  %2178 = vrot.lane.b32.xlu0 %v2156, 125
  %v2179 = vpop.permute.xlu0 %2178
  %2180 = vrot.lane.b32.xlu0 %v2157, 125
  %v2181 = vpop.permute.xlu0 %2180
  %v2184 = vadd.f32 %v2176, %v2179
  %v2185 = vadd.f32 %v2177, %v2181
  %v2186 = vadd.f32 %v2184, 1e-06
  %v2187 = vadd.f32 %v2185, 1e-06
  %vm2188 = vcmp.eq.s32.totalorder %v2144, 0
  %vm2189 = vcmp.eq.s32.totalorder %v2145, 0
  %v2190 = vsel %vm2188, %v2128, 0.0
  %v2191 = vsel %vm2189, %v2131, 0.0
  %vm2192 = vcmp.eq.s32.totalorder %v2144, 1
  %vm2193 = vcmp.eq.s32.totalorder %v2145, 1
  %2196 = vrot.lane.b32.xlu0 %v2128, 127
  %v2197 = vpop.permute.xlu0 %2196
  %2198 = vrot.lane.b32.xlu0 %v2131, 127
  %v2199 = vpop.permute.xlu0 %2198
  %v2202 = vsel %vm2192, %v2197, %v2190
  %v2203 = vsel %vm2193, %v2199, %v2191
  %vm2204 = vcmp.eq.s32.totalorder %v2144, 2
  %vm2205 = vcmp.eq.s32.totalorder %v2145, 2
  %2206 = vrot.lane.b32.xlu0 %v2128, 126
  %v2207 = vpop.permute.xlu0 %2206
  %2208 = vrot.lane.b32.xlu0 %v2131, 126
  %v2209 = vpop.permute.xlu0 %2208
  %v2212 = vsel %vm2204, %v2207, %v2202
  %v2213 = vsel %vm2205, %v2209, %v2203
  %vm2214 = vcmp.eq.s32.totalorder %v2144, 3
  %vm2215 = vcmp.eq.s32.totalorder %v2145, 3
  %2216 = vrot.lane.b32.xlu0 %v2128, 125
  %v2217 = vpop.permute.xlu0 %2216
  %2218 = vrot.lane.b32.xlu0 %v2131, 125
  %v2219 = vpop.permute.xlu0 %2218
  %v2222 = vsel %vm2214, %v2217, %v2212
  %v2223 = vsel %vm2215, %v2219, %v2213
  %vm2224 = vcmp.eq.s32.totalorder %v2144, 4
  %vm2225 = vcmp.eq.s32.totalorder %v2145, 4
  %2226 = vrot.lane.b32.xlu0 %v2128, 124
  %v2227 = vpop.permute.xlu0 %2226
  %2228 = vrot.lane.b32.xlu0 %v2131, 124
  %v2229 = vpop.permute.xlu0 %2228
  %v2232 = vsel %vm2224, %v2227, %v2222
  %v2233 = vsel %vm2225, %v2229, %v2223
  %vm2234 = vcmp.eq.s32.totalorder %v2144, 5
  %vm2235 = vcmp.eq.s32.totalorder %v2145, 5
  %2236 = vrot.lane.b32.xlu0 %v2128, 123
  %v2237 = vpop.permute.xlu0 %2236
  %2238 = vrot.lane.b32.xlu0 %v2131, 123
  %v2239 = vpop.permute.xlu0 %2238
  %v2242 = vsel %vm2234, %v2237, %v2232
  %v2243 = vsel %vm2235, %v2239, %v2233
  %vm2244 = vcmp.eq.s32.totalorder %v2144, 6
  %vm2245 = vcmp.eq.s32.totalorder %v2145, 6
  %2246 = vrot.lane.b32.xlu0 %v2128, 122
  %v2247 = vpop.permute.xlu0 %2246
  %2248 = vrot.lane.b32.xlu0 %v2131, 122
  %v2249 = vpop.permute.xlu0 %2248
  %v2252 = vsel %vm2244, %v2247, %v2242
  %v2253 = vsel %vm2245, %v2249, %v2243
  %vm2254 = vcmp.eq.s32.totalorder %v2144, 7
  %vm2255 = vcmp.eq.s32.totalorder %v2145, 7
  %2256 = vrot.lane.b32.xlu0 %v2128, 121
  %v2257 = vpop.permute.xlu0 %2256
  %2258 = vrot.lane.b32.xlu0 %v2131, 121
  %v2259 = vpop.permute.xlu0 %2258
  %v2262 = vsel %vm2254, %v2257, %v2252
  %v2263 = vsel %vm2255, %v2259, %v2253
  %v2264 = vxor.u32 %v2262, 2147483648
  %v2265 = vxor.u32 %v2263, 2147483648
  %v2266 = vmul.f32 %v2264, 1.442695
  %v2267 = vpow.pop %v2266
  %v2268 = vmul.f32 %v2265, 1.442695
  %v2269 = vpow.pop %v2268
  %v2270 = vadd.f32 %v2267, 1.0
  %v2271 = vadd.f32 %v2269, 1.0
  %v2272 = vrcp.pop %v2270
  %v2273 = vmul.f32 1.0, %v2272
  %v2274 = vrcp.pop %v2271
  %v2275 = vmul.f32 1.0, %v2274
  %2278 = vrot.lane.b32.xlu0 %v2141, 8
  %v2279 = vpop.permute.xlu0 %2278
  %2280 = vrot.lane.b32.xlu0 %v2143, 8
  %v2281 = vpop.permute.xlu0 %2280
  %v2284 = vsub.f32 %v2273, %v2279
  %v2285 = vsub.f32 %v2275, %v2281
  %2286 = vrot.lane.b32.xlu0 %v582, 4
  %v2287 = vpop.permute.xlu0 %2286
  %2288 = vrot.lane.b32.xlu0 %v583, 4
  %v2289 = vpop.permute.xlu0 %2288
  %v2292 = vmul.f32 %v2284, %v2287
  %v2293 = vmul.f32 %v2285, %v2289
  %2296 = vrot.lane.b32.xlu0 %v2292, 4
  %v2297 = vpop.permute.xlu0 %2296
  %2298 = vrot.lane.b32.xlu0 %v2293, 4
  %v2299 = vpop.permute.xlu0 %2298
  %v2302 = vmul.f32 %v2146, %v2297
  %v2303 = vmul.f32 %v2147, %v2299
  %2306 = vrot.lane.b32.xlu0 %v2186, 12
  %v2307 = vpop.permute.xlu0 %2306
  %2308 = vrot.lane.b32.xlu0 %v2187, 12
  %v2309 = vpop.permute.xlu0 %2308
  %v2312 = vrcp.pop %v2307
  %v2313 = vmul.f32 %v2302, %v2312
  %v2314 = vrcp.pop %v2309
  %v2315 = vmul.f32 %v2303, %v2314
  %v2316 = vadd.f32 %v2313, 0.0
  %v2317 = vadd.f32 %v2315, 0.0
  %2318 = vrot.lane.b32.xlu0 %v2128, 1
  %v2319 = vpop.permute.xlu0 %2318
  %2320 = vrot.lane.b32.xlu0 %v2131, 1
  %v2321 = vpop.permute.xlu0 %2320
  %v2324 = vsel %vm2188, %v2319, 0.0
  %v2325 = vsel %vm2189, %v2321, 0.0
  %v2326 = vsel %vm2192, %v2128, %v2324
  %v2327 = vsel %vm2193, %v2131, %v2325
  %v2328 = vsel %vm2204, %v2197, %v2326
  %v2329 = vsel %vm2205, %v2199, %v2327
  %v2330 = vsel %vm2214, %v2207, %v2328
  %v2331 = vsel %vm2215, %v2209, %v2329
  %v2332 = vsel %vm2224, %v2217, %v2330
  %v2333 = vsel %vm2225, %v2219, %v2331
  %v2334 = vsel %vm2234, %v2227, %v2332
  %v2335 = vsel %vm2235, %v2229, %v2333
  %v2336 = vsel %vm2244, %v2237, %v2334
  %v2337 = vsel %vm2245, %v2239, %v2335
  %v2338 = vsel %vm2254, %v2247, %v2336
  %v2339 = vsel %vm2255, %v2249, %v2337
  %v2340 = vxor.u32 %v2338, 2147483648
  %v2341 = vxor.u32 %v2339, 2147483648
  %v2342 = vmul.f32 %v2340, 1.442695
  %v2343 = vpow.pop %v2342
  %v2344 = vmul.f32 %v2341, 1.442695
  %v2345 = vpow.pop %v2344
  %v2346 = vadd.f32 %v2343, 1.0
  %v2347 = vadd.f32 %v2345, 1.0
  %v2348 = vrcp.pop %v2346
  %v2349 = vmul.f32 1.0, %v2348
  %v2350 = vrcp.pop %v2347
  %v2351 = vmul.f32 1.0, %v2350
  %v2352 = vsub.f32 %v2349, %v2279
  %v2353 = vsub.f32 %v2351, %v2281
  %v2354 = vmul.f32 %v2352, %v2287
  %v2355 = vmul.f32 %v2353, %v2289
  %2358 = vrot.lane.b32.xlu0 %v2354, 3
  %v2359 = vpop.permute.xlu0 %2358
  %2360 = vrot.lane.b32.xlu0 %v2355, 3
  %v2361 = vpop.permute.xlu0 %2360
  %v2364 = vmul.f32 %v2146, %v2359
  %v2365 = vmul.f32 %v2147, %v2361
  %v2366 = vmul.f32 %v2364, %v2312
  %v2367 = vmul.f32 %v2365, %v2314
  %v2368 = vadd.f32 %v2316, %v2366
  %v2369 = vadd.f32 %v2317, %v2367
  %2370 = vrot.lane.b32.xlu0 %v2128, 2
  %v2371 = vpop.permute.xlu0 %2370
  %2372 = vrot.lane.b32.xlu0 %v2131, 2
  %v2373 = vpop.permute.xlu0 %2372
  %v2376 = vsel %vm2188, %v2371, 0.0
  %v2377 = vsel %vm2189, %v2373, 0.0
  %v2378 = vsel %vm2192, %v2319, %v2376
  %v2379 = vsel %vm2193, %v2321, %v2377
  %v2380 = vsel %vm2204, %v2128, %v2378
  %v2381 = vsel %vm2205, %v2131, %v2379
  %v2382 = vsel %vm2214, %v2197, %v2380
  %v2383 = vsel %vm2215, %v2199, %v2381
  %v2384 = vsel %vm2224, %v2207, %v2382
  %v2385 = vsel %vm2225, %v2209, %v2383
  %v2386 = vsel %vm2234, %v2217, %v2384
  %v2387 = vsel %vm2235, %v2219, %v2385
  %v2388 = vsel %vm2244, %v2227, %v2386
  %v2389 = vsel %vm2245, %v2229, %v2387
  %v2390 = vsel %vm2254, %v2237, %v2388
  %v2391 = vsel %vm2255, %v2239, %v2389
  %v2392 = vxor.u32 %v2390, 2147483648
  %v2393 = vxor.u32 %v2391, 2147483648
  %v2394 = vmul.f32 %v2392, 1.442695
  %v2395 = vpow.pop %v2394
  %v2396 = vmul.f32 %v2393, 1.442695
  %v2397 = vpow.pop %v2396
  %v2398 = vadd.f32 %v2395, 1.0
  %v2399 = vadd.f32 %v2397, 1.0
  %v2400 = vrcp.pop %v2398
  %v2401 = vmul.f32 1.0, %v2400
  %v2402 = vrcp.pop %v2399
  %v2403 = vmul.f32 1.0, %v2402
  %v2404 = vsub.f32 %v2401, %v2279
  %v2405 = vsub.f32 %v2403, %v2281
  %v2406 = vmul.f32 %v2404, %v2287
  %v2407 = vmul.f32 %v2405, %v2289
  %2410 = vrot.lane.b32.xlu0 %v2406, 2
  %v2411 = vpop.permute.xlu0 %2410
  %2412 = vrot.lane.b32.xlu0 %v2407, 2
  %v2413 = vpop.permute.xlu0 %2412
  %v2416 = vmul.f32 %v2146, %v2411
  %v2417 = vmul.f32 %v2147, %v2413
  %v2418 = vmul.f32 %v2416, %v2312
  %v2419 = vmul.f32 %v2417, %v2314
  %v2420 = vadd.f32 %v2368, %v2418
  %v2421 = vadd.f32 %v2369, %v2419
  %2422 = vrot.lane.b32.xlu0 %v2128, 3
  %v2423 = vpop.permute.xlu0 %2422
  %2424 = vrot.lane.b32.xlu0 %v2131, 3
  %v2425 = vpop.permute.xlu0 %2424
  %v2428 = vsel %vm2188, %v2423, 0.0
  %v2429 = vsel %vm2189, %v2425, 0.0
  %v2430 = vsel %vm2192, %v2371, %v2428
  %v2431 = vsel %vm2193, %v2373, %v2429
  %v2432 = vsel %vm2204, %v2319, %v2430
  %v2433 = vsel %vm2205, %v2321, %v2431
  %v2434 = vsel %vm2214, %v2128, %v2432
  %v2435 = vsel %vm2215, %v2131, %v2433
  %v2436 = vsel %vm2224, %v2197, %v2434
  %v2437 = vsel %vm2225, %v2199, %v2435
  %v2438 = vsel %vm2234, %v2207, %v2436
  %v2439 = vsel %vm2235, %v2209, %v2437
  %v2440 = vsel %vm2244, %v2217, %v2438
  %v2441 = vsel %vm2245, %v2219, %v2439
  %v2442 = vsel %vm2254, %v2227, %v2440
  %v2443 = vsel %vm2255, %v2229, %v2441
  %v2444 = vxor.u32 %v2442, 2147483648
  %v2445 = vxor.u32 %v2443, 2147483648
  %v2446 = vmul.f32 %v2444, 1.442695
  %v2447 = vpow.pop %v2446
  %v2448 = vmul.f32 %v2445, 1.442695
  %v2449 = vpow.pop %v2448
  %v2450 = vadd.f32 %v2447, 1.0
  %v2451 = vadd.f32 %v2449, 1.0
  %v2452 = vrcp.pop %v2450
  %v2453 = vmul.f32 1.0, %v2452
  %v2454 = vrcp.pop %v2451
  %v2455 = vmul.f32 1.0, %v2454
  %v2456 = vsub.f32 %v2453, %v2279
  %v2457 = vsub.f32 %v2455, %v2281
  %v2458 = vmul.f32 %v2456, %v2287
  %v2459 = vmul.f32 %v2457, %v2289
  %2462 = vrot.lane.b32.xlu0 %v2458, 1
  %v2463 = vpop.permute.xlu0 %2462
  %2464 = vrot.lane.b32.xlu0 %v2459, 1
  %v2465 = vpop.permute.xlu0 %2464
  %v2468 = vmul.f32 %v2146, %v2463
  %v2469 = vmul.f32 %v2147, %v2465
  %v2470 = vmul.f32 %v2468, %v2312
  %v2471 = vmul.f32 %v2469, %v2314
  %v2472 = vadd.f32 %v2420, %v2470
  %v2473 = vadd.f32 %v2421, %v2471
  %v2474 = vxor.u32 %v2472, 2147483648
  %v2475 = vxor.u32 %v2473, 2147483648
  %v2476 = vmul.f32 %v2474, 1.442695
  %v2477 = vpow.pop %v2476
  %v2478 = vmul.f32 %v2475, 1.442695
  %v2479 = vpow.pop %v2478
  %v2480 = vadd.f32 %v2477, 1.0
  %v2481 = vadd.f32 %v2479, 1.0
  %v2482 = vrcp.pop %v2480
  %v2483 = vmul.f32 1.0, %v2482
  %v2484 = vrcp.pop %v2481
  %v2485 = vmul.f32 1.0, %v2484
  %2488 = vrot.lane.b32.xlu0 %v2483, 116
  %v2489 = vpop.permute.xlu0 %2488
  %2490 = vrot.lane.b32.xlu0 %v2485, 116
  %v2491 = vpop.permute.xlu0 %2490
  %vm2494 = vcmask 7168
  %2495 = vst.msk [vmem:[%s4] sm:$0xff] %vm2494, %v2489
  %2496 = vst.msk [vmem:[%s4 + $0x8] sm:$0xff] %vm2494, %v2491
  // Predicated region
  $region18: #{idct_forward.1} parent=0 // pred_check
    _
  $region19: #{idct_forward.1} parent=0 // pred_check_branch
    %2498 = sbr.rel (0) target = $region21
  $region20: #{idct_forward.1} parent=0 // pred_region
    _
  $region21: #{idct_forward.1} parent=0 // pred_fallthru
    _
  // Predicated region
  $region22: #{idct_forward.1} parent=0 // pred_check
    _
  $region23: #{idct_forward.1} parent=0 // pred_check_branch
    %2500 = sbr.rel (0) target = $region25
  $region24: #{idct_forward.1} parent=0 // pred_region
    _
  $region25: #{idct_forward.1} parent=0 // pred_fallthru
    _

</llo_original>
